<compile_context>
chip_gen: v7x
topology: tpu7x:2x2x1
jax: 0.10.0
libtpu: 0.0.40
codegen_flags: <defaults>
</compile_context>

<pallas_src>
import math

import jax
import jax.numpy as jnp
import numpy as np
from jax import lax
from jax.experimental import pallas as pl
from jax.experimental.pallas import tpu as pltpu

# ------------------------- small, forward-consistent hyperparameters --------
NTOKEN = 50          # vocabulary of movie ids
NUSER = 16           # vocabulary of user ids
D_MODEL = 32
NHEAD = 4
D_HID = 64
NLAYERS = 2
SEQ = 8
BATCH = 2
HEAD_DIM = D_MODEL // NHEAD
LN_EPS = 1e-5
MAX_LEN = 64
NPAD = 128           # NTOKEN padded up to one full 128-lane tile
NROWS = SEQ * BATCH  # batch folded into the matmul M dimension


# ------------------------- in-kernel math helpers ----------------------------
def _layernorm(x, w, b):
    mu = jnp.mean(x, axis=-1, keepdims=True)
    var = jnp.mean(jnp.square(x - mu), axis=-1, keepdims=True)
    return (x - mu) * lax.rsqrt(var + LN_EPS) * w + b


# ------------------------- fused Pallas kernel --------------------------------
def fused_forward_kernel(x_ref, user_ref, mask_ref,
                         wqkv_ref, bqkv_ref, wo_ref,
                         w1_ref, b1_ref, w2_ref, vecs_ref,
                         wenc_ref, wuser_ref, bout_ref,
                         out_ref):
    """Whole TransformerModel forward on one (S*B, D) activation slab.

    Weights were pre-transposed / pre-split per head on the host, so there is
    no .T and no lane slicing inside the kernel.  The additive `mask` blocks
    cross-batch attention so the batch loop is gone.  Post-norm, ReLU, no
    src_mask; dropout is identity (eval).
    """
    scale = 1.0 / math.sqrt(HEAD_DIM)
    x = x_ref[...]                        # (NROWS, D_MODEL) resident across layers
    mask = mask_ref[...]                  # (NROWS, NROWS) additive batch-block mask

    for l in range(NLAYERS):              # static, fully unrolled
        vecs = vecs_ref[l]                # (6, D): bo, ln1w, ln1b, b2, ln2w, ln2b
        bo, ln1w, ln1b = vecs[0:1, :], vecs[1:2, :], vecs[2:3, :]
        b2, ln2w, ln2b = vecs[3:4, :], vecs[4:5, :], vecs[5:6, :]
        b1 = b1_ref[l]                    # (1, D_HID)

        # ---- multi-head self-attention (head loop static, NHEAD=4) --------
        attn = None
        base = l * 3 * NHEAD
        for h in range(NHEAD):
            wq = wqkv_ref[base + 0 * NHEAD + h]      # (D_MODEL, HEAD_DIM)
            wk = wqkv_ref[base + 1 * NHEAD + h]
            wv = wqkv_ref[base + 2 * NHEAD + h]
            bq = bqkv_ref[base + 0 * NHEAD + h]      # (1, HEAD_DIM)
            bk = bqkv_ref[base + 1 * NHEAD + h]
            bv = bqkv_ref[base + 2 * NHEAD + h]
            qh = jnp.dot(x, wq, preferred_element_type=jnp.float32) + bq
            kh = jnp.dot(x, wk, preferred_element_type=jnp.float32) + bk
            vh = jnp.dot(x, wv, preferred_element_type=jnp.float32) + bv
            # scores: contract last dims of both operands -> no materialized kh.T
            s = lax.dot_general(qh * scale, kh, (((1,), (1,)), ((), ())),
                                preferred_element_type=jnp.float32) + mask
            m = jnp.max(s, axis=-1, keepdims=True)
            e = jnp.exp(s - m)
            p = e * pl.reciprocal(jnp.sum(e, axis=-1, keepdims=True), approx=True)
            ctx = jnp.dot(p, vh, preferred_element_type=jnp.float32)     # (NROWS, HEAD_DIM)
            contrib = jnp.dot(ctx, wo_ref[l * NHEAD + h],
                              preferred_element_type=jnp.float32)        # (NROWS, D_MODEL)
            attn = contrib if attn is None else attn + contrib
        attn = attn + bo

        y = _layernorm(x + attn, ln1w, ln1b)          # norm1 (post-norm)

        # ---- feed-forward (ReLU) ------------------------------------------
        f = jnp.maximum(
            jnp.dot(y, w1_ref[l], preferred_element_type=jnp.float32) + b1, 0.0)
        f = jnp.dot(f, w2_ref[l], preferred_element_type=jnp.float32) + b2
        x = _layernorm(y + f, ln2w, ln2b)             # norm2

    # ---- final projection: concat([x, user]) @ W^T + b, as two dots -------
    out = (jnp.dot(x, wenc_ref[...], preferred_element_type=jnp.float32)
           + jnp.dot(user_ref[...], wuser_ref[...], preferred_element_type=jnp.float32)
           + bout_ref[...])
    out_ref[...] = out                    # lane-dense (NROWS, 128) store


_VMEM = pl.BlockSpec(memory_space=pltpu.MemorySpace.VMEM)


def run_fused_forward(x0, user_rows, mask, packed):
    args = (x0, user_rows, mask,
            packed["wqkv"], packed["bqkv"], packed["wo"],
            packed["w1"], packed["b1"], packed["w2"], packed["vecs"],
            packed["wenc"], packed["wuser"], packed["bout"])
    return pl.pallas_call(
        fused_forward_kernel,
        out_shape=jax.ShapeDtypeStruct((NROWS, NPAD), jnp.float32),
        in_specs=[_VMEM] * len(args),
        out_specs=_VMEM,
    )(*args)
    # TODO(synk): on v7x a grid over batch/sequence with dimension_semantics=
    # ("parallel",) would use both TensorCores; skipped at these tiny sizes.


# ------------------------- parameters & buffers --------------------------------
def make_positional_encoding():
    position = jnp.arange(MAX_LEN, dtype=jnp.float32)[:, None]
    div_term = jnp.exp(jnp.arange(0, D_MODEL, 2, dtype=jnp.float32)
                       * (-math.log(10000.0) / D_MODEL))
    pe = jnp.zeros((MAX_LEN, 1, D_MODEL), jnp.float32)
    pe = pe.at[:, 0, 0::2].set(jnp.sin(position * div_term))
    pe = pe.at[:, 0, 1::2].set(jnp.cos(position * div_term))
    return pe


def init_params(key):
    """Parameters in the original (PyTorch-like) layout."""
    initrange = 0.1
    keys = jax.random.split(key, 3 + NLAYERS * 4)
    ki = iter(keys)
    movie_emb = jax.random.uniform(next(ki), (NTOKEN, D_MODEL), jnp.float32,
                                   -initrange, initrange)
    user_emb = jax.random.uniform(next(ki), (NUSER, D_MODEL), jnp.float32,
                                  -initrange, initrange)
    linear_w = jax.random.uniform(next(ki), (NTOKEN, 2 * D_MODEL), jnp.float32,
                                  -initrange, initrange)
    linear_b = jnp.zeros((1, NTOKEN), jnp.float32)

    layers = []
    for _ in range(NLAYERS):
        in_proj = jax.random.uniform(next(ki), (3 * D_MODEL, D_MODEL),
                                     jnp.float32, -initrange, initrange)
        wq, wk, wv = (in_proj[:D_MODEL],
                      in_proj[D_MODEL:2 * D_MODEL],
                      in_proj[2 * D_MODEL:])
        bq = jnp.zeros((1, D_MODEL), jnp.float32)
        bk = jnp.zeros((1, D_MODEL), jnp.float32)
        bv = jnp.zeros((1, D_MODEL), jnp.float32)
        wo = jax.random.uniform(next(ki), (D_MODEL, D_MODEL), jnp.float32,
                                -initrange, initrange)
        bo = jnp.zeros((1, D_MODEL), jnp.float32)
        ln1w = jnp.ones((1, D_MODEL), jnp.float32)
        ln1b = jnp.zeros((1, D_MODEL), jnp.float32)
        w1 = jax.random.uniform(next(ki), (D_HID, D_MODEL), jnp.float32,
                                -initrange, initrange)
        b1 = jnp.zeros((1, D_HID), jnp.float32)
        w2 = jax.random.uniform(next(ki), (D_MODEL, D_HID), jnp.float32,
                                -initrange, initrange)
        b2 = jnp.zeros((1, D_MODEL), jnp.float32)
        ln2w = jnp.ones((1, D_MODEL), jnp.float32)
        ln2b = jnp.zeros((1, D_MODEL), jnp.float32)
        layers.append((wq, wk, wv, bq, bk, bv, wo, bo,
                       ln1w, ln1b, w1, b1, w2, b2, ln2w, ln2b))

    return {"movie_embedding": movie_emb, "user_embedding": user_emb,
            "linear_w": linear_w, "linear_b": linear_b,
            "pe": make_positional_encoding(), "layers": layers}


def pack_params(params):
    """Host-side: pre-transpose, split heads, pad NTOKEN->128, stack layers."""
    wqkv, bqkv, wo_h = [], [], []
    w1_t, b1_l, w2_t, vecs = [], [], [], []
    for (wq, wk, wv, bq, bk, bv, wo, bo,
         ln1w, ln1b, w1, b1, w2, b2, ln2w, ln2b) in params["layers"]:
        for w, bvec in ((wq, bq), (wk, bk), (wv, bv)):
            for h in range(NHEAD):
                sl = slice(h * HEAD_DIM, (h + 1) * HEAD_DIM)
                wqkv.append(w[sl, :].T)       # (D_MODEL, HEAD_DIM): x @ w == head proj
                bqkv.append(bvec[:, sl])      # (1, HEAD_DIM)
        for h in range(NHEAD):
            sl = slice(h * HEAD_DIM, (h + 1) * HEAD_DIM)
            wo_h.append(wo[:, sl].T)          # (HEAD_DIM, D_MODEL)
        w1_t.append(w1.T)                     # (D_MODEL, D_HID)
        b1_l.append(b1)                       # (1, D_HID)
        w2_t.append(w2.T)                     # (D_HID, D_MODEL)
        vecs.append(jnp.concatenate([bo, ln1w, ln1b, b2, ln2w, ln2b], axis=0))

    lw = params["linear_w"]                   # (NTOKEN, 2*D_MODEL)
    lb = params["linear_b"]                   # (1, NTOKEN)
    wenc = jnp.zeros((D_MODEL, NPAD), jnp.float32).at[:, :NTOKEN].set(lw[:, :D_MODEL].T)
    wuser = jnp.zeros((D_MODEL, NPAD), jnp.float32).at[:, :NTOKEN].set(lw[:, D_MODEL:].T)
    bout = jnp.zeros((1, NPAD), jnp.float32).at[:, :NTOKEN].set(lb)

    return {"wqkv": jnp.stack(wqkv),          # (L*3*H, D, HEAD_DIM)
            "bqkv": jnp.stack(bqkv),          # (L*3*H, 1, HEAD_DIM)
            "wo": jnp.stack(wo_h),            # (L*H, HEAD_DIM, D)
            "w1": jnp.stack(w1_t),            # (L, D, D_HID)
            "b1": jnp.stack(b1_l),            # (L, 1, D_HID)
            "w2": jnp.stack(w2_t),            # (L, D_HID, D)
            "vecs": jnp.stack(vecs),          # (L, 6, D)
            "wenc": wenc, "wuser": wuser, "bout": bout,
            "movie_embedding": params["movie_embedding"],
            "user_embedding": params["user_embedding"],
            "pe": params["pe"]}


def make_batch_mask():
    """Additive (S*B, S*B) mask: 0 within the same batch column, -1e30 across."""
    idx = jnp.arange(NROWS)
    same = (idx[:, None] % BATCH) == (idx[None, :] % BATCH)
    return jnp.where(same, 0.0, -1e30).astype(jnp.float32)


# ------------------------- full model forward (Pallas path) --------------------
@jax.jit
def transformer_model_forward(src, user, packed, mask):
    # src: (S, B) int32 movie ids;  user: (S, 1) int32 user ids
    S, B = src.shape
    movie = packed["movie_embedding"][src] * math.sqrt(D_MODEL)    # (S, B, D)
    movie = movie + packed["pe"][:S]                               # positional enc.
    # TODO(synk): dropout layers (p=0.1 / p=0.5) are identity in eval mode.
    x0 = movie.reshape(S * B, D_MODEL).astype(jnp.float32)
    user_e = packed["user_embedding"][user[:, 0]] * math.sqrt(D_MODEL)   # (S, D)
    user_rows = jnp.broadcast_to(user_e[:, None, :], (S, B, D_MODEL))
    user_rows = user_rows.reshape(S * B, D_MODEL).astype(jnp.float32)
    out_pad = run_fused_forward(x0, user_rows, mask, packed)       # (S*B, 128)
    return out_pad.reshape(S, B, NPAD)[:, :, :NTOKEN]


# ------------------------- pure-JAX reference (original layout, no Pallas) ----
def _ref_softmax(x):
    m = jnp.max(x, axis=-1, keepdims=True)
    e = jnp.exp(x - m)
    return e / jnp.sum(e, axis=-1, keepdims=True)


def _ref_encoder_layer_2d(x, wq, wk, wv, bq, bk, bv, wo, bo,
                          ln1w, ln1b, w1, b1, w2, b2, ln2w, ln2b):
    scale = 1.0 / math.sqrt(HEAD_DIM)
    q = jnp.dot(x, wq.T) + bq
    k = jnp.dot(x, wk.T) + bk
    v = jnp.dot(x, wv.T) + bv
    heads = []
    for h in range(NHEAD):
        sl = slice(h * HEAD_DIM, (h + 1) * HEAD_DIM)
        s = jnp.dot(q[:, sl] * scale, k[:, sl].T)
        heads.append(jnp.dot(_ref_softmax(s), v[:, sl]))
    attn = jnp.dot(jnp.concatenate(heads, axis=-1), wo.T) + bo
    y = _layernorm(x + attn, ln1w, ln1b)
    f = jnp.maximum(jnp.dot(y, w1.T) + b1, 0.0)
    f = jnp.dot(f, w2.T) + b2
    return _layernorm(y + f, ln2w, ln2b)


def reference_forward(src, user, params):
    S = src.shape[0]
    movie = params["movie_embedding"][src] * math.sqrt(D_MODEL)
    movie = movie + params["pe"][:S]
    x = movie.astype(jnp.float32)
    for lp in params["layers"]:
        cols = [_ref_encoder_layer_2d(x[:, b, :], *lp) for b in range(BATCH)]
        x = jnp.stack(cols, axis=1)
    user_e = params["user_embedding"][user] * math.sqrt(D_MODEL)
    user_e = jnp.broadcast_to(user_e, (S, BATCH, D_MODEL)).astype(jnp.float32)
    feat = jnp.concatenate([x, user_e], axis=-1)
    cols = [jnp.dot(feat[:, b, :], params["linear_w"].T) + params["linear_b"]
            for b in range(BATCH)]
    return jnp.stack(cols, axis=1)


# ------------------------- main ------------------------------------------------
if __name__ == "__main__":
    key = jax.random.PRNGKey(0)
    pkey, skey, ukey = jax.random.split(key, 3)
    params = init_params(pkey)
    packed = pack_params(params)
    mask = make_batch_mask()

    src = jax.random.randint(skey, (SEQ, BATCH), 0, NTOKEN, dtype=jnp.int32)
    user = jax.random.randint(ukey, (SEQ, 1), 0, NUSER, dtype=jnp.int32)

    out = transformer_model_forward(src, user, packed, mask)
    out = jax.block_until_ready(out)
    assert out.shape == (SEQ, BATCH, NTOKEN), out.shape

    ref = reference_forward(src, user, params)
    np.testing.assert_allclose(np.asarray(out), np.asarray(ref),
                               rtol=2e-3, atol=2e-3)
    print("KERNEL_OK")
</pallas_src>

<mosaic_0001>
module attributes {stable_mosaic.version = 11 : i64} {
  func.func @fused_forward_kernel(%arg0: memref<16x32xf32, #tpu.memory_space<vmem>>, %arg1: memref<16x32xf32, #tpu.memory_space<vmem>>, %arg2: memref<16x16xf32, #tpu.memory_space<vmem>>, %arg3: memref<24x32x8xf32, #tpu.memory_space<vmem>>, %arg4: memref<24x1x8xf32, #tpu.memory_space<vmem>>, %arg5: memref<8x8x32xf32, #tpu.memory_space<vmem>>, %arg6: memref<2x32x64xf32, #tpu.memory_space<vmem>>, %arg7: memref<2x1x64xf32, #tpu.memory_space<vmem>>, %arg8: memref<2x64x32xf32, #tpu.memory_space<vmem>>, %arg9: memref<2x6x32xf32, #tpu.memory_space<vmem>>, %arg10: memref<32x128xf32, #tpu.memory_space<vmem>>, %arg11: memref<32x128xf32, #tpu.memory_space<vmem>>, %arg12: memref<1x128xf32, #tpu.memory_space<vmem>>, %arg13: memref<16x128xf32, #tpu.memory_space<vmem>>) attributes {dimension_semantics = [], scalar_prefetch = 0 : i64, scratch_operands = 0 : i64, tpu.core_type = #tpu.core_type<tc>} {
    %c0 = arith.constant 0 : index
    %c0_0 = arith.constant 0 : index
    %0 = vector.load %arg0[%c0, %c0_0] : memref<16x32xf32, #tpu.memory_space<vmem>>, vector<16x32xf32>
    %c0_1 = arith.constant 0 : index
    %c0_2 = arith.constant 0 : index
    %1 = vector.load %arg2[%c0_1, %c0_2] : memref<16x16xf32, #tpu.memory_space<vmem>>, vector<16x16xf32>
    %c0_3 = arith.constant 0 : index
    %c0_4 = arith.constant 0 : index
    %c0_5 = arith.constant 0 : index
    %2 = vector.load %arg9[%c0_3, %c0_4, %c0_5] : memref<2x6x32xf32, #tpu.memory_space<vmem>>, vector<1x6x32xf32>
    %3 = vector.shape_cast %2 : vector<1x6x32xf32> to vector<6x32xf32>
    %4 = vector.extract_strided_slice %3 {offsets = [0, 0], sizes = [1, 32], strides = [1, 1]} : vector<6x32xf32> to vector<1x32xf32>
    %5 = vector.extract_strided_slice %3 {offsets = [1, 0], sizes = [1, 32], strides = [1, 1]} : vector<6x32xf32> to vector<1x32xf32>
    %6 = vector.extract_strided_slice %3 {offsets = [2, 0], sizes = [1, 32], strides = [1, 1]} : vector<6x32xf32> to vector<1x32xf32>
    %7 = vector.extract_strided_slice %3 {offsets = [3, 0], sizes = [1, 32], strides = [1, 1]} : vector<6x32xf32> to vector<1x32xf32>
    %8 = vector.extract_strided_slice %3 {offsets = [4, 0], sizes = [1, 32], strides = [1, 1]} : vector<6x32xf32> to vector<1x32xf32>
    %9 = vector.extract_strided_slice %3 {offsets = [5, 0], sizes = [1, 32], strides = [1, 1]} : vector<6x32xf32> to vector<1x32xf32>
    %c0_6 = arith.constant 0 : index
    %c0_7 = arith.constant 0 : index
    %c0_8 = arith.constant 0 : index
    %10 = vector.load %arg7[%c0_6, %c0_7, %c0_8] : memref<2x1x64xf32, #tpu.memory_space<vmem>>, vector<1x1x64xf32>
    %11 = vector.shape_cast %10 : vector<1x1x64xf32> to vector<1x64xf32>
    %c0_9 = arith.constant 0 : index
    %c0_10 = arith.constant 0 : index
    %c0_11 = arith.constant 0 : index
    %12 = vector.load %arg3[%c0_9, %c0_10, %c0_11] : memref<24x32x8xf32, #tpu.memory_space<vmem>>, vector<1x32x8xf32>
    %13 = vector.shape_cast %12 : vector<1x32x8xf32> to vector<32x8xf32>
    %c4 = arith.constant 4 : index
    %c0_12 = arith.constant 0 : index
    %c0_13 = arith.constant 0 : index
    %14 = vector.load %arg3[%c4, %c0_12, %c0_13] : memref<24x32x8xf32, #tpu.memory_space<vmem>>, vector<1x32x8xf32>
    %15 = vector.shape_cast %14 : vector<1x32x8xf32> to vector<32x8xf32>
    %c8 = arith.constant 8 : index
    %c0_14 = arith.constant 0 : index
    %c0_15 = arith.constant 0 : index
    %16 = vector.load %arg3[%c8, %c0_14, %c0_15] : memref<24x32x8xf32, #tpu.memory_space<vmem>>, vector<1x32x8xf32>
    %17 = vector.shape_cast %16 : vector<1x32x8xf32> to vector<32x8xf32>
    %c0_16 = arith.constant 0 : index
    %c0_17 = arith.constant 0 : index
    %c0_18 = arith.constant 0 : index
    %18 = vector.load %arg4[%c0_16, %c0_17, %c0_18] : memref<24x1x8xf32, #tpu.memory_space<vmem>>, vector<1x1x8xf32>
    %19 = vector.shape_cast %18 : vector<1x1x8xf32> to vector<1x8xf32>
    %c4_19 = arith.constant 4 : index
    %c0_20 = arith.constant 0 : index
    %c0_21 = arith.constant 0 : index
    %20 = vector.load %arg4[%c4_19, %c0_20, %c0_21] : memref<24x1x8xf32, #tpu.memory_space<vmem>>, vector<1x1x8xf32>
    %21 = vector.shape_cast %20 : vector<1x1x8xf32> to vector<1x8xf32>
    %c8_22 = arith.constant 8 : index
    %c0_23 = arith.constant 0 : index
    %c0_24 = arith.constant 0 : index
    %22 = vector.load %arg4[%c8_22, %c0_23, %c0_24] : memref<24x1x8xf32, #tpu.memory_space<vmem>>, vector<1x1x8xf32>
    %23 = vector.shape_cast %22 : vector<1x1x8xf32> to vector<1x8xf32>
    %cst = arith.constant dense<0.000000e+00> : vector<16x8xf32>
    %24 = tpu.matmul %0, %13, %cst {dimension_numbers = #tpu.dot_dimension_numbers<[1], [0], [0], [1], [0, 0, 1, 1], [], []>} : vector<16x32xf32>, vector<32x8xf32>, vector<16x8xf32> -> vector<16x8xf32>
    %25 = vector.broadcast %19 : vector<1x8xf32> to vector<16x8xf32>
    %26 = arith.addf %24, %25 : vector<16x8xf32>
    %cst_25 = arith.constant dense<0.000000e+00> : vector<16x8xf32>
    %27 = tpu.matmul %0, %15, %cst_25 {dimension_numbers = #tpu.dot_dimension_numbers<[1], [0], [0], [1], [0, 0, 1, 1], [], []>} : vector<16x32xf32>, vector<32x8xf32>, vector<16x8xf32> -> vector<16x8xf32>
    %28 = vector.broadcast %21 : vector<1x8xf32> to vector<16x8xf32>
    %29 = arith.addf %27, %28 : vector<16x8xf32>
    %cst_26 = arith.constant dense<0.000000e+00> : vector<16x8xf32>
    %30 = tpu.matmul %0, %17, %cst_26 {dimension_numbers = #tpu.dot_dimension_numbers<[1], [0], [0], [1], [0, 0, 1, 1], [], []>} : vector<16x32xf32>, vector<32x8xf32>, vector<16x8xf32> -> vector<16x8xf32>
    %31 = vector.broadcast %23 : vector<1x8xf32> to vector<16x8xf32>
    %32 = arith.addf %30, %31 : vector<16x8xf32>
    %cst_27 = arith.constant 0.353553385 : f32
    %33 = vector.broadcast %cst_27 : f32 to vector<16x8xf32>
    %34 = arith.mulf %26, %33 : vector<16x8xf32>
    %cst_28 = arith.constant dense<0.000000e+00> : vector<16x16xf32>
    %35 = tpu.matmul %34, %29, %cst_28 {dimension_numbers = #tpu.dot_dimension_numbers<[1], [1], [0], [0], [0, 0, 1, 0], [], []>} : vector<16x8xf32>, vector<16x8xf32>, vector<16x16xf32> -> vector<16x16xf32>
    %36 = arith.addf %35, %1 : vector<16x16xf32>
    %cst_29 = arith.constant dense<0xFF800000> : vector<16xf32>
    %37 = vector.multi_reduction <maximumf>, %36, %cst_29 [1] : vector<16x16xf32> to vector<16xf32>
    %38 = vector.shape_cast %37 : vector<16xf32> to vector<16x1xf32>
    %39 = vector.broadcast %38 : vector<16x1xf32> to vector<16x16xf32>
    %40 = arith.subf %36, %39 : vector<16x16xf32>
    %41 = math.exp %40 : vector<16x16xf32>
    %cst_30 = arith.constant dense<0.000000e+00> : vector<16xf32>
    %42 = vector.multi_reduction <add>, %41, %cst_30 [1] : vector<16x16xf32> to vector<16xf32>
    %43 = vector.shape_cast %42 : vector<16xf32> to vector<16x1xf32>
    %44 = tpu.reciprocal %43 {approx = true} : vector<16x1xf32> -> vector<16x1xf32>
    %45 = vector.broadcast %44 : vector<16x1xf32> to vector<16x16xf32>
    %46 = arith.mulf %41, %45 : vector<16x16xf32>
    %cst_31 = arith.constant dense<0.000000e+00> : vector<16x8xf32>
    %47 = tpu.matmul %46, %32, %cst_31 {dimension_numbers = #tpu.dot_dimension_numbers<[1], [0], [0], [1], [0, 0, 1, 1], [], []>} : vector<16x16xf32>, vector<16x8xf32>, vector<16x8xf32> -> vector<16x8xf32>
    %c0_32 = arith.constant 0 : index
    %c0_33 = arith.constant 0 : index
    %c0_34 = arith.constant 0 : index
    %48 = vector.load %arg5[%c0_32, %c0_33, %c0_34] : memref<8x8x32xf32, #tpu.memory_space<vmem>>, vector<1x8x32xf32>
    %49 = vector.shape_cast %48 : vector<1x8x32xf32> to vector<8x32xf32>
    %cst_35 = arith.constant dense<0.000000e+00> : vector<16x32xf32>
    %50 = tpu.matmul %47, %49, %cst_35 {dimension_numbers = #tpu.dot_dimension_numbers<[1], [0], [0], [1], [0, 0, 1, 1], [], []>} : vector<16x8xf32>, vector<8x32xf32>, vector<16x32xf32> -> vector<16x32xf32>
    %c1 = arith.constant 1 : index
    %c0_36 = arith.constant 0 : index
    %c0_37 = arith.constant 0 : index
    %51 = vector.load %arg3[%c1, %c0_36, %c0_37] : memref<24x32x8xf32, #tpu.memory_space<vmem>>, vector<1x32x8xf32>
    %52 = vector.shape_cast %51 : vector<1x32x8xf32> to vector<32x8xf32>
    %c5 = arith.constant 5 : index
    %c0_38 = arith.constant 0 : index
    %c0_39 = arith.constant 0 : index
    %53 = vector.load %arg3[%c5, %c0_38, %c0_39] : memref<24x32x8xf32, #tpu.memory_space<vmem>>, vector<1x32x8xf32>
    %54 = vector.shape_cast %53 : vector<1x32x8xf32> to vector<32x8xf32>
    %c9 = arith.constant 9 : index
    %c0_40 = arith.constant 0 : index
    %c0_41 = arith.constant 0 : index
    %55 = vector.load %arg3[%c9, %c0_40, %c0_41] : memref<24x32x8xf32, #tpu.memory_space<vmem>>, vector<1x32x8xf32>
    %56 = vector.shape_cast %55 : vector<1x32x8xf32> to vector<32x8xf32>
    %c1_42 = arith.constant 1 : index
    %c0_43 = arith.constant 0 : index
    %c0_44 = arith.constant 0 : index
    %57 = vector.load %arg4[%c1_42, %c0_43, %c0_44] : memref<24x1x8xf32, #tpu.memory_space<vmem>>, vector<1x1x8xf32>
    %58 = vector.shape_cast %57 : vector<1x1x8xf32> to vector<1x8xf32>
    %c5_45 = arith.constant 5 : index
    %c0_46 = arith.constant 0 : index
    %c0_47 = arith.constant 0 : index
    %59 = vector.load %arg4[%c5_45, %c0_46, %c0_47] : memref<24x1x8xf32, #tpu.memory_space<vmem>>, vector<1x1x8xf32>
    %60 = vector.shape_cast %59 : vector<1x1x8xf32> to vector<1x8xf32>
    %c9_48 = arith.constant 9 : index
    %c0_49 = arith.constant 0 : index
    %c0_50 = arith.constant 0 : index
    %61 = vector.load %arg4[%c9_48, %c0_49, %c0_50] : memref<24x1x8xf32, #tpu.memory_space<vmem>>, vector<1x1x8xf32>
    %62 = vector.shape_cast %61 : vector<1x1x8xf32> to vector<1x8xf32>
    %cst_51 = arith.constant dense<0.000000e+00> : vector<16x8xf32>
    %63 = tpu.matmul %0, %52, %cst_51 {dimension_numbers = #tpu.dot_dimension_numbers<[1], [0], [0], [1], [0, 0, 1, 1], [], []>} : vector<16x32xf32>, vector<32x8xf32>, vector<16x8xf32> -> vector<16x8xf32>
    %64 = vector.broadcast %58 : vector<1x8xf32> to vector<16x8xf32>
    %65 = arith.addf %63, %64 : vector<16x8xf32>
    %cst_52 = arith.constant dense<0.000000e+00> : vector<16x8xf32>
    %66 = tpu.matmul %0, %54, %cst_52 {dimension_numbers = #tpu.dot_dimension_numbers<[1], [0], [0], [1], [0, 0, 1, 1], [], []>} : vector<16x32xf32>, vector<32x8xf32>, vector<16x8xf32> -> vector<16x8xf32>
    %67 = vector.broadcast %60 : vector<1x8xf32> to vector<16x8xf32>
    %68 = arith.addf %66, %67 : vector<16x8xf32>
    %cst_53 = arith.constant dense<0.000000e+00> : vector<16x8xf32>
    %69 = tpu.matmul %0, %56, %cst_53 {dimension_numbers = #tpu.dot_dimension_numbers<[1], [0], [0], [1], [0, 0, 1, 1], [], []>} : vector<16x32xf32>, vector<32x8xf32>, vector<16x8xf32> -> vector<16x8xf32>
    %70 = vector.broadcast %62 : vector<1x8xf32> to vector<16x8xf32>
    %71 = arith.addf %69, %70 : vector<16x8xf32>
    %cst_54 = arith.constant 0.353553385 : f32
    %72 = vector.broadcast %cst_54 : f32 to vector<16x8xf32>
    %73 = arith.mulf %65, %72 : vector<16x8xf32>
    %cst_55 = arith.constant dense<0.000000e+00> : vector<16x16xf32>
    %74 = tpu.matmul %73, %68, %cst_55 {dimension_numbers = #tpu.dot_dimension_numbers<[1], [1], [0], [0], [0, 0, 1, 0], [], []>} : vector<16x8xf32>, vector<16x8xf32>, vector<16x16xf32> -> vector<16x16xf32>
    %75 = arith.addf %74, %1 : vector<16x16xf32>
    %cst_56 = arith.constant dense<0xFF800000> : vector<16xf32>
    %76 = vector.multi_reduction <maximumf>, %75, %cst_56 [1] : vector<16x16xf32> to vector<16xf32>
    %77 = vector.shape_cast %76 : vector<16xf32> to vector<16x1xf32>
    %78 = vector.broadcast %77 : vector<16x1xf32> to vector<16x16xf32>
    %79 = arith.subf %75, %78 : vector<16x16xf32>
    %80 = math.exp %79 : vector<16x16xf32>
    %cst_57 = arith.constant dense<0.000000e+00> : vector<16xf32>
    %81 = vector.multi_reduction <add>, %80, %cst_57 [1] : vector<16x16xf32> to vector<16xf32>
    %82 = vector.shape_cast %81 : vector<16xf32> to vector<16x1xf32>
    %83 = tpu.reciprocal %82 {approx = true} : vector<16x1xf32> -> vector<16x1xf32>
    %84 = vector.broadcast %83 : vector<16x1xf32> to vector<16x16xf32>
    %85 = arith.mulf %80, %84 : vector<16x16xf32>
    %cst_58 = arith.constant dense<0.000000e+00> : vector<16x8xf32>
    %86 = tpu.matmul %85, %71, %cst_58 {dimension_numbers = #tpu.dot_dimension_numbers<[1], [0], [0], [1], [0, 0, 1, 1], [], []>} : vector<16x16xf32>, vector<16x8xf32>, vector<16x8xf32> -> vector<16x8xf32>
    %c1_59 = arith.constant 1 : index
    %c0_60 = arith.constant 0 : index
    %c0_61 = arith.constant 0 : index
    %87 = vector.load %arg5[%c1_59, %c0_60, %c0_61] : memref<8x8x32xf32, #tpu.memory_space<vmem>>, vector<1x8x32xf32>
    %88 = vector.shape_cast %87 : vector<1x8x32xf32> to vector<8x32xf32>
    %cst_62 = arith.constant dense<0.000000e+00> : vector<16x32xf32>
    %89 = tpu.matmul %86, %88, %cst_62 {dimension_numbers = #tpu.dot_dimension_numbers<[1], [0], [0], [1], [0, 0, 1, 1], [], []>} : vector<16x8xf32>, vector<8x32xf32>, vector<16x32xf32> -> vector<16x32xf32>
    %90 = arith.addf %50, %89 : vector<16x32xf32>
    %c2 = arith.constant 2 : index
    %c0_63 = arith.constant 0 : index
    %c0_64 = arith.constant 0 : index
    %91 = vector.load %arg3[%c2, %c0_63, %c0_64] : memref<24x32x8xf32, #tpu.memory_space<vmem>>, vector<1x32x8xf32>
    %92 = vector.shape_cast %91 : vector<1x32x8xf32> to vector<32x8xf32>
    %c6 = arith.constant 6 : index
    %c0_65 = arith.constant 0 : index
    %c0_66 = arith.constant 0 : index
    %93 = vector.load %arg3[%c6, %c0_65, %c0_66] : memref<24x32x8xf32, #tpu.memory_space<vmem>>, vector<1x32x8xf32>
    %94 = vector.shape_cast %93 : vector<1x32x8xf32> to vector<32x8xf32>
    %c10 = arith.constant 10 : index
    %c0_67 = arith.constant 0 : index
    %c0_68 = arith.constant 0 : index
    %95 = vector.load %arg3[%c10, %c0_67, %c0_68] : memref<24x32x8xf32, #tpu.memory_space<vmem>>, vector<1x32x8xf32>
    %96 = vector.shape_cast %95 : vector<1x32x8xf32> to vector<32x8xf32>
    %c2_69 = arith.constant 2 : index
    %c0_70 = arith.constant 0 : index
    %c0_71 = arith.constant 0 : index
    %97 = vector.load %arg4[%c2_69, %c0_70, %c0_71] : memref<24x1x8xf32, #tpu.memory_space<vmem>>, vector<1x1x8xf32>
    %98 = vector.shape_cast %97 : vector<1x1x8xf32> to vector<1x8xf32>
    %c6_72 = arith.constant 6 : index
    %c0_73 = arith.constant 0 : index
    %c0_74 = arith.constant 0 : index
    %99 = vector.load %arg4[%c6_72, %c0_73, %c0_74] : memref<24x1x8xf32, #tpu.memory_space<vmem>>, vector<1x1x8xf32>
    %100 = vector.shape_cast %99 : vector<1x1x8xf32> to vector<1x8xf32>
    %c10_75 = arith.constant 10 : index
    %c0_76 = arith.constant 0 : index
    %c0_77 = arith.constant 0 : index
    %101 = vector.load %arg4[%c10_75, %c0_76, %c0_77] : memref<24x1x8xf32, #tpu.memory_space<vmem>>, vector<1x1x8xf32>
    %102 = vector.shape_cast %101 : vector<1x1x8xf32> to vector<1x8xf32>
    %cst_78 = arith.constant dense<0.000000e+00> : vector<16x8xf32>
    %103 = tpu.matmul %0, %92, %cst_78 {dimension_numbers = #tpu.dot_dimension_numbers<[1], [0], [0], [1], [0, 0, 1, 1], [], []>} : vector<16x32xf32>, vector<32x8xf32>, vector<16x8xf32> -> vector<16x8xf32>
    %104 = vector.broadcast %98 : vector<1x8xf32> to vector<16x8xf32>
    %105 = arith.addf %103, %104 : vector<16x8xf32>
    %cst_79 = arith.constant dense<0.000000e+00> : vector<16x8xf32>
    %106 = tpu.matmul %0, %94, %cst_79 {dimension_numbers = #tpu.dot_dimension_numbers<[1], [0], [0], [1], [0, 0, 1, 1], [], []>} : vector<16x32xf32>, vector<32x8xf32>, vector<16x8xf32> -> vector<16x8xf32>
    %107 = vector.broadcast %100 : vector<1x8xf32> to vector<16x8xf32>
    %108 = arith.addf %106, %107 : vector<16x8xf32>
    %cst_80 = arith.constant dense<0.000000e+00> : vector<16x8xf32>
    %109 = tpu.matmul %0, %96, %cst_80 {dimension_numbers = #tpu.dot_dimension_numbers<[1], [0], [0], [1], [0, 0, 1, 1], [], []>} : vector<16x32xf32>, vector<32x8xf32>, vector<16x8xf32> -> vector<16x8xf32>
    %110 = vector.broadcast %102 : vector<1x8xf32> to vector<16x8xf32>
    %111 = arith.addf %109, %110 : vector<16x8xf32>
    %cst_81 = arith.constant 0.353553385 : f32
    %112 = vector.broadcast %cst_81 : f32 to vector<16x8xf32>
    %113 = arith.mulf %105, %112 : vector<16x8xf32>
    %cst_82 = arith.constant dense<0.000000e+00> : vector<16x16xf32>
    %114 = tpu.matmul %113, %108, %cst_82 {dimension_numbers = #tpu.dot_dimension_numbers<[1], [1], [0], [0], [0, 0, 1, 0], [], []>} : vector<16x8xf32>, vector<16x8xf32>, vector<16x16xf32> -> vector<16x16xf32>
    %115 = arith.addf %114, %1 : vector<16x16xf32>
    %cst_83 = arith.constant dense<0xFF800000> : vector<16xf32>
    %116 = vector.multi_reduction <maximumf>, %115, %cst_83 [1] : vector<16x16xf32> to vector<16xf32>
    %117 = vector.shape_cast %116 : vector<16xf32> to vector<16x1xf32>
    %118 = vector.broadcast %117 : vector<16x1xf32> to vector<16x16xf32>
    %119 = arith.subf %115, %118 : vector<16x16xf32>
    %120 = math.exp %119 : vector<16x16xf32>
    %cst_84 = arith.constant dense<0.000000e+00> : vector<16xf32>
    %121 = vector.multi_reduction <add>, %120, %cst_84 [1] : vector<16x16xf32> to vector<16xf32>
    %122 = vector.shape_cast %121 : vector<16xf32> to vector<16x1xf32>
    %123 = tpu.reciprocal %122 {approx = true} : vector<16x1xf32> -> vector<16x1xf32>
    %124 = vector.broadcast %123 : vector<16x1xf32> to vector<16x16xf32>
    %125 = arith.mulf %120, %124 : vector<16x16xf32>
    %cst_85 = arith.constant dense<0.000000e+00> : vector<16x8xf32>
    %126 = tpu.matmul %125, %111, %cst_85 {dimension_numbers = #tpu.dot_dimension_numbers<[1], [0], [0], [1], [0, 0, 1, 1], [], []>} : vector<16x16xf32>, vector<16x8xf32>, vector<16x8xf32> -> vector<16x8xf32>
    %c2_86 = arith.constant 2 : index
    %c0_87 = arith.constant 0 : index
    %c0_88 = arith.constant 0 : index
    %127 = vector.load %arg5[%c2_86, %c0_87, %c0_88] : memref<8x8x32xf32, #tpu.memory_space<vmem>>, vector<1x8x32xf32>
    %128 = vector.shape_cast %127 : vector<1x8x32xf32> to vector<8x32xf32>
    %cst_89 = arith.constant dense<0.000000e+00> : vector<16x32xf32>
    %129 = tpu.matmul %126, %128, %cst_89 {dimension_numbers = #tpu.dot_dimension_numbers<[1], [0], [0], [1], [0, 0, 1, 1], [], []>} : vector<16x8xf32>, vector<8x32xf32>, vector<16x32xf32> -> vector<16x32xf32>
    %130 = arith.addf %90, %129 : vector<16x32xf32>
    %c3 = arith.constant 3 : index
    %c0_90 = arith.constant 0 : index
    %c0_91 = arith.constant 0 : index
    %131 = vector.load %arg3[%c3, %c0_90, %c0_91] : memref<24x32x8xf32, #tpu.memory_space<vmem>>, vector<1x32x8xf32>
    %132 = vector.shape_cast %131 : vector<1x32x8xf32> to vector<32x8xf32>
    %c7 = arith.constant 7 : index
    %c0_92 = arith.constant 0 : index
    %c0_93 = arith.constant 0 : index
    %133 = vector.load %arg3[%c7, %c0_92, %c0_93] : memref<24x32x8xf32, #tpu.memory_space<vmem>>, vector<1x32x8xf32>
    %134 = vector.shape_cast %133 : vector<1x32x8xf32> to vector<32x8xf32>
    %c11 = arith.constant 11 : index
    %c0_94 = arith.constant 0 : index
    %c0_95 = arith.constant 0 : index
    %135 = vector.load %arg3[%c11, %c0_94, %c0_95] : memref<24x32x8xf32, #tpu.memory_space<vmem>>, vector<1x32x8xf32>
    %136 = vector.shape_cast %135 : vector<1x32x8xf32> to vector<32x8xf32>
    %c3_96 = arith.constant 3 : index
    %c0_97 = arith.constant 0 : index
    %c0_98 = arith.constant 0 : index
    %137 = vector.load %arg4[%c3_96, %c0_97, %c0_98] : memref<24x1x8xf32, #tpu.memory_space<vmem>>, vector<1x1x8xf32>
    %138 = vector.shape_cast %137 : vector<1x1x8xf32> to vector<1x8xf32>
    %c7_99 = arith.constant 7 : index
    %c0_100 = arith.constant 0 : index
    %c0_101 = arith.constant 0 : index
    %139 = vector.load %arg4[%c7_99, %c0_100, %c0_101] : memref<24x1x8xf32, #tpu.memory_space<vmem>>, vector<1x1x8xf32>
    %140 = vector.shape_cast %139 : vector<1x1x8xf32> to vector<1x8xf32>
    %c11_102 = arith.constant 11 : index
    %c0_103 = arith.constant 0 : index
    %c0_104 = arith.constant 0 : index
    %141 = vector.load %arg4[%c11_102, %c0_103, %c0_104] : memref<24x1x8xf32, #tpu.memory_space<vmem>>, vector<1x1x8xf32>
    %142 = vector.shape_cast %141 : vector<1x1x8xf32> to vector<1x8xf32>
    %cst_105 = arith.constant dense<0.000000e+00> : vector<16x8xf32>
    %143 = tpu.matmul %0, %132, %cst_105 {dimension_numbers = #tpu.dot_dimension_numbers<[1], [0], [0], [1], [0, 0, 1, 1], [], []>} : vector<16x32xf32>, vector<32x8xf32>, vector<16x8xf32> -> vector<16x8xf32>
    %144 = vector.broadcast %138 : vector<1x8xf32> to vector<16x8xf32>
    %145 = arith.addf %143, %144 : vector<16x8xf32>
    %cst_106 = arith.constant dense<0.000000e+00> : vector<16x8xf32>
    %146 = tpu.matmul %0, %134, %cst_106 {dimension_numbers = #tpu.dot_dimension_numbers<[1], [0], [0], [1], [0, 0, 1, 1], [], []>} : vector<16x32xf32>, vector<32x8xf32>, vector<16x8xf32> -> vector<16x8xf32>
    %147 = vector.broadcast %140 : vector<1x8xf32> to vector<16x8xf32>
    %148 = arith.addf %146, %147 : vector<16x8xf32>
    %cst_107 = arith.constant dense<0.000000e+00> : vector<16x8xf32>
    %149 = tpu.matmul %0, %136, %cst_107 {dimension_numbers = #tpu.dot_dimension_numbers<[1], [0], [0], [1], [0, 0, 1, 1], [], []>} : vector<16x32xf32>, vector<32x8xf32>, vector<16x8xf32> -> vector<16x8xf32>
    %150 = vector.broadcast %142 : vector<1x8xf32> to vector<16x8xf32>
    %151 = arith.addf %149, %150 : vector<16x8xf32>
    %cst_108 = arith.constant 0.353553385 : f32
    %152 = vector.broadcast %cst_108 : f32 to vector<16x8xf32>
    %153 = arith.mulf %145, %152 : vector<16x8xf32>
    %cst_109 = arith.constant dense<0.000000e+00> : vector<16x16xf32>
    %154 = tpu.matmul %153, %148, %cst_109 {dimension_numbers = #tpu.dot_dimension_numbers<[1], [1], [0], [0], [0, 0, 1, 0], [], []>} : vector<16x8xf32>, vector<16x8xf32>, vector<16x16xf32> -> vector<16x16xf32>
    %155 = arith.addf %154, %1 : vector<16x16xf32>
    %cst_110 = arith.constant dense<0xFF800000> : vector<16xf32>
    %156 = vector.multi_reduction <maximumf>, %155, %cst_110 [1] : vector<16x16xf32> to vector<16xf32>
    %157 = vector.shape_cast %156 : vector<16xf32> to vector<16x1xf32>
    %158 = vector.broadcast %157 : vector<16x1xf32> to vector<16x16xf32>
    %159 = arith.subf %155, %158 : vector<16x16xf32>
    %160 = math.exp %159 : vector<16x16xf32>
    %cst_111 = arith.constant dense<0.000000e+00> : vector<16xf32>
    %161 = vector.multi_reduction <add>, %160, %cst_111 [1] : vector<16x16xf32> to vector<16xf32>
    %162 = vector.shape_cast %161 : vector<16xf32> to vector<16x1xf32>
    %163 = tpu.reciprocal %162 {approx = true} : vector<16x1xf32> -> vector<16x1xf32>
    %164 = vector.broadcast %163 : vector<16x1xf32> to vector<16x16xf32>
    %165 = arith.mulf %160, %164 : vector<16x16xf32>
    %cst_112 = arith.constant dense<0.000000e+00> : vector<16x8xf32>
    %166 = tpu.matmul %165, %151, %cst_112 {dimension_numbers = #tpu.dot_dimension_numbers<[1], [0], [0], [1], [0, 0, 1, 1], [], []>} : vector<16x16xf32>, vector<16x8xf32>, vector<16x8xf32> -> vector<16x8xf32>
    %c3_113 = arith.constant 3 : index
    %c0_114 = arith.constant 0 : index
    %c0_115 = arith.constant 0 : index
    %167 = vector.load %arg5[%c3_113, %c0_114, %c0_115] : memref<8x8x32xf32, #tpu.memory_space<vmem>>, vector<1x8x32xf32>
    %168 = vector.shape_cast %167 : vector<1x8x32xf32> to vector<8x32xf32>
    %cst_116 = arith.constant dense<0.000000e+00> : vector<16x32xf32>
    %169 = tpu.matmul %166, %168, %cst_116 {dimension_numbers = #tpu.dot_dimension_numbers<[1], [0], [0], [1], [0, 0, 1, 1], [], []>} : vector<16x8xf32>, vector<8x32xf32>, vector<16x32xf32> -> vector<16x32xf32>
    %170 = arith.addf %130, %169 : vector<16x32xf32>
    %171 = vector.broadcast %4 : vector<1x32xf32> to vector<16x32xf32>
    %172 = arith.addf %170, %171 : vector<16x32xf32>
    %173 = arith.addf %0, %172 : vector<16x32xf32>
    %cst_117 = arith.constant dense<0.000000e+00> : vector<16xf32>
    %174 = vector.multi_reduction <add>, %173, %cst_117 [1] : vector<16x32xf32> to vector<16xf32>
    %175 = vector.shape_cast %174 : vector<16xf32> to vector<16x1xf32>
    %cst_118 = arith.constant 3.200000e+01 : f32
    %176 = vector.broadcast %cst_118 : f32 to vector<16x1xf32>
    %177 = arith.divf %175, %176 : vector<16x1xf32>
    %178 = vector.broadcast %177 : vector<16x1xf32> to vector<16x32xf32>
    %179 = arith.subf %173, %178 : vector<16x32xf32>
    %180 = arith.mulf %179, %179 : vector<16x32xf32>
    %cst_119 = arith.constant dense<0.000000e+00> : vector<16xf32>
    %181 = vector.multi_reduction <add>, %180, %cst_119 [1] : vector<16x32xf32> to vector<16xf32>
    %182 = vector.shape_cast %181 : vector<16xf32> to vector<16x1xf32>
    %cst_120 = arith.constant 3.200000e+01 : f32
    %183 = vector.broadcast %cst_120 : f32 to vector<16x1xf32>
    %184 = arith.divf %182, %183 : vector<16x1xf32>
    %185 = vector.broadcast %177 : vector<16x1xf32> to vector<16x32xf32>
    %186 = arith.subf %173, %185 : vector<16x32xf32>
    %cst_121 = arith.constant 9.99999974E-6 : f32
    %187 = vector.broadcast %cst_121 : f32 to vector<16x1xf32>
    %188 = arith.addf %184, %187 : vector<16x1xf32>
    %189 = math.rsqrt %188 : vector<16x1xf32>
    %190 = vector.broadcast %189 : vector<16x1xf32> to vector<16x32xf32>
    %191 = arith.mulf %186, %190 : vector<16x32xf32>
    %192 = vector.broadcast %5 : vector<1x32xf32> to vector<16x32xf32>
    %193 = arith.mulf %191, %192 : vector<16x32xf32>
    %194 = vector.broadcast %6 : vector<1x32xf32> to vector<16x32xf32>
    %195 = arith.addf %193, %194 : vector<16x32xf32>
    %c0_122 = arith.constant 0 : index
    %c0_123 = arith.constant 0 : index
    %c0_124 = arith.constant 0 : index
    %196 = vector.load %arg6[%c0_122, %c0_123, %c0_124] : memref<2x32x64xf32, #tpu.memory_space<vmem>>, vector<1x32x64xf32>
    %197 = vector.shape_cast %196 : vector<1x32x64xf32> to vector<32x64xf32>
    %cst_125 = arith.constant dense<0.000000e+00> : vector<16x64xf32>
    %198 = tpu.matmul %195, %197, %cst_125 {dimension_numbers = #tpu.dot_dimension_numbers<[1], [0], [0], [1], [0, 0, 1, 1], [], []>} : vector<16x32xf32>, vector<32x64xf32>, vector<16x64xf32> -> vector<16x64xf32>
    %199 = vector.broadcast %11 : vector<1x64xf32> to vector<16x64xf32>
    %200 = arith.addf %198, %199 : vector<16x64xf32>
    %cst_126 = arith.constant 0.000000e+00 : f32
    %201 = vector.broadcast %cst_126 : f32 to vector<16x64xf32>
    %202 = arith.maximumf %200, %201 : vector<16x64xf32>
    %c0_127 = arith.constant 0 : index
    %c0_128 = arith.constant 0 : index
    %c0_129 = arith.constant 0 : index
    %203 = vector.load %arg8[%c0_127, %c0_128, %c0_129] : memref<2x64x32xf32, #tpu.memory_space<vmem>>, vector<1x64x32xf32>
    %204 = vector.shape_cast %203 : vector<1x64x32xf32> to vector<64x32xf32>
    %cst_130 = arith.constant dense<0.000000e+00> : vector<16x32xf32>
    %205 = tpu.matmul %202, %204, %cst_130 {dimension_numbers = #tpu.dot_dimension_numbers<[1], [0], [0], [1], [0, 0, 1, 1], [], []>} : vector<16x64xf32>, vector<64x32xf32>, vector<16x32xf32> -> vector<16x32xf32>
    %206 = vector.broadcast %7 : vector<1x32xf32> to vector<16x32xf32>
    %207 = arith.addf %205, %206 : vector<16x32xf32>
    %208 = arith.addf %195, %207 : vector<16x32xf32>
    %cst_131 = arith.constant dense<0.000000e+00> : vector<16xf32>
    %209 = vector.multi_reduction <add>, %208, %cst_131 [1] : vector<16x32xf32> to vector<16xf32>
    %210 = vector.shape_cast %209 : vector<16xf32> to vector<16x1xf32>
    %cst_132 = arith.constant 3.200000e+01 : f32
    %211 = vector.broadcast %cst_132 : f32 to vector<16x1xf32>
    %212 = arith.divf %210, %211 : vector<16x1xf32>
    %213 = vector.broadcast %212 : vector<16x1xf32> to vector<16x32xf32>
    %214 = arith.subf %208, %213 : vector<16x32xf32>
    %215 = arith.mulf %214, %214 : vector<16x32xf32>
    %cst_133 = arith.constant dense<0.000000e+00> : vector<16xf32>
    %216 = vector.multi_reduction <add>, %215, %cst_133 [1] : vector<16x32xf32> to vector<16xf32>
    %217 = vector.shape_cast %216 : vector<16xf32> to vector<16x1xf32>
    %cst_134 = arith.constant 3.200000e+01 : f32
    %218 = vector.broadcast %cst_134 : f32 to vector<16x1xf32>
    %219 = arith.divf %217, %218 : vector<16x1xf32>
    %220 = vector.broadcast %212 : vector<16x1xf32> to vector<16x32xf32>
    %221 = arith.subf %208, %220 : vector<16x32xf32>
    %cst_135 = arith.constant 9.99999974E-6 : f32
    %222 = vector.broadcast %cst_135 : f32 to vector<16x1xf32>
    %223 = arith.addf %219, %222 : vector<16x1xf32>
    %224 = math.rsqrt %223 : vector<16x1xf32>
    %225 = vector.broadcast %224 : vector<16x1xf32> to vector<16x32xf32>
    %226 = arith.mulf %221, %225 : vector<16x32xf32>
    %227 = vector.broadcast %8 : vector<1x32xf32> to vector<16x32xf32>
    %228 = arith.mulf %226, %227 : vector<16x32xf32>
    %229 = vector.broadcast %9 : vector<1x32xf32> to vector<16x32xf32>
    %230 = arith.addf %228, %229 : vector<16x32xf32>
    %c1_136 = arith.constant 1 : index
    %c0_137 = arith.constant 0 : index
    %c0_138 = arith.constant 0 : index
    %231 = vector.load %arg9[%c1_136, %c0_137, %c0_138] : memref<2x6x32xf32, #tpu.memory_space<vmem>>, vector<1x6x32xf32>
    %232 = vector.shape_cast %231 : vector<1x6x32xf32> to vector<6x32xf32>
    %233 = vector.extract_strided_slice %232 {offsets = [0, 0], sizes = [1, 32], strides = [1, 1]} : vector<6x32xf32> to vector<1x32xf32>
    %234 = vector.extract_strided_slice %232 {offsets = [1, 0], sizes = [1, 32], strides = [1, 1]} : vector<6x32xf32> to vector<1x32xf32>
    %235 = vector.extract_strided_slice %232 {offsets = [2, 0], sizes = [1, 32], strides = [1, 1]} : vector<6x32xf32> to vector<1x32xf32>
    %236 = vector.extract_strided_slice %232 {offsets = [3, 0], sizes = [1, 32], strides = [1, 1]} : vector<6x32xf32> to vector<1x32xf32>
    %237 = vector.extract_strided_slice %232 {offsets = [4, 0], sizes = [1, 32], strides = [1, 1]} : vector<6x32xf32> to vector<1x32xf32>
    %238 = vector.extract_strided_slice %232 {offsets = [5, 0], sizes = [1, 32], strides = [1, 1]} : vector<6x32xf32> to vector<1x32xf32>
    %c1_139 = arith.constant 1 : index
    %c0_140 = arith.constant 0 : index
    %c0_141 = arith.constant 0 : index
    %239 = vector.load %arg7[%c1_139, %c0_140, %c0_141] : memref<2x1x64xf32, #tpu.memory_space<vmem>>, vector<1x1x64xf32>
    %240 = vector.shape_cast %239 : vector<1x1x64xf32> to vector<1x64xf32>
    %c12 = arith.constant 12 : index
    %c0_142 = arith.constant 0 : index
    %c0_143 = arith.constant 0 : index
    %241 = vector.load %arg3[%c12, %c0_142, %c0_143] : memref<24x32x8xf32, #tpu.memory_space<vmem>>, vector<1x32x8xf32>
    %242 = vector.shape_cast %241 : vector<1x32x8xf32> to vector<32x8xf32>
    %c16 = arith.constant 16 : index
    %c0_144 = arith.constant 0 : index
    %c0_145 = arith.constant 0 : index
    %243 = vector.load %arg3[%c16, %c0_144, %c0_145] : memref<24x32x8xf32, #tpu.memory_space<vmem>>, vector<1x32x8xf32>
    %244 = vector.shape_cast %243 : vector<1x32x8xf32> to vector<32x8xf32>
    %c20 = arith.constant 20 : index
    %c0_146 = arith.constant 0 : index
    %c0_147 = arith.constant 0 : index
    %245 = vector.load %arg3[%c20, %c0_146, %c0_147] : memref<24x32x8xf32, #tpu.memory_space<vmem>>, vector<1x32x8xf32>
    %246 = vector.shape_cast %245 : vector<1x32x8xf32> to vector<32x8xf32>
    %c12_148 = arith.constant 12 : index
    %c0_149 = arith.constant 0 : index
    %c0_150 = arith.constant 0 : index
    %247 = vector.load %arg4[%c12_148, %c0_149, %c0_150] : memref<24x1x8xf32, #tpu.memory_space<vmem>>, vector<1x1x8xf32>
    %248 = vector.shape_cast %247 : vector<1x1x8xf32> to vector<1x8xf32>
    %c16_151 = arith.constant 16 : index
    %c0_152 = arith.constant 0 : index
    %c0_153 = arith.constant 0 : index
    %249 = vector.load %arg4[%c16_151, %c0_152, %c0_153] : memref<24x1x8xf32, #tpu.memory_space<vmem>>, vector<1x1x8xf32>
    %250 = vector.shape_cast %249 : vector<1x1x8xf32> to vector<1x8xf32>
    %c20_154 = arith.constant 20 : index
    %c0_155 = arith.constant 0 : index
    %c0_156 = arith.constant 0 : index
    %251 = vector.load %arg4[%c20_154, %c0_155, %c0_156] : memref<24x1x8xf32, #tpu.memory_space<vmem>>, vector<1x1x8xf32>
    %252 = vector.shape_cast %251 : vector<1x1x8xf32> to vector<1x8xf32>
    %cst_157 = arith.constant dense<0.000000e+00> : vector<16x8xf32>
    %253 = tpu.matmul %230, %242, %cst_157 {dimension_numbers = #tpu.dot_dimension_numbers<[1], [0], [0], [1], [0, 0, 1, 1], [], []>} : vector<16x32xf32>, vector<32x8xf32>, vector<16x8xf32> -> vector<16x8xf32>
    %254 = vector.broadcast %248 : vector<1x8xf32> to vector<16x8xf32>
    %255 = arith.addf %253, %254 : vector<16x8xf32>
    %cst_158 = arith.constant dense<0.000000e+00> : vector<16x8xf32>
    %256 = tpu.matmul %230, %244, %cst_158 {dimension_numbers = #tpu.dot_dimension_numbers<[1], [0], [0], [1], [0, 0, 1, 1], [], []>} : vector<16x32xf32>, vector<32x8xf32>, vector<16x8xf32> -> vector<16x8xf32>
    %257 = vector.broadcast %250 : vector<1x8xf32> to vector<16x8xf32>
    %258 = arith.addf %256, %257 : vector<16x8xf32>
    %cst_159 = arith.constant dense<0.000000e+00> : vector<16x8xf32>
    %259 = tpu.matmul %230, %246, %cst_159 {dimension_numbers = #tpu.dot_dimension_numbers<[1], [0], [0], [1], [0, 0, 1, 1], [], []>} : vector<16x32xf32>, vector<32x8xf32>, vector<16x8xf32> -> vector<16x8xf32>
    %260 = vector.broadcast %252 : vector<1x8xf32> to vector<16x8xf32>
    %261 = arith.addf %259, %260 : vector<16x8xf32>
    %cst_160 = arith.constant 0.353553385 : f32
    %262 = vector.broadcast %cst_160 : f32 to vector<16x8xf32>
    %263 = arith.mulf %255, %262 : vector<16x8xf32>
    %cst_161 = arith.constant dense<0.000000e+00> : vector<16x16xf32>
    %264 = tpu.matmul %263, %258, %cst_161 {dimension_numbers = #tpu.dot_dimension_numbers<[1], [1], [0], [0], [0, 0, 1, 0], [], []>} : vector<16x8xf32>, vector<16x8xf32>, vector<16x16xf32> -> vector<16x16xf32>
    %265 = arith.addf %264, %1 : vector<16x16xf32>
    %cst_162 = arith.constant dense<0xFF800000> : vector<16xf32>
    %266 = vector.multi_reduction <maximumf>, %265, %cst_162 [1] : vector<16x16xf32> to vector<16xf32>
    %267 = vector.shape_cast %266 : vector<16xf32> to vector<16x1xf32>
    %268 = vector.broadcast %267 : vector<16x1xf32> to vector<16x16xf32>
    %269 = arith.subf %265, %268 : vector<16x16xf32>
    %270 = math.exp %269 : vector<16x16xf32>
    %cst_163 = arith.constant dense<0.000000e+00> : vector<16xf32>
    %271 = vector.multi_reduction <add>, %270, %cst_163 [1] : vector<16x16xf32> to vector<16xf32>
    %272 = vector.shape_cast %271 : vector<16xf32> to vector<16x1xf32>
    %273 = tpu.reciprocal %272 {approx = true} : vector<16x1xf32> -> vector<16x1xf32>
    %274 = vector.broadcast %273 : vector<16x1xf32> to vector<16x16xf32>
    %275 = arith.mulf %270, %274 : vector<16x16xf32>
    %cst_164 = arith.constant dense<0.000000e+00> : vector<16x8xf32>
    %276 = tpu.matmul %275, %261, %cst_164 {dimension_numbers = #tpu.dot_dimension_numbers<[1], [0], [0], [1], [0, 0, 1, 1], [], []>} : vector<16x16xf32>, vector<16x8xf32>, vector<16x8xf32> -> vector<16x8xf32>
    %c4_165 = arith.constant 4 : index
    %c0_166 = arith.constant 0 : index
    %c0_167 = arith.constant 0 : index
    %277 = vector.load %arg5[%c4_165, %c0_166, %c0_167] : memref<8x8x32xf32, #tpu.memory_space<vmem>>, vector<1x8x32xf32>
    %278 = vector.shape_cast %277 : vector<1x8x32xf32> to vector<8x32xf32>
    %cst_168 = arith.constant dense<0.000000e+00> : vector<16x32xf32>
    %279 = tpu.matmul %276, %278, %cst_168 {dimension_numbers = #tpu.dot_dimension_numbers<[1], [0], [0], [1], [0, 0, 1, 1], [], []>} : vector<16x8xf32>, vector<8x32xf32>, vector<16x32xf32> -> vector<16x32xf32>
    %c13 = arith.constant 13 : index
    %c0_169 = arith.constant 0 : index
    %c0_170 = arith.constant 0 : index
    %280 = vector.load %arg3[%c13, %c0_169, %c0_170] : memref<24x32x8xf32, #tpu.memory_space<vmem>>, vector<1x32x8xf32>
    %281 = vector.shape_cast %280 : vector<1x32x8xf32> to vector<32x8xf32>
    %c17 = arith.constant 17 : index
    %c0_171 = arith.constant 0 : index
    %c0_172 = arith.constant 0 : index
    %282 = vector.load %arg3[%c17, %c0_171, %c0_172] : memref<24x32x8xf32, #tpu.memory_space<vmem>>, vector<1x32x8xf32>
    %283 = vector.shape_cast %282 : vector<1x32x8xf32> to vector<32x8xf32>
    %c21 = arith.constant 21 : index
    %c0_173 = arith.constant 0 : index
    %c0_174 = arith.constant 0 : index
    %284 = vector.load %arg3[%c21, %c0_173, %c0_174] : memref<24x32x8xf32, #tpu.memory_space<vmem>>, vector<1x32x8xf32>
    %285 = vector.shape_cast %284 : vector<1x32x8xf32> to vector<32x8xf32>
    %c13_175 = arith.constant 13 : index
    %c0_176 = arith.constant 0 : index
    %c0_177 = arith.constant 0 : index
    %286 = vector.load %arg4[%c13_175, %c0_176, %c0_177] : memref<24x1x8xf32, #tpu.memory_space<vmem>>, vector<1x1x8xf32>
    %287 = vector.shape_cast %286 : vector<1x1x8xf32> to vector<1x8xf32>
    %c17_178 = arith.constant 17 : index
    %c0_179 = arith.constant 0 : index
    %c0_180 = arith.constant 0 : index
    %288 = vector.load %arg4[%c17_178, %c0_179, %c0_180] : memref<24x1x8xf32, #tpu.memory_space<vmem>>, vector<1x1x8xf32>
    %289 = vector.shape_cast %288 : vector<1x1x8xf32> to vector<1x8xf32>
    %c21_181 = arith.constant 21 : index
    %c0_182 = arith.constant 0 : index
    %c0_183 = arith.constant 0 : index
    %290 = vector.load %arg4[%c21_181, %c0_182, %c0_183] : memref<24x1x8xf32, #tpu.memory_space<vmem>>, vector<1x1x8xf32>
    %291 = vector.shape_cast %290 : vector<1x1x8xf32> to vector<1x8xf32>
    %cst_184 = arith.constant dense<0.000000e+00> : vector<16x8xf32>
    %292 = tpu.matmul %230, %281, %cst_184 {dimension_numbers = #tpu.dot_dimension_numbers<[1], [0], [0], [1], [0, 0, 1, 1], [], []>} : vector<16x32xf32>, vector<32x8xf32>, vector<16x8xf32> -> vector<16x8xf32>
    %293 = vector.broadcast %287 : vector<1x8xf32> to vector<16x8xf32>
    %294 = arith.addf %292, %293 : vector<16x8xf32>
    %cst_185 = arith.constant dense<0.000000e+00> : vector<16x8xf32>
    %295 = tpu.matmul %230, %283, %cst_185 {dimension_numbers = #tpu.dot_dimension_numbers<[1], [0], [0], [1], [0, 0, 1, 1], [], []>} : vector<16x32xf32>, vector<32x8xf32>, vector<16x8xf32> -> vector<16x8xf32>
    %296 = vector.broadcast %289 : vector<1x8xf32> to vector<16x8xf32>
    %297 = arith.addf %295, %296 : vector<16x8xf32>
    %cst_186 = arith.constant dense<0.000000e+00> : vector<16x8xf32>
    %298 = tpu.matmul %230, %285, %cst_186 {dimension_numbers = #tpu.dot_dimension_numbers<[1], [0], [0], [1], [0, 0, 1, 1], [], []>} : vector<16x32xf32>, vector<32x8xf32>, vector<16x8xf32> -> vector<16x8xf32>
    %299 = vector.broadcast %291 : vector<1x8xf32> to vector<16x8xf32>
    %300 = arith.addf %298, %299 : vector<16x8xf32>
    %cst_187 = arith.constant 0.353553385 : f32
    %301 = vector.broadcast %cst_187 : f32 to vector<16x8xf32>
    %302 = arith.mulf %294, %301 : vector<16x8xf32>
    %cst_188 = arith.constant dense<0.000000e+00> : vector<16x16xf32>
    %303 = tpu.matmul %302, %297, %cst_188 {dimension_numbers = #tpu.dot_dimension_numbers<[1], [1], [0], [0], [0, 0, 1, 0], [], []>} : vector<16x8xf32>, vector<16x8xf32>, vector<16x16xf32> -> vector<16x16xf32>
    %304 = arith.addf %303, %1 : vector<16x16xf32>
    %cst_189 = arith.constant dense<0xFF800000> : vector<16xf32>
    %305 = vector.multi_reduction <maximumf>, %304, %cst_189 [1] : vector<16x16xf32> to vector<16xf32>
    %306 = vector.shape_cast %305 : vector<16xf32> to vector<16x1xf32>
    %307 = vector.broadcast %306 : vector<16x1xf32> to vector<16x16xf32>
    %308 = arith.subf %304, %307 : vector<16x16xf32>
    %309 = math.exp %308 : vector<16x16xf32>
    %cst_190 = arith.constant dense<0.000000e+00> : vector<16xf32>
    %310 = vector.multi_reduction <add>, %309, %cst_190 [1] : vector<16x16xf32> to vector<16xf32>
    %311 = vector.shape_cast %310 : vector<16xf32> to vector<16x1xf32>
    %312 = tpu.reciprocal %311 {approx = true} : vector<16x1xf32> -> vector<16x1xf32>
    %313 = vector.broadcast %312 : vector<16x1xf32> to vector<16x16xf32>
    %314 = arith.mulf %309, %313 : vector<16x16xf32>
    %cst_191 = arith.constant dense<0.000000e+00> : vector<16x8xf32>
    %315 = tpu.matmul %314, %300, %cst_191 {dimension_numbers = #tpu.dot_dimension_numbers<[1], [0], [0], [1], [0, 0, 1, 1], [], []>} : vector<16x16xf32>, vector<16x8xf32>, vector<16x8xf32> -> vector<16x8xf32>
    %c5_192 = arith.constant 5 : index
    %c0_193 = arith.constant 0 : index
    %c0_194 = arith.constant 0 : index
    %316 = vector.load %arg5[%c5_192, %c0_193, %c0_194] : memref<8x8x32xf32, #tpu.memory_space<vmem>>, vector<1x8x32xf32>
    %317 = vector.shape_cast %316 : vector<1x8x32xf32> to vector<8x32xf32>
    %cst_195 = arith.constant dense<0.000000e+00> : vector<16x32xf32>
    %318 = tpu.matmul %315, %317, %cst_195 {dimension_numbers = #tpu.dot_dimension_numbers<[1], [0], [0], [1], [0, 0, 1, 1], [], []>} : vector<16x8xf32>, vector<8x32xf32>, vector<16x32xf32> -> vector<16x32xf32>
    %319 = arith.addf %279, %318 : vector<16x32xf32>
    %c14 = arith.constant 14 : index
    %c0_196 = arith.constant 0 : index
    %c0_197 = arith.constant 0 : index
    %320 = vector.load %arg3[%c14, %c0_196, %c0_197] : memref<24x32x8xf32, #tpu.memory_space<vmem>>, vector<1x32x8xf32>
    %321 = vector.shape_cast %320 : vector<1x32x8xf32> to vector<32x8xf32>
    %c18 = arith.constant 18 : index
    %c0_198 = arith.constant 0 : index
    %c0_199 = arith.constant 0 : index
    %322 = vector.load %arg3[%c18, %c0_198, %c0_199] : memref<24x32x8xf32, #tpu.memory_space<vmem>>, vector<1x32x8xf32>
    %323 = vector.shape_cast %322 : vector<1x32x8xf32> to vector<32x8xf32>
    %c22 = arith.constant 22 : index
    %c0_200 = arith.constant 0 : index
    %c0_201 = arith.constant 0 : index
    %324 = vector.load %arg3[%c22, %c0_200, %c0_201] : memref<24x32x8xf32, #tpu.memory_space<vmem>>, vector<1x32x8xf32>
    %325 = vector.shape_cast %324 : vector<1x32x8xf32> to vector<32x8xf32>
    %c14_202 = arith.constant 14 : index
    %c0_203 = arith.constant 0 : index
    %c0_204 = arith.constant 0 : index
    %326 = vector.load %arg4[%c14_202, %c0_203, %c0_204] : memref<24x1x8xf32, #tpu.memory_space<vmem>>, vector<1x1x8xf32>
    %327 = vector.shape_cast %326 : vector<1x1x8xf32> to vector<1x8xf32>
    %c18_205 = arith.constant 18 : index
    %c0_206 = arith.constant 0 : index
    %c0_207 = arith.constant 0 : index
    %328 = vector.load %arg4[%c18_205, %c0_206, %c0_207] : memref<24x1x8xf32, #tpu.memory_space<vmem>>, vector<1x1x8xf32>
    %329 = vector.shape_cast %328 : vector<1x1x8xf32> to vector<1x8xf32>
    %c22_208 = arith.constant 22 : index
    %c0_209 = arith.constant 0 : index
    %c0_210 = arith.constant 0 : index
    %330 = vector.load %arg4[%c22_208, %c0_209, %c0_210] : memref<24x1x8xf32, #tpu.memory_space<vmem>>, vector<1x1x8xf32>
    %331 = vector.shape_cast %330 : vector<1x1x8xf32> to vector<1x8xf32>
    %cst_211 = arith.constant dense<0.000000e+00> : vector<16x8xf32>
    %332 = tpu.matmul %230, %321, %cst_211 {dimension_numbers = #tpu.dot_dimension_numbers<[1], [0], [0], [1], [0, 0, 1, 1], [], []>} : vector<16x32xf32>, vector<32x8xf32>, vector<16x8xf32> -> vector<16x8xf32>
    %333 = vector.broadcast %327 : vector<1x8xf32> to vector<16x8xf32>
    %334 = arith.addf %332, %333 : vector<16x8xf32>
    %cst_212 = arith.constant dense<0.000000e+00> : vector<16x8xf32>
    %335 = tpu.matmul %230, %323, %cst_212 {dimension_numbers = #tpu.dot_dimension_numbers<[1], [0], [0], [1], [0, 0, 1, 1], [], []>} : vector<16x32xf32>, vector<32x8xf32>, vector<16x8xf32> -> vector<16x8xf32>
    %336 = vector.broadcast %329 : vector<1x8xf32> to vector<16x8xf32>
    %337 = arith.addf %335, %336 : vector<16x8xf32>
    %cst_213 = arith.constant dense<0.000000e+00> : vector<16x8xf32>
    %338 = tpu.matmul %230, %325, %cst_213 {dimension_numbers = #tpu.dot_dimension_numbers<[1], [0], [0], [1], [0, 0, 1, 1], [], []>} : vector<16x32xf32>, vector<32x8xf32>, vector<16x8xf32> -> vector<16x8xf32>
    %339 = vector.broadcast %331 : vector<1x8xf32> to vector<16x8xf32>
    %340 = arith.addf %338, %339 : vector<16x8xf32>
    %cst_214 = arith.constant 0.353553385 : f32
    %341 = vector.broadcast %cst_214 : f32 to vector<16x8xf32>
    %342 = arith.mulf %334, %341 : vector<16x8xf32>
    %cst_215 = arith.constant dense<0.000000e+00> : vector<16x16xf32>
    %343 = tpu.matmul %342, %337, %cst_215 {dimension_numbers = #tpu.dot_dimension_numbers<[1], [1], [0], [0], [0, 0, 1, 0], [], []>} : vector<16x8xf32>, vector<16x8xf32>, vector<16x16xf32> -> vector<16x16xf32>
    %344 = arith.addf %343, %1 : vector<16x16xf32>
    %cst_216 = arith.constant dense<0xFF800000> : vector<16xf32>
    %345 = vector.multi_reduction <maximumf>, %344, %cst_216 [1] : vector<16x16xf32> to vector<16xf32>
    %346 = vector.shape_cast %345 : vector<16xf32> to vector<16x1xf32>
    %347 = vector.broadcast %346 : vector<16x1xf32> to vector<16x16xf32>
    %348 = arith.subf %344, %347 : vector<16x16xf32>
    %349 = math.exp %348 : vector<16x16xf32>
    %cst_217 = arith.constant dense<0.000000e+00> : vector<16xf32>
    %350 = vector.multi_reduction <add>, %349, %cst_217 [1] : vector<16x16xf32> to vector<16xf32>
    %351 = vector.shape_cast %350 : vector<16xf32> to vector<16x1xf32>
    %352 = tpu.reciprocal %351 {approx = true} : vector<16x1xf32> -> vector<16x1xf32>
    %353 = vector.broadcast %352 : vector<16x1xf32> to vector<16x16xf32>
    %354 = arith.mulf %349, %353 : vector<16x16xf32>
    %cst_218 = arith.constant dense<0.000000e+00> : vector<16x8xf32>
    %355 = tpu.matmul %354, %340, %cst_218 {dimension_numbers = #tpu.dot_dimension_numbers<[1], [0], [0], [1], [0, 0, 1, 1], [], []>} : vector<16x16xf32>, vector<16x8xf32>, vector<16x8xf32> -> vector<16x8xf32>
    %c6_219 = arith.constant 6 : index
    %c0_220 = arith.constant 0 : index
    %c0_221 = arith.constant 0 : index
    %356 = vector.load %arg5[%c6_219, %c0_220, %c0_221] : memref<8x8x32xf32, #tpu.memory_space<vmem>>, vector<1x8x32xf32>
    %357 = vector.shape_cast %356 : vector<1x8x32xf32> to vector<8x32xf32>
    %cst_222 = arith.constant dense<0.000000e+00> : vector<16x32xf32>
    %358 = tpu.matmul %355, %357, %cst_222 {dimension_numbers = #tpu.dot_dimension_numbers<[1], [0], [0], [1], [0, 0, 1, 1], [], []>} : vector<16x8xf32>, vector<8x32xf32>, vector<16x32xf32> -> vector<16x32xf32>
    %359 = arith.addf %319, %358 : vector<16x32xf32>
    %c15 = arith.constant 15 : index
    %c0_223 = arith.constant 0 : index
    %c0_224 = arith.constant 0 : index
    %360 = vector.load %arg3[%c15, %c0_223, %c0_224] : memref<24x32x8xf32, #tpu.memory_space<vmem>>, vector<1x32x8xf32>
    %361 = vector.shape_cast %360 : vector<1x32x8xf32> to vector<32x8xf32>
    %c19 = arith.constant 19 : index
    %c0_225 = arith.constant 0 : index
    %c0_226 = arith.constant 0 : index
    %362 = vector.load %arg3[%c19, %c0_225, %c0_226] : memref<24x32x8xf32, #tpu.memory_space<vmem>>, vector<1x32x8xf32>
    %363 = vector.shape_cast %362 : vector<1x32x8xf32> to vector<32x8xf32>
    %c23 = arith.constant 23 : index
    %c0_227 = arith.constant 0 : index
    %c0_228 = arith.constant 0 : index
    %364 = vector.load %arg3[%c23, %c0_227, %c0_228] : memref<24x32x8xf32, #tpu.memory_space<vmem>>, vector<1x32x8xf32>
    %365 = vector.shape_cast %364 : vector<1x32x8xf32> to vector<32x8xf32>
    %c15_229 = arith.constant 15 : index
    %c0_230 = arith.constant 0 : index
    %c0_231 = arith.constant 0 : index
    %366 = vector.load %arg4[%c15_229, %c0_230, %c0_231] : memref<24x1x8xf32, #tpu.memory_space<vmem>>, vector<1x1x8xf32>
    %367 = vector.shape_cast %366 : vector<1x1x8xf32> to vector<1x8xf32>
    %c19_232 = arith.constant 19 : index
    %c0_233 = arith.constant 0 : index
    %c0_234 = arith.constant 0 : index
    %368 = vector.load %arg4[%c19_232, %c0_233, %c0_234] : memref<24x1x8xf32, #tpu.memory_space<vmem>>, vector<1x1x8xf32>
    %369 = vector.shape_cast %368 : vector<1x1x8xf32> to vector<1x8xf32>
    %c23_235 = arith.constant 23 : index
    %c0_236 = arith.constant 0 : index
    %c0_237 = arith.constant 0 : index
    %370 = vector.load %arg4[%c23_235, %c0_236, %c0_237] : memref<24x1x8xf32, #tpu.memory_space<vmem>>, vector<1x1x8xf32>
    %371 = vector.shape_cast %370 : vector<1x1x8xf32> to vector<1x8xf32>
    %cst_238 = arith.constant dense<0.000000e+00> : vector<16x8xf32>
    %372 = tpu.matmul %230, %361, %cst_238 {dimension_numbers = #tpu.dot_dimension_numbers<[1], [0], [0], [1], [0, 0, 1, 1], [], []>} : vector<16x32xf32>, vector<32x8xf32>, vector<16x8xf32> -> vector<16x8xf32>
    %373 = vector.broadcast %367 : vector<1x8xf32> to vector<16x8xf32>
    %374 = arith.addf %372, %373 : vector<16x8xf32>
    %cst_239 = arith.constant dense<0.000000e+00> : vector<16x8xf32>
    %375 = tpu.matmul %230, %363, %cst_239 {dimension_numbers = #tpu.dot_dimension_numbers<[1], [0], [0], [1], [0, 0, 1, 1], [], []>} : vector<16x32xf32>, vector<32x8xf32>, vector<16x8xf32> -> vector<16x8xf32>
    %376 = vector.broadcast %369 : vector<1x8xf32> to vector<16x8xf32>
    %377 = arith.addf %375, %376 : vector<16x8xf32>
    %cst_240 = arith.constant dense<0.000000e+00> : vector<16x8xf32>
    %378 = tpu.matmul %230, %365, %cst_240 {dimension_numbers = #tpu.dot_dimension_numbers<[1], [0], [0], [1], [0, 0, 1, 1], [], []>} : vector<16x32xf32>, vector<32x8xf32>, vector<16x8xf32> -> vector<16x8xf32>
    %379 = vector.broadcast %371 : vector<1x8xf32> to vector<16x8xf32>
    %380 = arith.addf %378, %379 : vector<16x8xf32>
    %cst_241 = arith.constant 0.353553385 : f32
    %381 = vector.broadcast %cst_241 : f32 to vector<16x8xf32>
    %382 = arith.mulf %374, %381 : vector<16x8xf32>
    %cst_242 = arith.constant dense<0.000000e+00> : vector<16x16xf32>
    %383 = tpu.matmul %382, %377, %cst_242 {dimension_numbers = #tpu.dot_dimension_numbers<[1], [1], [0], [0], [0, 0, 1, 0], [], []>} : vector<16x8xf32>, vector<16x8xf32>, vector<16x16xf32> -> vector<16x16xf32>
    %384 = arith.addf %383, %1 : vector<16x16xf32>
    %cst_243 = arith.constant dense<0xFF800000> : vector<16xf32>
    %385 = vector.multi_reduction <maximumf>, %384, %cst_243 [1] : vector<16x16xf32> to vector<16xf32>
    %386 = vector.shape_cast %385 : vector<16xf32> to vector<16x1xf32>
    %387 = vector.broadcast %386 : vector<16x1xf32> to vector<16x16xf32>
    %388 = arith.subf %384, %387 : vector<16x16xf32>
    %389 = math.exp %388 : vector<16x16xf32>
    %cst_244 = arith.constant dense<0.000000e+00> : vector<16xf32>
    %390 = vector.multi_reduction <add>, %389, %cst_244 [1] : vector<16x16xf32> to vector<16xf32>
    %391 = vector.shape_cast %390 : vector<16xf32> to vector<16x1xf32>
    %392 = tpu.reciprocal %391 {approx = true} : vector<16x1xf32> -> vector<16x1xf32>
    %393 = vector.broadcast %392 : vector<16x1xf32> to vector<16x16xf32>
    %394 = arith.mulf %389, %393 : vector<16x16xf32>
    %cst_245 = arith.constant dense<0.000000e+00> : vector<16x8xf32>
    %395 = tpu.matmul %394, %380, %cst_245 {dimension_numbers = #tpu.dot_dimension_numbers<[1], [0], [0], [1], [0, 0, 1, 1], [], []>} : vector<16x16xf32>, vector<16x8xf32>, vector<16x8xf32> -> vector<16x8xf32>
    %c7_246 = arith.constant 7 : index
    %c0_247 = arith.constant 0 : index
    %c0_248 = arith.constant 0 : index
    %396 = vector.load %arg5[%c7_246, %c0_247, %c0_248] : memref<8x8x32xf32, #tpu.memory_space<vmem>>, vector<1x8x32xf32>
    %397 = vector.shape_cast %396 : vector<1x8x32xf32> to vector<8x32xf32>
    %cst_249 = arith.constant dense<0.000000e+00> : vector<16x32xf32>
    %398 = tpu.matmul %395, %397, %cst_249 {dimension_numbers = #tpu.dot_dimension_numbers<[1], [0], [0], [1], [0, 0, 1, 1], [], []>} : vector<16x8xf32>, vector<8x32xf32>, vector<16x32xf32> -> vector<16x32xf32>
    %399 = arith.addf %359, %398 : vector<16x32xf32>
    %400 = vector.broadcast %233 : vector<1x32xf32> to vector<16x32xf32>
    %401 = arith.addf %399, %400 : vector<16x32xf32>
    %402 = arith.addf %230, %401 : vector<16x32xf32>
    %cst_250 = arith.constant dense<0.000000e+00> : vector<16xf32>
    %403 = vector.multi_reduction <add>, %402, %cst_250 [1] : vector<16x32xf32> to vector<16xf32>
    %404 = vector.shape_cast %403 : vector<16xf32> to vector<16x1xf32>
    %cst_251 = arith.constant 3.200000e+01 : f32
    %405 = vector.broadcast %cst_251 : f32 to vector<16x1xf32>
    %406 = arith.divf %404, %405 : vector<16x1xf32>
    %407 = vector.broadcast %406 : vector<16x1xf32> to vector<16x32xf32>
    %408 = arith.subf %402, %407 : vector<16x32xf32>
    %409 = arith.mulf %408, %408 : vector<16x32xf32>
    %cst_252 = arith.constant dense<0.000000e+00> : vector<16xf32>
    %410 = vector.multi_reduction <add>, %409, %cst_252 [1] : vector<16x32xf32> to vector<16xf32>
    %411 = vector.shape_cast %410 : vector<16xf32> to vector<16x1xf32>
    %cst_253 = arith.constant 3.200000e+01 : f32
    %412 = vector.broadcast %cst_253 : f32 to vector<16x1xf32>
    %413 = arith.divf %411, %412 : vector<16x1xf32>
    %414 = vector.broadcast %406 : vector<16x1xf32> to vector<16x32xf32>
    %415 = arith.subf %402, %414 : vector<16x32xf32>
    %cst_254 = arith.constant 9.99999974E-6 : f32
    %416 = vector.broadcast %cst_254 : f32 to vector<16x1xf32>
    %417 = arith.addf %413, %416 : vector<16x1xf32>
    %418 = math.rsqrt %417 : vector<16x1xf32>
    %419 = vector.broadcast %418 : vector<16x1xf32> to vector<16x32xf32>
    %420 = arith.mulf %415, %419 : vector<16x32xf32>
    %421 = vector.broadcast %234 : vector<1x32xf32> to vector<16x32xf32>
    %422 = arith.mulf %420, %421 : vector<16x32xf32>
    %423 = vector.broadcast %235 : vector<1x32xf32> to vector<16x32xf32>
    %424 = arith.addf %422, %423 : vector<16x32xf32>
    %c1_255 = arith.constant 1 : index
    %c0_256 = arith.constant 0 : index
    %c0_257 = arith.constant 0 : index
    %425 = vector.load %arg6[%c1_255, %c0_256, %c0_257] : memref<2x32x64xf32, #tpu.memory_space<vmem>>, vector<1x32x64xf32>
    %426 = vector.shape_cast %425 : vector<1x32x64xf32> to vector<32x64xf32>
    %cst_258 = arith.constant dense<0.000000e+00> : vector<16x64xf32>
    %427 = tpu.matmul %424, %426, %cst_258 {dimension_numbers = #tpu.dot_dimension_numbers<[1], [0], [0], [1], [0, 0, 1, 1], [], []>} : vector<16x32xf32>, vector<32x64xf32>, vector<16x64xf32> -> vector<16x64xf32>
    %428 = vector.broadcast %240 : vector<1x64xf32> to vector<16x64xf32>
    %429 = arith.addf %427, %428 : vector<16x64xf32>
    %cst_259 = arith.constant 0.000000e+00 : f32
    %430 = vector.broadcast %cst_259 : f32 to vector<16x64xf32>
    %431 = arith.maximumf %429, %430 : vector<16x64xf32>
    %c1_260 = arith.constant 1 : index
    %c0_261 = arith.constant 0 : index
    %c0_262 = arith.constant 0 : index
    %432 = vector.load %arg8[%c1_260, %c0_261, %c0_262] : memref<2x64x32xf32, #tpu.memory_space<vmem>>, vector<1x64x32xf32>
    %433 = vector.shape_cast %432 : vector<1x64x32xf32> to vector<64x32xf32>
    %cst_263 = arith.constant dense<0.000000e+00> : vector<16x32xf32>
    %434 = tpu.matmul %431, %433, %cst_263 {dimension_numbers = #tpu.dot_dimension_numbers<[1], [0], [0], [1], [0, 0, 1, 1], [], []>} : vector<16x64xf32>, vector<64x32xf32>, vector<16x32xf32> -> vector<16x32xf32>
    %435 = vector.broadcast %236 : vector<1x32xf32> to vector<16x32xf32>
    %436 = arith.addf %434, %435 : vector<16x32xf32>
    %437 = arith.addf %424, %436 : vector<16x32xf32>
    %cst_264 = arith.constant dense<0.000000e+00> : vector<16xf32>
    %438 = vector.multi_reduction <add>, %437, %cst_264 [1] : vector<16x32xf32> to vector<16xf32>
    %439 = vector.shape_cast %438 : vector<16xf32> to vector<16x1xf32>
    %cst_265 = arith.constant 3.200000e+01 : f32
    %440 = vector.broadcast %cst_265 : f32 to vector<16x1xf32>
    %441 = arith.divf %439, %440 : vector<16x1xf32>
    %442 = vector.broadcast %441 : vector<16x1xf32> to vector<16x32xf32>
    %443 = arith.subf %437, %442 : vector<16x32xf32>
    %444 = arith.mulf %443, %443 : vector<16x32xf32>
    %cst_266 = arith.constant dense<0.000000e+00> : vector<16xf32>
    %445 = vector.multi_reduction <add>, %444, %cst_266 [1] : vector<16x32xf32> to vector<16xf32>
    %446 = vector.shape_cast %445 : vector<16xf32> to vector<16x1xf32>
    %cst_267 = arith.constant 3.200000e+01 : f32
    %447 = vector.broadcast %cst_267 : f32 to vector<16x1xf32>
    %448 = arith.divf %446, %447 : vector<16x1xf32>
    %449 = vector.broadcast %441 : vector<16x1xf32> to vector<16x32xf32>
    %450 = arith.subf %437, %449 : vector<16x32xf32>
    %cst_268 = arith.constant 9.99999974E-6 : f32
    %451 = vector.broadcast %cst_268 : f32 to vector<16x1xf32>
    %452 = arith.addf %448, %451 : vector<16x1xf32>
    %453 = math.rsqrt %452 : vector<16x1xf32>
    %454 = vector.broadcast %453 : vector<16x1xf32> to vector<16x32xf32>
    %455 = arith.mulf %450, %454 : vector<16x32xf32>
    %456 = vector.broadcast %237 : vector<1x32xf32> to vector<16x32xf32>
    %457 = arith.mulf %455, %456 : vector<16x32xf32>
    %458 = vector.broadcast %238 : vector<1x32xf32> to vector<16x32xf32>
    %459 = arith.addf %457, %458 : vector<16x32xf32>
    %c0_269 = arith.constant 0 : index
    %c0_270 = arith.constant 0 : index
    %460 = vector.load %arg10[%c0_269, %c0_270] : memref<32x128xf32, #tpu.memory_space<vmem>>, vector<32x128xf32>
    %cst_271 = arith.constant dense<0.000000e+00> : vector<16x128xf32>
    %461 = tpu.matmul %459, %460, %cst_271 {dimension_numbers = #tpu.dot_dimension_numbers<[1], [0], [0], [1], [0, 0, 1, 1], [], []>} : vector<16x32xf32>, vector<32x128xf32>, vector<16x128xf32> -> vector<16x128xf32>
    %c0_272 = arith.constant 0 : index
    %c0_273 = arith.constant 0 : index
    %462 = vector.load %arg1[%c0_272, %c0_273] : memref<16x32xf32, #tpu.memory_space<vmem>>, vector<16x32xf32>
    %c0_274 = arith.constant 0 : index
    %c0_275 = arith.constant 0 : index
    %463 = vector.load %arg11[%c0_274, %c0_275] : memref<32x128xf32, #tpu.memory_space<vmem>>, vector<32x128xf32>
    %cst_276 = arith.constant dense<0.000000e+00> : vector<16x128xf32>
    %464 = tpu.matmul %462, %463, %cst_276 {dimension_numbers = #tpu.dot_dimension_numbers<[1], [0], [0], [1], [0, 0, 1, 1], [], []>} : vector<16x32xf32>, vector<32x128xf32>, vector<16x128xf32> -> vector<16x128xf32>
    %465 = arith.addf %461, %464 : vector<16x128xf32>
    %c0_277 = arith.constant 0 : index
    %c0_278 = arith.constant 0 : index
    %466 = vector.load %arg12[%c0_277, %c0_278] : memref<1x128xf32, #tpu.memory_space<vmem>>, vector<1x128xf32>
    %467 = vector.broadcast %466 : vector<1x128xf32> to vector<16x128xf32>
    %468 = arith.addf %465, %467 : vector<16x128xf32>
    %c0_279 = arith.constant 0 : index
    %c0_280 = arith.constant 0 : index
    %469 = vector.load %arg13[%c0_279, %c0_280] : memref<16x128xf32, #tpu.memory_space<vmem>>, vector<16x128xf32>
    tpu.vector_store %arg13[%c0_279, %c0_280], %468 {strides = array<i32>} : memref<16x128xf32, #tpu.memory_space<vmem>>, vector<16x128xf32>,
    return
  }
}

</mosaic_0001>

<llo_original>
// kernel: transformer_model_forward.1
$region0: #{transformer_model_forward.1}
  #allocation0 [shape = 'u32[]', space=smem, size = 0x4, offset = 0x4, fixed_abs, tag = 'smem constant byte address 0x4 - core index']
  #allocation1 [shape = 'u32[144,128]{1,0:T(1,128)}', space=vmem, size = 0x12000, scoped, tag = 'internal scratch']
  %s0 = inlined_call_operand.vmem [shape: f32[16,32], index: 0, kind: input, shape index: {}]
  %s1 = inlined_call_operand.vmem [shape: f32[16,32], index: 1, kind: input, shape index: {}]
  %s2 = inlined_call_operand.vmem [shape: f32[16,16], index: 2, kind: input, shape index: {}]
  %s3 = inlined_call_operand.vmem [shape: f32[24,32,8], index: 3, kind: input, shape index: {}]
  %s4 = inlined_call_operand.vmem [shape: f32[24,1,8], index: 4, kind: input, shape index: {}]
  %s5 = inlined_call_operand.vmem [shape: f32[8,8,32], index: 5, kind: input, shape index: {}]
  %s6 = inlined_call_operand.vmem [shape: f32[2,32,64], index: 6, kind: input, shape index: {}]
  %s7 = inlined_call_operand.vmem [shape: f32[2,1,64], index: 7, kind: input, shape index: {}]
  %s8 = inlined_call_operand.vmem [shape: f32[2,64,32], index: 8, kind: input, shape index: {}]
  %s9 = inlined_call_operand.vmem [shape: f32[2,6,32], index: 9, kind: input, shape index: {}]
  %s10 = inlined_call_operand.vmem [shape: f32[32,128], index: 10, kind: input, shape index: {}]
  %s11 = inlined_call_operand.vmem [shape: f32[32,128], index: 11, kind: input, shape index: {}]
  %s12 = inlined_call_operand.vmem [shape: f32[1,128], index: 12, kind: input, shape index: {}]
  %s13 = inlined_call_operand.hbm [shape: f32[16,128], index: 13, kind: output, shape index: {}]
  %s14 = sld [smem:[#allocation0]]
  $region62: #{transformer_model_forward.1} parent=0
    _
  %s16 = ssub.s32 1, %s14
  %s17 = scalar_select 0, %s16, %s14
  $region1: #{transformer_model_forward.1} parent=0
    #allocation2 [shape = 'u8[8192]{0}', space=vmem, size = 0x2000, scoped, tag = 'output window, operand 0, single buffered']
    #allocation3 [shape = 's32[1]{0}', space=sflag, size = 0x4, scoped, tag = 'scoped memory for transformer_model_forward.1']
    %18 = vsyncpa [#allocation3], 0
    // Predicated region
    $region2: #{transformer_model_forward.1} parent=1 // pred_check
      _
    $region3: #{transformer_model_forward.1} parent=1 // pred_check_branch
      %20 = sbr.rel (0) target = $region5
    $region4: #{transformer_model_forward.1} parent=1 // pred_region
      _
    $region5: #{transformer_model_forward.1} parent=1 // pred_fallthru
      _
    // Predicated region
    $region6: #{transformer_model_forward.1} parent=1 // pred_check
      _
    $region7: #{transformer_model_forward.1} parent=1 // pred_check_branch
      %22 = sbr.rel (0) target = $region9
    $region8: #{transformer_model_forward.1} parent=1 // pred_region
      _
    $region9: #{transformer_model_forward.1} parent=1 // pred_fallthru
      _
    // Predicated region
    $region10: #{transformer_model_forward.1} parent=1 // pred_check
      _
    $region11: #{transformer_model_forward.1} parent=1 // pred_check_branch
      %24 = sbr.rel (0) target = $region13
    $region12: #{transformer_model_forward.1} parent=1 // pred_region
      _
    $region13: #{transformer_model_forward.1} parent=1 // pred_fallthru
      _
    // Predicated region
    $region14: #{transformer_model_forward.1} parent=1 // pred_check
      _
    $region15: #{transformer_model_forward.1} parent=1 // pred_check_branch
      %26 = sbr.rel (0) target = $region17
    $region16: #{transformer_model_forward.1} parent=1 // pred_region
      _
    $region17: #{transformer_model_forward.1} parent=1 // pred_fallthru
      _
    // Predicated region
    $region18: #{transformer_model_forward.1} parent=1 // pred_check
      _
    $region19: #{transformer_model_forward.1} parent=1 // pred_check_branch
      %28 = sbr.rel (0) target = $region21
    $region20: #{transformer_model_forward.1} parent=1 // pred_region
      _
    $region21: #{transformer_model_forward.1} parent=1 // pred_fallthru
      _
    // Predicated region
    $region22: #{transformer_model_forward.1} parent=1 // pred_check
      _
    $region23: #{transformer_model_forward.1} parent=1 // pred_check_branch
      %30 = sbr.rel (0) target = $region25
    $region24: #{transformer_model_forward.1} parent=1 // pred_region
      _
    $region25: #{transformer_model_forward.1} parent=1 // pred_fallthru
      _
    // Predicated region
    $region26: #{transformer_model_forward.1} parent=1 // pred_check
      _
    $region27: #{transformer_model_forward.1} parent=1 // pred_check_branch
      %32 = sbr.rel (0) target = $region29
    $region28: #{transformer_model_forward.1} parent=1 // pred_region
      _
    $region29: #{transformer_model_forward.1} parent=1 // pred_fallthru
      _
    // Predicated region
    $region30: #{transformer_model_forward.1} parent=1 // pred_check
      _
    $region31: #{transformer_model_forward.1} parent=1 // pred_check_branch
      %34 = sbr.rel (0) target = $region33
    $region32: #{transformer_model_forward.1} parent=1 // pred_region
      _
    $region33: #{transformer_model_forward.1} parent=1 // pred_fallthru
      _
    // Predicated region
    $region34: #{transformer_model_forward.1} parent=1 // pred_check
      _
    $region35: #{transformer_model_forward.1} parent=1 // pred_check_branch
      %36 = sbr.rel (0) target = $region37
    $region36: #{transformer_model_forward.1} parent=1 // pred_region
      _
    $region37: #{transformer_model_forward.1} parent=1 // pred_fallthru
      _
    // Predicated region
    $region38: #{transformer_model_forward.1} parent=1 // pred_check
      _
    $region39: #{transformer_model_forward.1} parent=1 // pred_check_branch
      %38 = sbr.rel (0) target = $region41
    $region40: #{transformer_model_forward.1} parent=1 // pred_region
      _
    $region41: #{transformer_model_forward.1} parent=1 // pred_fallthru
      _
    // Predicated region
    $region42: #{transformer_model_forward.1} parent=1 // pred_check
      _
    $region43: #{transformer_model_forward.1} parent=1 // pred_check_branch
      %40 = sbr.rel (0) target = $region45
    $region44: #{transformer_model_forward.1} parent=1 // pred_region
      _
    $region45: #{transformer_model_forward.1} parent=1 // pred_fallthru
      _
    // Predicated region
    $region46: #{transformer_model_forward.1} parent=1 // pred_check
      _
    $region47: #{transformer_model_forward.1} parent=1 // pred_check_branch
      %42 = sbr.rel (0) target = $region49
    $region48: #{transformer_model_forward.1} parent=1 // pred_region
      _
    $region49: #{transformer_model_forward.1} parent=1 // pred_fallthru
      _
    // Predicated region
    $region50: #{transformer_model_forward.1} parent=1 // pred_check
      _
    $region51: #{transformer_model_forward.1} parent=1 // pred_check_branch
      %44 = sbr.rel (0) target = $region53
    $region52: #{transformer_model_forward.1} parent=1 // pred_region
      _
    $region53: #{transformer_model_forward.1} parent=1 // pred_fallthru
      _
    %v45 = vld [vmem:[%s0] sm:$0xff]
    %v46 = vld [vmem:[%s0 + $0x8] sm:$0xff]
    %v47 = vld [vmem:[%s2] sm:$0xff]
    %v48 = vld [vmem:[%s2 + $0x8] sm:$0xff]
    %v49 = vld [vmem:[%s9] sm:$0x3f]
    %v50 = vld [vmem:[%s7] sm:$0x1]
    %v51 = vld [vmem:[%s3] sm:$0xff]
    %v52 = vld [vmem:[%s3 + $0x8] sm:$0xff]
    %v53 = vld [vmem:[%s3 + $0x10] sm:$0xff]
    %v54 = vld [vmem:[%s3 + $0x18] sm:$0xff]
    %s55 = scalar_lea.vmem %s3, 128
    %v56 = vld [vmem:[%s55] sm:$0xff]
    %v57 = vld [vmem:[%s55 + $0x8] sm:$0xff]
    %v58 = vld [vmem:[%s55 + $0x10] sm:$0xff]
    %v59 = vld [vmem:[%s55 + $0x18] sm:$0xff]
    %s60 = scalar_lea.vmem %s3, 256
    %v61 = vld [vmem:[%s60] sm:$0xff]
    %v62 = vld [vmem:[%s60 + $0x8] sm:$0xff]
    %v63 = vld [vmem:[%s60 + $0x10] sm:$0xff]
    %v64 = vld [vmem:[%s60 + $0x18] sm:$0xff]
    %v65 = vld [vmem:[%s4] sm:$0x1]
    %s66 = scalar_lea.vmem %s4, 4
    %v67 = vld [vmem:[%s66] sm:$0x1]
    %s68 = scalar_lea.vmem %s4, 8
    %v69 = vld [vmem:[%s68] sm:$0x1]
    %v71 = vlaneseq
    %v72 = vshrl.u32 %v71, 7
    %v73 = vsub.s32 0, %v72
    %v74 = vrot.slane %v65, %v73
    %vm76 = vcmask 261120
    %v78 = vsel %vm76, %v45, 0
    %v81 = vsel %vm76, %v46, 0
    %83 = vmatprep.subr.mxu0 0.0
    %84 = vmatpush1.msra.mxu0 %v51
    %85 = vmatprep.subr.mxu0 0.0
    %86 = vmatpush1.msra.mxu0 %v52
    %87 = vmatprep.subr.mxu0 0.0
    %88 = vmatpush1.msra.mxu0 %v53
    %89 = vmatprep.subr.mxu0 0.0
    %90 = vmatpush1.msra.mxu0 %v54
    %91 = vmatprep.subr.mxu0 0.0
    %92 = vmatpush1.msra.mxu0 0.0
    %93 = vmatprep.subr.mxu0 0.0
    %94 = vmatpush1.msra.mxu0 0.0
    %95 = vmatprep.subr.mxu0 0.0
    %96 = vmatpush1.msra.mxu0 0.0
    %97 = vmatprep.subr.mxu0 0.0
    %98 = vmatpush1.msra.mxu0 0.0
    %99 = vmatprep.subr.mxu0 0.0
    %100 = vmatpush1.msra.mxu0 0.0
    %101 = vmatprep.subr.mxu0 0.0
    %102 = vmatpush1.msra.mxu0 0.0
    %103 = vmatprep.subr.mxu0 0.0
    %104 = vmatpush1.msra.mxu0 0.0
    %105 = vmatprep.subr.mxu0 0.0
    %106 = vmatpush1.msra.mxu0 0.0
    %107 = vmatprep.subr.mxu0 0.0
    %108 = vmatpush1.msra.mxu0 0.0
    %109 = vmatprep.subr.mxu0 0.0
    %110 = vmatpush1.msra.mxu0 0.0
    %111 = vmatprep.subr.mxu0 0.0
    %112 = vmatpush1.msra.mxu0 0.0
    %113 = vmatprep.subr.mxu0 0.0
    %114 = vmatpush1.msra.mxu0 0.0
    %115 = vmatprep.subr.mxu0 0.0
    %116 = vmatpush1.msra.mxu0 0.0
    %117 = vmatprep.subr.mxu0 0.0
    %118 = vmatpush1.msra.mxu0 0.0
    %119 = vmatprep.subr.mxu0 0.0
    %120 = vmatpush1.msra.mxu0 0.0
    %121 = vmatprep.subr.mxu0 0.0
    %122 = vmatpush1.msra.mxu0 0.0
    %123 = vmatprep.subr.mxu0 0.0
    %124 = vmatpush1.msra.mxu0 0.0
    %125 = vmatprep.subr.mxu0 0.0
    %126 = vmatpush1.msra.mxu0 0.0
    %127 = vmatprep.subr.mxu0 0.0
    %128 = vmatpush1.msra.mxu0 0.0
    %129 = vmatprep.subr.mxu0 0.0
    %130 = vmatpush1.msra.mxu0 0.0
    %131 = vmatprep.subr.mxu0 0.0
    %132 = vmatpush1.msra.mxu0 0.0
    %133 = vmatprep.subr.mxu0 0.0
    %134 = vmatpush1.msra.mxu0 0.0
    %135 = vmatprep.subr.mxu0 0.0
    %136 = vmatpush1.msra.mxu0 0.0
    %137 = vmatprep.subr.mxu0 0.0
    %138 = vmatpush1.msra.mxu0 0.0
    %139 = vmatprep.subr.mxu0 0.0
    %140 = vmatpush1.msra.mxu0 0.0
    %141 = vmatprep.subr.mxu0 0.0
    %142 = vmatpush1.msra.mxu0 0.0
    %143 = vmatprep.subr.mxu0 0.0
    %144 = vmatpush1.msra.mxu0 0.0
    %145 = vmatprep.subr.mxu0 0.0
    %146 = vmatpush1.msra.mxu0 0.0
    %147 = vmatprep.mubr.f32.mxu0 0.0
    %148 = vmatmul.mubr.f32.gmra.mrb[0].mxu0 %v78
    %v149 = vpop.f32.mrb[0].mxu0
    %v150 = vadd.f32 %v74, %v149
    %v151 = vpop.f32.mrb[0].mxu0
    %152 = vmatprep.mubr.f32.mxu0 0.0
    %153 = vmatmul.mubr.f32.gmra.mrb[0].mxu0 %v81
    %v154 = vpop.f32.mrb[0].mxu0
    %v155 = vadd.f32 %v74, %v154
    %v156 = vpop.f32.mrb[0].mxu0
    %157 = vdwg.mxu0
    %v159 = vlaneseq
    %v160 = vshrl.u32 %v159, 7
    %v161 = vsub.s32 0, %v160
    %v162 = vrot.slane %v67, %v161
    %164 = vmatprep.subr.mxu0 0.0
    %165 = vmatpush1.msra.mxu0 %v56
    %166 = vmatprep.subr.mxu0 0.0
    %167 = vmatpush1.msra.mxu0 %v57
    %168 = vmatprep.subr.mxu0 0.0
    %169 = vmatpush1.msra.mxu0 %v58
    %170 = vmatprep.subr.mxu0 0.0
    %171 = vmatpush1.msra.mxu0 %v59
    %172 = vmatprep.subr.mxu0 0.0
    %173 = vmatpush1.msra.mxu0 0.0
    %174 = vmatprep.subr.mxu0 0.0
    %175 = vmatpush1.msra.mxu0 0.0
    %176 = vmatprep.subr.mxu0 0.0
    %177 = vmatpush1.msra.mxu0 0.0
    %178 = vmatprep.subr.mxu0 0.0
    %179 = vmatpush1.msra.mxu0 0.0
    %180 = vmatprep.subr.mxu0 0.0
    %181 = vmatpush1.msra.mxu0 0.0
    %182 = vmatprep.subr.mxu0 0.0
    %183 = vmatpush1.msra.mxu0 0.0
    %184 = vmatprep.subr.mxu0 0.0
    %185 = vmatpush1.msra.mxu0 0.0
    %186 = vmatprep.subr.mxu0 0.0
    %187 = vmatpush1.msra.mxu0 0.0
    %188 = vmatprep.subr.mxu0 0.0
    %189 = vmatpush1.msra.mxu0 0.0
    %190 = vmatprep.subr.mxu0 0.0
    %191 = vmatpush1.msra.mxu0 0.0
    %192 = vmatprep.subr.mxu0 0.0
    %193 = vmatpush1.msra.mxu0 0.0
    %194 = vmatprep.subr.mxu0 0.0
    %195 = vmatpush1.msra.mxu0 0.0
    %196 = vmatprep.subr.mxu0 0.0
    %197 = vmatpush1.msra.mxu0 0.0
    %198 = vmatprep.subr.mxu0 0.0
    %199 = vmatpush1.msra.mxu0 0.0
    %200 = vmatprep.subr.mxu0 0.0
    %201 = vmatpush1.msra.mxu0 0.0
    %202 = vmatprep.subr.mxu0 0.0
    %203 = vmatpush1.msra.mxu0 0.0
    %204 = vmatprep.subr.mxu0 0.0
    %205 = vmatpush1.msra.mxu0 0.0
    %206 = vmatprep.subr.mxu0 0.0
    %207 = vmatpush1.msra.mxu0 0.0
    %208 = vmatprep.subr.mxu0 0.0
    %209 = vmatpush1.msra.mxu0 0.0
    %210 = vmatprep.subr.mxu0 0.0
    %211 = vmatpush1.msra.mxu0 0.0
    %212 = vmatprep.subr.mxu0 0.0
    %213 = vmatpush1.msra.mxu0 0.0
    %214 = vmatprep.subr.mxu0 0.0
    %215 = vmatpush1.msra.mxu0 0.0
    %216 = vmatprep.subr.mxu0 0.0
    %217 = vmatpush1.msra.mxu0 0.0
    %218 = vmatprep.subr.mxu0 0.0
    %219 = vmatpush1.msra.mxu0 0.0
    %220 = vmatprep.subr.mxu0 0.0
    %221 = vmatpush1.msra.mxu0 0.0
    %222 = vmatprep.subr.mxu0 0.0
    %223 = vmatpush1.msra.mxu0 0.0
    %224 = vmatprep.subr.mxu0 0.0
    %225 = vmatpush1.msra.mxu0 0.0
    %226 = vmatprep.subr.mxu0 0.0
    %227 = vmatpush1.msra.mxu0 0.0
    %228 = vmatprep.mubr.f32.mxu0 0.0
    %229 = vmatmul.mubr.f32.gmra.mrb[0].mxu0 %v78
    %v230 = vpop.f32.mrb[0].mxu0
    %v231 = vadd.f32 %v162, %v230
    %v232 = vpop.f32.mrb[0].mxu0
    %233 = vmatprep.mubr.f32.mxu0 0.0
    %234 = vmatmul.mubr.f32.gmra.mrb[0].mxu0 %v81
    %v235 = vpop.f32.mrb[0].mxu0
    %v236 = vadd.f32 %v162, %v235
    %v237 = vpop.f32.mrb[0].mxu0
    %238 = vdwg.mxu0
    %v240 = vlaneseq
    %v241 = vshrl.u32 %v240, 7
    %v242 = vsub.s32 0, %v241
    %v243 = vrot.slane %v69, %v242
    %245 = vmatprep.subr.mxu0 0.0
    %246 = vmatpush1.msra.mxu0 %v61
    %247 = vmatprep.subr.mxu0 0.0
    %248 = vmatpush1.msra.mxu0 %v62
    %249 = vmatprep.subr.mxu0 0.0
    %250 = vmatpush1.msra.mxu0 %v63
    %251 = vmatprep.subr.mxu0 0.0
    %252 = vmatpush1.msra.mxu0 %v64
    %253 = vmatprep.subr.mxu0 0.0
    %254 = vmatpush1.msra.mxu0 0.0
    %255 = vmatprep.subr.mxu0 0.0
    %256 = vmatpush1.msra.mxu0 0.0
    %257 = vmatprep.subr.mxu0 0.0
    %258 = vmatpush1.msra.mxu0 0.0
    %259 = vmatprep.subr.mxu0 0.0
    %260 = vmatpush1.msra.mxu0 0.0
    %261 = vmatprep.subr.mxu0 0.0
    %262 = vmatpush1.msra.mxu0 0.0
    %263 = vmatprep.subr.mxu0 0.0
    %264 = vmatpush1.msra.mxu0 0.0
    %265 = vmatprep.subr.mxu0 0.0
    %266 = vmatpush1.msra.mxu0 0.0
    %267 = vmatprep.subr.mxu0 0.0
    %268 = vmatpush1.msra.mxu0 0.0
    %269 = vmatprep.subr.mxu0 0.0
    %270 = vmatpush1.msra.mxu0 0.0
    %271 = vmatprep.subr.mxu0 0.0
    %272 = vmatpush1.msra.mxu0 0.0
    %273 = vmatprep.subr.mxu0 0.0
    %274 = vmatpush1.msra.mxu0 0.0
    %275 = vmatprep.subr.mxu0 0.0
    %276 = vmatpush1.msra.mxu0 0.0
    %277 = vmatprep.subr.mxu0 0.0
    %278 = vmatpush1.msra.mxu0 0.0
    %279 = vmatprep.subr.mxu0 0.0
    %280 = vmatpush1.msra.mxu0 0.0
    %281 = vmatprep.subr.mxu0 0.0
    %282 = vmatpush1.msra.mxu0 0.0
    %283 = vmatprep.subr.mxu0 0.0
    %284 = vmatpush1.msra.mxu0 0.0
    %285 = vmatprep.subr.mxu0 0.0
    %286 = vmatpush1.msra.mxu0 0.0
    %287 = vmatprep.subr.mxu0 0.0
    %288 = vmatpush1.msra.mxu0 0.0
    %289 = vmatprep.subr.mxu0 0.0
    %290 = vmatpush1.msra.mxu0 0.0
    %291 = vmatprep.subr.mxu0 0.0
    %292 = vmatpush1.msra.mxu0 0.0
    %293 = vmatprep.subr.mxu0 0.0
    %294 = vmatpush1.msra.mxu0 0.0
    %295 = vmatprep.subr.mxu0 0.0
    %296 = vmatpush1.msra.mxu0 0.0
    %297 = vmatprep.subr.mxu0 0.0
    %298 = vmatpush1.msra.mxu0 0.0
    %299 = vmatprep.subr.mxu0 0.0
    %300 = vmatpush1.msra.mxu0 0.0
    %301 = vmatprep.subr.mxu0 0.0
    %302 = vmatpush1.msra.mxu0 0.0
    %303 = vmatprep.subr.mxu0 0.0
    %304 = vmatpush1.msra.mxu0 0.0
    %305 = vmatprep.subr.mxu0 0.0
    %306 = vmatpush1.msra.mxu0 0.0
    %307 = vmatprep.subr.mxu0 0.0
    %308 = vmatpush1.msra.mxu0 0.0
    %309 = vmatprep.mubr.f32.mxu0 0.0
    %310 = vmatmul.mubr.f32.gmra.mrb[0].mxu0 %v78
    %v311 = vpop.f32.mrb[0].mxu0
    %v312 = vadd.f32 %v243, %v311
    %v313 = vpop.f32.mrb[0].mxu0
    %314 = vmatprep.mubr.f32.mxu0 0.0
    %315 = vmatmul.mubr.f32.gmra.mrb[0].mxu0 %v81
    %v316 = vpop.f32.mrb[0].mxu0
    %v317 = vadd.f32 %v243, %v316
    %v318 = vpop.f32.mrb[0].mxu0
    %319 = vdwg.mxu0
    %v320 = vmul.f32 %v150, 0.35355338
    %v321 = vmul.f32 %v155, 0.35355338
    %vm322 = vcmask 64512
    %v324 = vsel %vm322, %v320, 0
    %v327 = vsel %vm322, %v321, 0
    %v330 = vsel %vm322, %v231, 0
    %v333 = vsel %vm322, %v236, 0
    %335 = vmatprep.subr.mxu0 0.0
    %336 = vmatpush1.xpose.msra.mxu0 %v330
    %337 = vmatprep.subr.mxu0 0.0
    %338 = vmatpush1.xpose.msra.mxu0 %v333
    %339 = vmatprep.subr.mxu0 0.0
    %340 = vmatpush1.xpose.msra.mxu0 0.0
    %341 = vmatprep.subr.mxu0 0.0
    %342 = vmatpush1.xpose.msra.mxu0 0.0
    %343 = vmatprep.subr.mxu0 0.0
    %344 = vmatpush1.xpose.msra.mxu0 0.0
    %345 = vmatprep.subr.mxu0 0.0
    %346 = vmatpush1.xpose.msra.mxu0 0.0
    %347 = vmatprep.subr.mxu0 0.0
    %348 = vmatpush1.xpose.msra.mxu0 0.0
    %349 = vmatprep.subr.mxu0 0.0
    %350 = vmatpush1.xpose.msra.mxu0 0.0
    %351 = vmatprep.subr.mxu0 0.0
    %352 = vmatpush1.xpose.msra.mxu0 0.0
    %353 = vmatprep.subr.mxu0 0.0
    %354 = vmatpush1.xpose.msra.mxu0 0.0
    %355 = vmatprep.subr.mxu0 0.0
    %356 = vmatpush1.xpose.msra.mxu0 0.0
    %357 = vmatprep.subr.mxu0 0.0
    %358 = vmatpush1.xpose.msra.mxu0 0.0
    %359 = vmatprep.subr.mxu0 0.0
    %360 = vmatpush1.xpose.msra.mxu0 0.0
    %361 = vmatprep.subr.mxu0 0.0
    %362 = vmatpush1.xpose.msra.mxu0 0.0
    %363 = vmatprep.subr.mxu0 0.0
    %364 = vmatpush1.xpose.msra.mxu0 0.0
    %365 = vmatprep.subr.mxu0 0.0
    %366 = vmatpush1.xpose.msra.mxu0 0.0
    %367 = vmatprep.subr.mxu0 0.0
    %368 = vmatpush1.xpose.msra.mxu0 0.0
    %369 = vmatprep.subr.mxu0 0.0
    %370 = vmatpush1.xpose.msra.mxu0 0.0
    %371 = vmatprep.subr.mxu0 0.0
    %372 = vmatpush1.xpose.msra.mxu0 0.0
    %373 = vmatprep.subr.mxu0 0.0
    %374 = vmatpush1.xpose.msra.mxu0 0.0
    %375 = vmatprep.subr.mxu0 0.0
    %376 = vmatpush1.xpose.msra.mxu0 0.0
    %377 = vmatprep.subr.mxu0 0.0
    %378 = vmatpush1.xpose.msra.mxu0 0.0
    %379 = vmatprep.subr.mxu0 0.0
    %380 = vmatpush1.xpose.msra.mxu0 0.0
    %381 = vmatprep.subr.mxu0 0.0
    %382 = vmatpush1.xpose.msra.mxu0 0.0
    %383 = vmatprep.subr.mxu0 0.0
    %384 = vmatpush1.xpose.msra.mxu0 0.0
    %385 = vmatprep.subr.mxu0 0.0
    %386 = vmatpush1.xpose.msra.mxu0 0.0
    %387 = vmatprep.subr.mxu0 0.0
    %388 = vmatpush1.xpose.msra.mxu0 0.0
    %389 = vmatprep.subr.mxu0 0.0
    %390 = vmatpush1.xpose.msra.mxu0 0.0
    %391 = vmatprep.subr.mxu0 0.0
    %392 = vmatpush1.xpose.msra.mxu0 0.0
    %393 = vmatprep.subr.mxu0 0.0
    %394 = vmatpush1.xpose.msra.mxu0 0.0
    %395 = vmatprep.subr.mxu0 0.0
    %396 = vmatpush1.xpose.msra.mxu0 0.0
    %397 = vmatprep.subr.mxu0 0.0
    %398 = vmatpush1.xpose.msra.mxu0 0.0
    %399 = vmatprep.mubr.f32.mxu0 0.0
    %400 = vmatmul.mubr.f32.gmra.mrb[0].mxu0 %v324
    %v401 = vpop.f32.mrb[0].mxu0
    %v402 = vadd.f32 %v47, %v401
    %v403 = vpop.f32.mrb[0].mxu0
    %404 = vmatprep.mubr.f32.mxu0 0.0
    %405 = vmatmul.mubr.f32.gmra.mrb[0].mxu0 %v327
    %v406 = vpop.f32.mrb[0].mxu0
    %v407 = vadd.f32 %v48, %v406
    %v408 = vpop.f32.mrb[0].mxu0
    %409 = vdwg.mxu0
    %vm410 = vcmask 130048
    %v411 = vsel %vm410, %v402, -inf
    %412 = vmax.xlane.f32.xlu0 %v411
    %v413 = vpop.xlane.xlu0 %412
    %v414 = vsel %vm410, %v407, -inf
    %415 = vmax.xlane.f32.xlu0 %v414
    %v416 = vpop.xlane.xlu0 %415
    %v417 = vsub.f32 %v402, %v413
    %v418 = vsub.f32 %v407, %v416
    %v419 = vmul.f32 %v417, 1.442695
    %v420 = vpow.pop %v419
    %v421 = vmul.f32 %v418, 1.442695
    %v422 = vpow.pop %v421
    %v423 = vsel %vm410, %v420, 0.0
    %424 = vadd.xlane.f32.xlu0 %v423
    %v425 = vpop.xlane.xlu0 %424
    %v426 = vsel %vm410, %v422, 0.0
    %427 = vadd.xlane.f32.xlu0 %v426
    %v428 = vpop.xlane.xlu0 %427
    %v429 = vrcp.pop %v425
    %v430 = vrcp.pop %v428
    %v431 = vmul.f32 %v420, %v429
    %v432 = vmul.f32 %v422, %v430
    %v434 = vsel %vm410, %v431, 0
    %v437 = vsel %vm410, %v432, 0
    %439 = vmatprep.subr.mxu0 0.0
    %440 = vmatpush1.msra.mxu0 %v312
    %441 = vmatprep.subr.mxu0 0.0
    %442 = vmatpush1.msra.mxu0 %v317
    %443 = vmatprep.subr.mxu0 0.0
    %444 = vmatpush1.msra.mxu0 0.0
    %445 = vmatprep.subr.mxu0 0.0
    %446 = vmatpush1.msra.mxu0 0.0
    %447 = vmatprep.subr.mxu0 0.0
    %448 = vmatpush1.msra.mxu0 0.0
    %449 = vmatprep.subr.mxu0 0.0
    %450 = vmatpush1.msra.mxu0 0.0
    %451 = vmatprep.subr.mxu0 0.0
    %452 = vmatpush1.msra.mxu0 0.0
    %453 = vmatprep.subr.mxu0 0.0
    %454 = vmatpush1.msra.mxu0 0.0
    %455 = vmatprep.subr.mxu0 0.0
    %456 = vmatpush1.msra.mxu0 0.0
    %457 = vmatprep.subr.mxu0 0.0
    %458 = vmatpush1.msra.mxu0 0.0
    %459 = vmatprep.subr.mxu0 0.0
    %460 = vmatpush1.msra.mxu0 0.0
    %461 = vmatprep.subr.mxu0 0.0
    %462 = vmatpush1.msra.mxu0 0.0
    %463 = vmatprep.subr.mxu0 0.0
    %464 = vmatpush1.msra.mxu0 0.0
    %465 = vmatprep.subr.mxu0 0.0
    %466 = vmatpush1.msra.mxu0 0.0
    %467 = vmatprep.subr.mxu0 0.0
    %468 = vmatpush1.msra.mxu0 0.0
    %469 = vmatprep.subr.mxu0 0.0
    %470 = vmatpush1.msra.mxu0 0.0
    %471 = vmatprep.subr.mxu0 0.0
    %472 = vmatpush1.msra.mxu0 0.0
    %473 = vmatprep.subr.mxu0 0.0
    %474 = vmatpush1.msra.mxu0 0.0
    %475 = vmatprep.subr.mxu0 0.0
    %476 = vmatpush1.msra.mxu0 0.0
    %477 = vmatprep.subr.mxu0 0.0
    %478 = vmatpush1.msra.mxu0 0.0
    %479 = vmatprep.subr.mxu0 0.0
    %480 = vmatpush1.msra.mxu0 0.0
    %481 = vmatprep.subr.mxu0 0.0
    %482 = vmatpush1.msra.mxu0 0.0
    %483 = vmatprep.subr.mxu0 0.0
    %484 = vmatpush1.msra.mxu0 0.0
    %485 = vmatprep.subr.mxu0 0.0
    %486 = vmatpush1.msra.mxu0 0.0
    %487 = vmatprep.subr.mxu0 0.0
    %488 = vmatpush1.msra.mxu0 0.0
    %489 = vmatprep.subr.mxu0 0.0
    %490 = vmatpush1.msra.mxu0 0.0
    %491 = vmatprep.subr.mxu0 0.0
    %492 = vmatpush1.msra.mxu0 0.0
    %493 = vmatprep.subr.mxu0 0.0
    %494 = vmatpush1.msra.mxu0 0.0
    %495 = vmatprep.subr.mxu0 0.0
    %496 = vmatpush1.msra.mxu0 0.0
    %497 = vmatprep.subr.mxu0 0.0
    %498 = vmatpush1.msra.mxu0 0.0
    %499 = vmatprep.subr.mxu0 0.0
    %500 = vmatpush1.msra.mxu0 0.0
    %501 = vmatprep.subr.mxu0 0.0
    %502 = vmatpush1.msra.mxu0 0.0
    %503 = vmatprep.mubr.f32.mxu0 0.0
    %504 = vmatmul.mubr.f32.gmra.mrb[0].mxu0 %v434
    %v505 = vpop.f32.mrb[0].mxu0
    %v506 = vadd.f32 0.0, %v505
    %v507 = vpop.f32.mrb[0].mxu0
    %508 = vmatprep.mubr.f32.mxu0 0.0
    %509 = vmatmul.mubr.f32.gmra.mrb[0].mxu0 %v437
    %v510 = vpop.f32.mrb[0].mxu0
    %v511 = vadd.f32 0.0, %v510
    %v512 = vpop.f32.mrb[0].mxu0
    %513 = vdwg.mxu0
    %v514 = vld [vmem:[%s5] sm:$0xff]
    %s515 = scalar_lea.vmem %s3, 32
    %v516 = vld [vmem:[%s515] sm:$0xff]
    %v517 = vld [vmem:[%s515 + $0x8] sm:$0xff]
    %v518 = vld [vmem:[%s515 + $0x10] sm:$0xff]
    %v519 = vld [vmem:[%s515 + $0x18] sm:$0xff]
    %s520 = scalar_lea.vmem %s3, 160
    %v521 = vld [vmem:[%s520] sm:$0xff]
    %v522 = vld [vmem:[%s520 + $0x8] sm:$0xff]
    %v523 = vld [vmem:[%s520 + $0x10] sm:$0xff]
    %v524 = vld [vmem:[%s520 + $0x18] sm:$0xff]
    %s525 = scalar_lea.vmem %s3, 288
    %v526 = vld [vmem:[%s525] sm:$0xff]
    %v527 = vld [vmem:[%s525 + $0x8] sm:$0xff]
    %v528 = vld [vmem:[%s525 + $0x10] sm:$0xff]
    %v529 = vld [vmem:[%s525 + $0x18] sm:$0xff]
    %s530 = scalar_lea.vmem %s4, 1
    %v531 = vld [vmem:[%s530] sm:$0x1]
    %s532 = scalar_lea.vmem %s4, 5
    %v533 = vld [vmem:[%s532] sm:$0x1]
    %s534 = scalar_lea.vmem %s4, 9
    %v535 = vld [vmem:[%s534] sm:$0x1]
    %v537 = vlaneseq
    %v538 = vshrl.u32 %v537, 7
    %v539 = vsub.s32 0, %v538
    %v540 = vrot.slane %v531, %v539
    %542 = vmatprep.subr.mxu0 0.0
    %543 = vmatpush1.msra.mxu0 %v516
    %544 = vmatprep.subr.mxu0 0.0
    %545 = vmatpush1.msra.mxu0 %v517
    %546 = vmatprep.subr.mxu0 0.0
    %547 = vmatpush1.msra.mxu0 %v518
    %548 = vmatprep.subr.mxu0 0.0
    %549 = vmatpush1.msra.mxu0 %v519
    %550 = vmatprep.subr.mxu0 0.0
    %551 = vmatpush1.msra.mxu0 0.0
    %552 = vmatprep.subr.mxu0 0.0
    %553 = vmatpush1.msra.mxu0 0.0
    %554 = vmatprep.subr.mxu0 0.0
    %555 = vmatpush1.msra.mxu0 0.0
    %556 = vmatprep.subr.mxu0 0.0
    %557 = vmatpush1.msra.mxu0 0.0
    %558 = vmatprep.subr.mxu0 0.0
    %559 = vmatpush1.msra.mxu0 0.0
    %560 = vmatprep.subr.mxu0 0.0
    %561 = vmatpush1.msra.mxu0 0.0
    %562 = vmatprep.subr.mxu0 0.0
    %563 = vmatpush1.msra.mxu0 0.0
    %564 = vmatprep.subr.mxu0 0.0
    %565 = vmatpush1.msra.mxu0 0.0
    %566 = vmatprep.subr.mxu0 0.0
    %567 = vmatpush1.msra.mxu0 0.0
    %568 = vmatprep.subr.mxu0 0.0
    %569 = vmatpush1.msra.mxu0 0.0
    %570 = vmatprep.subr.mxu0 0.0
    %571 = vmatpush1.msra.mxu0 0.0
    %572 = vmatprep.subr.mxu0 0.0
    %573 = vmatpush1.msra.mxu0 0.0
    %574 = vmatprep.subr.mxu0 0.0
    %575 = vmatpush1.msra.mxu0 0.0
    %576 = vmatprep.subr.mxu0 0.0
    %577 = vmatpush1.msra.mxu0 0.0
    %578 = vmatprep.subr.mxu0 0.0
    %579 = vmatpush1.msra.mxu0 0.0
    %580 = vmatprep.subr.mxu0 0.0
    %581 = vmatpush1.msra.mxu0 0.0
    %582 = vmatprep.subr.mxu0 0.0
    %583 = vmatpush1.msra.mxu0 0.0
    %584 = vmatprep.subr.mxu0 0.0
    %585 = vmatpush1.msra.mxu0 0.0
    %586 = vmatprep.subr.mxu0 0.0
    %587 = vmatpush1.msra.mxu0 0.0
    %588 = vmatprep.subr.mxu0 0.0
    %589 = vmatpush1.msra.mxu0 0.0
    %590 = vmatprep.subr.mxu0 0.0
    %591 = vmatpush1.msra.mxu0 0.0
    %592 = vmatprep.subr.mxu0 0.0
    %593 = vmatpush1.msra.mxu0 0.0
    %594 = vmatprep.subr.mxu0 0.0
    %595 = vmatpush1.msra.mxu0 0.0
    %596 = vmatprep.subr.mxu0 0.0
    %597 = vmatpush1.msra.mxu0 0.0
    %598 = vmatprep.subr.mxu0 0.0
    %599 = vmatpush1.msra.mxu0 0.0
    %600 = vmatprep.subr.mxu0 0.0
    %601 = vmatpush1.msra.mxu0 0.0
    %602 = vmatprep.subr.mxu0 0.0
    %603 = vmatpush1.msra.mxu0 0.0
    %604 = vmatprep.subr.mxu0 0.0
    %605 = vmatpush1.msra.mxu0 0.0
    %606 = vmatprep.mubr.f32.mxu0 0.0
    %607 = vmatmul.mubr.f32.gmra.mrb[0].mxu0 %v78
    %v608 = vpop.f32.mrb[0].mxu0
    %v609 = vadd.f32 %v540, %v608
    %v610 = vpop.f32.mrb[0].mxu0
    %611 = vmatprep.mubr.f32.mxu0 0.0
    %612 = vmatmul.mubr.f32.gmra.mrb[0].mxu0 %v81
    %v613 = vpop.f32.mrb[0].mxu0
    %v614 = vadd.f32 %v540, %v613
    %v615 = vpop.f32.mrb[0].mxu0
    %616 = vdwg.mxu0
    %v618 = vlaneseq
    %v619 = vshrl.u32 %v618, 7
    %v620 = vsub.s32 0, %v619
    %v621 = vrot.slane %v533, %v620
    %623 = vmatprep.subr.mxu0 0.0
    %624 = vmatpush1.msra.mxu0 %v521
    %625 = vmatprep.subr.mxu0 0.0
    %626 = vmatpush1.msra.mxu0 %v522
    %627 = vmatprep.subr.mxu0 0.0
    %628 = vmatpush1.msra.mxu0 %v523
    %629 = vmatprep.subr.mxu0 0.0
    %630 = vmatpush1.msra.mxu0 %v524
    %631 = vmatprep.subr.mxu0 0.0
    %632 = vmatpush1.msra.mxu0 0.0
    %633 = vmatprep.subr.mxu0 0.0
    %634 = vmatpush1.msra.mxu0 0.0
    %635 = vmatprep.subr.mxu0 0.0
    %636 = vmatpush1.msra.mxu0 0.0
    %637 = vmatprep.subr.mxu0 0.0
    %638 = vmatpush1.msra.mxu0 0.0
    %639 = vmatprep.subr.mxu0 0.0
    %640 = vmatpush1.msra.mxu0 0.0
    %641 = vmatprep.subr.mxu0 0.0
    %642 = vmatpush1.msra.mxu0 0.0
    %643 = vmatprep.subr.mxu0 0.0
    %644 = vmatpush1.msra.mxu0 0.0
    %645 = vmatprep.subr.mxu0 0.0
    %646 = vmatpush1.msra.mxu0 0.0
    %647 = vmatprep.subr.mxu0 0.0
    %648 = vmatpush1.msra.mxu0 0.0
    %649 = vmatprep.subr.mxu0 0.0
    %650 = vmatpush1.msra.mxu0 0.0
    %651 = vmatprep.subr.mxu0 0.0
    %652 = vmatpush1.msra.mxu0 0.0
    %653 = vmatprep.subr.mxu0 0.0
    %654 = vmatpush1.msra.mxu0 0.0
    %655 = vmatprep.subr.mxu0 0.0
    %656 = vmatpush1.msra.mxu0 0.0
    %657 = vmatprep.subr.mxu0 0.0
    %658 = vmatpush1.msra.mxu0 0.0
    %659 = vmatprep.subr.mxu0 0.0
    %660 = vmatpush1.msra.mxu0 0.0
    %661 = vmatprep.subr.mxu0 0.0
    %662 = vmatpush1.msra.mxu0 0.0
    %663 = vmatprep.subr.mxu0 0.0
    %664 = vmatpush1.msra.mxu0 0.0
    %665 = vmatprep.subr.mxu0 0.0
    %666 = vmatpush1.msra.mxu0 0.0
    %667 = vmatprep.subr.mxu0 0.0
    %668 = vmatpush1.msra.mxu0 0.0
    %669 = vmatprep.subr.mxu0 0.0
    %670 = vmatpush1.msra.mxu0 0.0
    %671 = vmatprep.subr.mxu0 0.0
    %672 = vmatpush1.msra.mxu0 0.0
    %673 = vmatprep.subr.mxu0 0.0
    %674 = vmatpush1.msra.mxu0 0.0
    %675 = vmatprep.subr.mxu0 0.0
    %676 = vmatpush1.msra.mxu0 0.0
    %677 = vmatprep.subr.mxu0 0.0
    %678 = vmatpush1.msra.mxu0 0.0
    %679 = vmatprep.subr.mxu0 0.0
    %680 = vmatpush1.msra.mxu0 0.0
    %681 = vmatprep.subr.mxu0 0.0
    %682 = vmatpush1.msra.mxu0 0.0
    %683 = vmatprep.subr.mxu0 0.0
    %684 = vmatpush1.msra.mxu0 0.0
    %685 = vmatprep.subr.mxu0 0.0
    %686 = vmatpush1.msra.mxu0 0.0
    %687 = vmatprep.mubr.f32.mxu0 0.0
    %688 = vmatmul.mubr.f32.gmra.mrb[0].mxu0 %v78
    %v689 = vpop.f32.mrb[0].mxu0
    %v690 = vadd.f32 %v621, %v689
    %v691 = vpop.f32.mrb[0].mxu0
    %692 = vmatprep.mubr.f32.mxu0 0.0
    %693 = vmatmul.mubr.f32.gmra.mrb[0].mxu0 %v81
    %v694 = vpop.f32.mrb[0].mxu0
    %v695 = vadd.f32 %v621, %v694
    %v696 = vpop.f32.mrb[0].mxu0
    %697 = vdwg.mxu0
    %v699 = vlaneseq
    %v700 = vshrl.u32 %v699, 7
    %v701 = vsub.s32 0, %v700
    %v702 = vrot.slane %v535, %v701
    %704 = vmatprep.subr.mxu0 0.0
    %705 = vmatpush1.msra.mxu0 %v526
    %706 = vmatprep.subr.mxu0 0.0
    %707 = vmatpush1.msra.mxu0 %v527
    %708 = vmatprep.subr.mxu0 0.0
    %709 = vmatpush1.msra.mxu0 %v528
    %710 = vmatprep.subr.mxu0 0.0
    %711 = vmatpush1.msra.mxu0 %v529
    %712 = vmatprep.subr.mxu0 0.0
    %713 = vmatpush1.msra.mxu0 0.0
    %714 = vmatprep.subr.mxu0 0.0
    %715 = vmatpush1.msra.mxu0 0.0
    %716 = vmatprep.subr.mxu0 0.0
    %717 = vmatpush1.msra.mxu0 0.0
    %718 = vmatprep.subr.mxu0 0.0
    %719 = vmatpush1.msra.mxu0 0.0
    %720 = vmatprep.subr.mxu0 0.0
    %721 = vmatpush1.msra.mxu0 0.0
    %722 = vmatprep.subr.mxu0 0.0
    %723 = vmatpush1.msra.mxu0 0.0
    %724 = vmatprep.subr.mxu0 0.0
    %725 = vmatpush1.msra.mxu0 0.0
    %726 = vmatprep.subr.mxu0 0.0
    %727 = vmatpush1.msra.mxu0 0.0
    %728 = vmatprep.subr.mxu0 0.0
    %729 = vmatpush1.msra.mxu0 0.0
    %730 = vmatprep.subr.mxu0 0.0
    %731 = vmatpush1.msra.mxu0 0.0
    %732 = vmatprep.subr.mxu0 0.0
    %733 = vmatpush1.msra.mxu0 0.0
    %734 = vmatprep.subr.mxu0 0.0
    %735 = vmatpush1.msra.mxu0 0.0
    %736 = vmatprep.subr.mxu0 0.0
    %737 = vmatpush1.msra.mxu0 0.0
    %738 = vmatprep.subr.mxu0 0.0
    %739 = vmatpush1.msra.mxu0 0.0
    %740 = vmatprep.subr.mxu0 0.0
    %741 = vmatpush1.msra.mxu0 0.0
    %742 = vmatprep.subr.mxu0 0.0
    %743 = vmatpush1.msra.mxu0 0.0
    %744 = vmatprep.subr.mxu0 0.0
    %745 = vmatpush1.msra.mxu0 0.0
    %746 = vmatprep.subr.mxu0 0.0
    %747 = vmatpush1.msra.mxu0 0.0
    %748 = vmatprep.subr.mxu0 0.0
    %749 = vmatpush1.msra.mxu0 0.0
    %750 = vmatprep.subr.mxu0 0.0
    %751 = vmatpush1.msra.mxu0 0.0
    %752 = vmatprep.subr.mxu0 0.0
    %753 = vmatpush1.msra.mxu0 0.0
    %754 = vmatprep.subr.mxu0 0.0
    %755 = vmatpush1.msra.mxu0 0.0
    %756 = vmatprep.subr.mxu0 0.0
    %757 = vmatpush1.msra.mxu0 0.0
    %758 = vmatprep.subr.mxu0 0.0
    %759 = vmatpush1.msra.mxu0 0.0
    %760 = vmatprep.subr.mxu0 0.0
    %761 = vmatpush1.msra.mxu0 0.0
    %762 = vmatprep.subr.mxu0 0.0
    %763 = vmatpush1.msra.mxu0 0.0
    %764 = vmatprep.subr.mxu0 0.0
    %765 = vmatpush1.msra.mxu0 0.0
    %766 = vmatprep.subr.mxu0 0.0
    %767 = vmatpush1.msra.mxu0 0.0
    %768 = vmatprep.mubr.f32.mxu0 0.0
    %769 = vmatmul.mubr.f32.gmra.mrb[0].mxu0 %v78
    %v770 = vpop.f32.mrb[0].mxu0
    %v771 = vadd.f32 %v702, %v770
    %v772 = vpop.f32.mrb[0].mxu0
    %773 = vmatprep.mubr.f32.mxu0 0.0
    %774 = vmatmul.mubr.f32.gmra.mrb[0].mxu0 %v81
    %v775 = vpop.f32.mrb[0].mxu0
    %v776 = vadd.f32 %v702, %v775
    %v777 = vpop.f32.mrb[0].mxu0
    %778 = vdwg.mxu0
    %v779 = vmul.f32 %v609, 0.35355338
    %v780 = vmul.f32 %v614, 0.35355338
    %v782 = vsel %vm322, %v779, 0
    %v785 = vsel %vm322, %v780, 0
    %v788 = vsel %vm322, %v690, 0
    %v791 = vsel %vm322, %v695, 0
    %793 = vmatprep.subr.mxu0 0.0
    %794 = vmatpush1.xpose.msra.mxu0 %v788
    %795 = vmatprep.subr.mxu0 0.0
    %796 = vmatpush1.xpose.msra.mxu0 %v791
    %797 = vmatprep.subr.mxu0 0.0
    %798 = vmatpush1.xpose.msra.mxu0 0.0
    %799 = vmatprep.subr.mxu0 0.0
    %800 = vmatpush1.xpose.msra.mxu0 0.0
    %801 = vmatprep.subr.mxu0 0.0
    %802 = vmatpush1.xpose.msra.mxu0 0.0
    %803 = vmatprep.subr.mxu0 0.0
    %804 = vmatpush1.xpose.msra.mxu0 0.0
    %805 = vmatprep.subr.mxu0 0.0
    %806 = vmatpush1.xpose.msra.mxu0 0.0
    %807 = vmatprep.subr.mxu0 0.0
    %808 = vmatpush1.xpose.msra.mxu0 0.0
    %809 = vmatprep.subr.mxu0 0.0
    %810 = vmatpush1.xpose.msra.mxu0 0.0
    %811 = vmatprep.subr.mxu0 0.0
    %812 = vmatpush1.xpose.msra.mxu0 0.0
    %813 = vmatprep.subr.mxu0 0.0
    %814 = vmatpush1.xpose.msra.mxu0 0.0
    %815 = vmatprep.subr.mxu0 0.0
    %816 = vmatpush1.xpose.msra.mxu0 0.0
    %817 = vmatprep.subr.mxu0 0.0
    %818 = vmatpush1.xpose.msra.mxu0 0.0
    %819 = vmatprep.subr.mxu0 0.0
    %820 = vmatpush1.xpose.msra.mxu0 0.0
    %821 = vmatprep.subr.mxu0 0.0
    %822 = vmatpush1.xpose.msra.mxu0 0.0
    %823 = vmatprep.subr.mxu0 0.0
    %824 = vmatpush1.xpose.msra.mxu0 0.0
    %825 = vmatprep.subr.mxu0 0.0
    %826 = vmatpush1.xpose.msra.mxu0 0.0
    %827 = vmatprep.subr.mxu0 0.0
    %828 = vmatpush1.xpose.msra.mxu0 0.0
    %829 = vmatprep.subr.mxu0 0.0
    %830 = vmatpush1.xpose.msra.mxu0 0.0
    %831 = vmatprep.subr.mxu0 0.0
    %832 = vmatpush1.xpose.msra.mxu0 0.0
    %833 = vmatprep.subr.mxu0 0.0
    %834 = vmatpush1.xpose.msra.mxu0 0.0
    %835 = vmatprep.subr.mxu0 0.0
    %836 = vmatpush1.xpose.msra.mxu0 0.0
    %837 = vmatprep.subr.mxu0 0.0
    %838 = vmatpush1.xpose.msra.mxu0 0.0
    %839 = vmatprep.subr.mxu0 0.0
    %840 = vmatpush1.xpose.msra.mxu0 0.0
    %841 = vmatprep.subr.mxu0 0.0
    %842 = vmatpush1.xpose.msra.mxu0 0.0
    %843 = vmatprep.subr.mxu0 0.0
    %844 = vmatpush1.xpose.msra.mxu0 0.0
    %845 = vmatprep.subr.mxu0 0.0
    %846 = vmatpush1.xpose.msra.mxu0 0.0
    %847 = vmatprep.subr.mxu0 0.0
    %848 = vmatpush1.xpose.msra.mxu0 0.0
    %849 = vmatprep.subr.mxu0 0.0
    %850 = vmatpush1.xpose.msra.mxu0 0.0
    %851 = vmatprep.subr.mxu0 0.0
    %852 = vmatpush1.xpose.msra.mxu0 0.0
    %853 = vmatprep.subr.mxu0 0.0
    %854 = vmatpush1.xpose.msra.mxu0 0.0
    %855 = vmatprep.subr.mxu0 0.0
    %856 = vmatpush1.xpose.msra.mxu0 0.0
    %857 = vmatprep.mubr.f32.mxu0 0.0
    %858 = vmatmul.mubr.f32.gmra.mrb[0].mxu0 %v782
    %v859 = vpop.f32.mrb[0].mxu0
    %v860 = vadd.f32 %v47, %v859
    %v861 = vpop.f32.mrb[0].mxu0
    %862 = vmatprep.mubr.f32.mxu0 0.0
    %863 = vmatmul.mubr.f32.gmra.mrb[0].mxu0 %v785
    %v864 = vpop.f32.mrb[0].mxu0
    %v865 = vadd.f32 %v48, %v864
    %v866 = vpop.f32.mrb[0].mxu0
    %867 = vdwg.mxu0
    %v868 = vsel %vm410, %v860, -inf
    %869 = vmax.xlane.f32.xlu0 %v868
    %v870 = vpop.xlane.xlu0 %869
    %v871 = vsel %vm410, %v865, -inf
    %872 = vmax.xlane.f32.xlu0 %v871
    %v873 = vpop.xlane.xlu0 %872
    %v874 = vsub.f32 %v860, %v870
    %v875 = vsub.f32 %v865, %v873
    %v876 = vmul.f32 %v874, 1.442695
    %v877 = vpow.pop %v876
    %v878 = vmul.f32 %v875, 1.442695
    %v879 = vpow.pop %v878
    %v880 = vsel %vm410, %v877, 0.0
    %881 = vadd.xlane.f32.xlu0 %v880
    %v882 = vpop.xlane.xlu0 %881
    %v883 = vsel %vm410, %v879, 0.0
    %884 = vadd.xlane.f32.xlu0 %v883
    %v885 = vpop.xlane.xlu0 %884
    %v886 = vrcp.pop %v882
    %v887 = vrcp.pop %v885
    %v888 = vmul.f32 %v877, %v886
    %v889 = vmul.f32 %v879, %v887
    %v891 = vsel %vm410, %v888, 0
    %v894 = vsel %vm410, %v889, 0
    %896 = vmatprep.subr.mxu0 0.0
    %897 = vmatpush1.msra.mxu0 %v771
    %898 = vmatprep.subr.mxu0 0.0
    %899 = vmatpush1.msra.mxu0 %v776
    %900 = vmatprep.subr.mxu0 0.0
    %901 = vmatpush1.msra.mxu0 0.0
    %902 = vmatprep.subr.mxu0 0.0
    %903 = vmatpush1.msra.mxu0 0.0
    %904 = vmatprep.subr.mxu0 0.0
    %905 = vmatpush1.msra.mxu0 0.0
    %906 = vmatprep.subr.mxu0 0.0
    %907 = vmatpush1.msra.mxu0 0.0
    %908 = vmatprep.subr.mxu0 0.0
    %909 = vmatpush1.msra.mxu0 0.0
    %910 = vmatprep.subr.mxu0 0.0
    %911 = vmatpush1.msra.mxu0 0.0
    %912 = vmatprep.subr.mxu0 0.0
    %913 = vmatpush1.msra.mxu0 0.0
    %914 = vmatprep.subr.mxu0 0.0
    %915 = vmatpush1.msra.mxu0 0.0
    %916 = vmatprep.subr.mxu0 0.0
    %917 = vmatpush1.msra.mxu0 0.0
    %918 = vmatprep.subr.mxu0 0.0
    %919 = vmatpush1.msra.mxu0 0.0
    %920 = vmatprep.subr.mxu0 0.0
    %921 = vmatpush1.msra.mxu0 0.0
    %922 = vmatprep.subr.mxu0 0.0
    %923 = vmatpush1.msra.mxu0 0.0
    %924 = vmatprep.subr.mxu0 0.0
    %925 = vmatpush1.msra.mxu0 0.0
    %926 = vmatprep.subr.mxu0 0.0
    %927 = vmatpush1.msra.mxu0 0.0
    %928 = vmatprep.subr.mxu0 0.0
    %929 = vmatpush1.msra.mxu0 0.0
    %930 = vmatprep.subr.mxu0 0.0
    %931 = vmatpush1.msra.mxu0 0.0
    %932 = vmatprep.subr.mxu0 0.0
    %933 = vmatpush1.msra.mxu0 0.0
    %934 = vmatprep.subr.mxu0 0.0
    %935 = vmatpush1.msra.mxu0 0.0
    %936 = vmatprep.subr.mxu0 0.0
    %937 = vmatpush1.msra.mxu0 0.0
    %938 = vmatprep.subr.mxu0 0.0
    %939 = vmatpush1.msra.mxu0 0.0
    %940 = vmatprep.subr.mxu0 0.0
    %941 = vmatpush1.msra.mxu0 0.0
    %942 = vmatprep.subr.mxu0 0.0
    %943 = vmatpush1.msra.mxu0 0.0
    %944 = vmatprep.subr.mxu0 0.0
    %945 = vmatpush1.msra.mxu0 0.0
    %946 = vmatprep.subr.mxu0 0.0
    %947 = vmatpush1.msra.mxu0 0.0
    %948 = vmatprep.subr.mxu0 0.0
    %949 = vmatpush1.msra.mxu0 0.0
    %950 = vmatprep.subr.mxu0 0.0
    %951 = vmatpush1.msra.mxu0 0.0
    %952 = vmatprep.subr.mxu0 0.0
    %953 = vmatpush1.msra.mxu0 0.0
    %954 = vmatprep.subr.mxu0 0.0
    %955 = vmatpush1.msra.mxu0 0.0
    %956 = vmatprep.subr.mxu0 0.0
    %957 = vmatpush1.msra.mxu0 0.0
    %958 = vmatprep.subr.mxu0 0.0
    %959 = vmatpush1.msra.mxu0 0.0
    %960 = vmatprep.mubr.f32.mxu0 0.0
    %961 = vmatmul.mubr.f32.gmra.mrb[0].mxu0 %v891
    %v962 = vpop.f32.mrb[0].mxu0
    %v963 = vadd.f32 0.0, %v962
    %v964 = vpop.f32.mrb[0].mxu0
    %965 = vmatprep.mubr.f32.mxu0 0.0
    %966 = vmatmul.mubr.f32.gmra.mrb[0].mxu0 %v894
    %v967 = vpop.f32.mrb[0].mxu0
    %v968 = vadd.f32 0.0, %v967
    %v969 = vpop.f32.mrb[0].mxu0
    %970 = vdwg.mxu0
    %s971 = scalar_lea.vmem %s5, 8
    %v972 = vld [vmem:[%s971] sm:$0xff]
    %v974 = vsel %vm322, %v963, 0
    %v977 = vsel %vm322, %v968, 0
    %979 = vmatprep.subr.mxu0 0.0
    %980 = vmatpush1.msra.mxu0 %v972
    %981 = vmatprep.subr.mxu0 0.0
    %982 = vmatpush1.msra.mxu0 0.0
    %983 = vmatprep.subr.mxu0 0.0
    %984 = vmatpush1.msra.mxu0 0.0
    %985 = vmatprep.subr.mxu0 0.0
    %986 = vmatpush1.msra.mxu0 0.0
    %987 = vmatprep.subr.mxu0 0.0
    %988 = vmatpush1.msra.mxu0 0.0
    %989 = vmatprep.subr.mxu0 0.0
    %990 = vmatpush1.msra.mxu0 0.0
    %991 = vmatprep.subr.mxu0 0.0
    %992 = vmatpush1.msra.mxu0 0.0
    %993 = vmatprep.subr.mxu0 0.0
    %994 = vmatpush1.msra.mxu0 0.0
    %995 = vmatprep.subr.mxu0 0.0
    %996 = vmatpush1.msra.mxu0 0.0
    %997 = vmatprep.subr.mxu0 0.0
    %998 = vmatpush1.msra.mxu0 0.0
    %999 = vmatprep.subr.mxu0 0.0
    %1000 = vmatpush1.msra.mxu0 0.0
    %1001 = vmatprep.subr.mxu0 0.0
    %1002 = vmatpush1.msra.mxu0 0.0
    %1003 = vmatprep.subr.mxu0 0.0
    %1004 = vmatpush1.msra.mxu0 0.0
    %1005 = vmatprep.subr.mxu0 0.0
    %1006 = vmatpush1.msra.mxu0 0.0
    %1007 = vmatprep.subr.mxu0 0.0
    %1008 = vmatpush1.msra.mxu0 0.0
    %1009 = vmatprep.subr.mxu0 0.0
    %1010 = vmatpush1.msra.mxu0 0.0
    %1011 = vmatprep.subr.mxu0 0.0
    %1012 = vmatpush1.msra.mxu0 0.0
    %1013 = vmatprep.subr.mxu0 0.0
    %1014 = vmatpush1.msra.mxu0 0.0
    %1015 = vmatprep.subr.mxu0 0.0
    %1016 = vmatpush1.msra.mxu0 0.0
    %1017 = vmatprep.subr.mxu0 0.0
    %1018 = vmatpush1.msra.mxu0 0.0
    %1019 = vmatprep.subr.mxu0 0.0
    %1020 = vmatpush1.msra.mxu0 0.0
    %1021 = vmatprep.subr.mxu0 0.0
    %1022 = vmatpush1.msra.mxu0 0.0
    %1023 = vmatprep.subr.mxu0 0.0
    %1024 = vmatpush1.msra.mxu0 0.0
    %1025 = vmatprep.subr.mxu0 0.0
    %1026 = vmatpush1.msra.mxu0 0.0
    %1027 = vmatprep.subr.mxu0 0.0
    %1028 = vmatpush1.msra.mxu0 0.0
    %1029 = vmatprep.subr.mxu0 0.0
    %1030 = vmatpush1.msra.mxu0 0.0
    %1031 = vmatprep.subr.mxu0 0.0
    %1032 = vmatpush1.msra.mxu0 0.0
    %1033 = vmatprep.subr.mxu0 0.0
    %1034 = vmatpush1.msra.mxu0 0.0
    %1035 = vmatprep.subr.mxu0 0.0
    %1036 = vmatpush1.msra.mxu0 0.0
    %1037 = vmatprep.subr.mxu0 0.0
    %1038 = vmatpush1.msra.mxu0 0.0
    %1039 = vmatprep.subr.mxu0 0.0
    %1040 = vmatpush1.msra.mxu0 0.0
    %1041 = vmatprep.subr.mxu0 0.0
    %1042 = vmatpush1.msra.mxu0 0.0
    %1043 = vmatprep.mubr.f32.mxu0 0.0
    %1044 = vmatmul.mubr.f32.gmra.mrb[0].mxu0 %v974
    %v1045 = vpop.f32.mrb[0].mxu0
    %v1046 = vadd.f32 0.0, %v1045
    %v1047 = vpop.f32.mrb[0].mxu0
    %1048 = vmatprep.mubr.f32.mxu0 0.0
    %1049 = vmatmul.mubr.f32.gmra.mrb[0].mxu0 %v977
    %v1050 = vpop.f32.mrb[0].mxu0
    %v1051 = vadd.f32 0.0, %v1050
    %v1052 = vpop.f32.mrb[0].mxu0
    %1053 = vdwg.mxu0
    %v1055 = vsel %vm322, %v506, 0
    %v1058 = vsel %vm322, %v511, 0
    %1060 = vmatprep.subr.mxu0 0.0
    %1061 = vmatpush1.msra.mxu0 %v514
    %1062 = vmatprep.subr.mxu0 0.0
    %1063 = vmatpush1.msra.mxu0 0.0
    %1064 = vmatprep.subr.mxu0 0.0
    %1065 = vmatpush1.msra.mxu0 0.0
    %1066 = vmatprep.subr.mxu0 0.0
    %1067 = vmatpush1.msra.mxu0 0.0
    %1068 = vmatprep.subr.mxu0 0.0
    %1069 = vmatpush1.msra.mxu0 0.0
    %1070 = vmatprep.subr.mxu0 0.0
    %1071 = vmatpush1.msra.mxu0 0.0
    %1072 = vmatprep.subr.mxu0 0.0
    %1073 = vmatpush1.msra.mxu0 0.0
    %1074 = vmatprep.subr.mxu0 0.0
    %1075 = vmatpush1.msra.mxu0 0.0
    %1076 = vmatprep.subr.mxu0 0.0
    %1077 = vmatpush1.msra.mxu0 0.0
    %1078 = vmatprep.subr.mxu0 0.0
    %1079 = vmatpush1.msra.mxu0 0.0
    %1080 = vmatprep.subr.mxu0 0.0
    %1081 = vmatpush1.msra.mxu0 0.0
    %1082 = vmatprep.subr.mxu0 0.0
    %1083 = vmatpush1.msra.mxu0 0.0
    %1084 = vmatprep.subr.mxu0 0.0
    %1085 = vmatpush1.msra.mxu0 0.0
    %1086 = vmatprep.subr.mxu0 0.0
    %1087 = vmatpush1.msra.mxu0 0.0
    %1088 = vmatprep.subr.mxu0 0.0
    %1089 = vmatpush1.msra.mxu0 0.0
    %1090 = vmatprep.subr.mxu0 0.0
    %1091 = vmatpush1.msra.mxu0 0.0
    %1092 = vmatprep.subr.mxu0 0.0
    %1093 = vmatpush1.msra.mxu0 0.0
    %1094 = vmatprep.subr.mxu0 0.0
    %1095 = vmatpush1.msra.mxu0 0.0
    %1096 = vmatprep.subr.mxu0 0.0
    %1097 = vmatpush1.msra.mxu0 0.0
    %1098 = vmatprep.subr.mxu0 0.0
    %1099 = vmatpush1.msra.mxu0 0.0
    %1100 = vmatprep.subr.mxu0 0.0
    %1101 = vmatpush1.msra.mxu0 0.0
    %1102 = vmatprep.subr.mxu0 0.0
    %1103 = vmatpush1.msra.mxu0 0.0
    %1104 = vmatprep.subr.mxu0 0.0
    %1105 = vmatpush1.msra.mxu0 0.0
    %1106 = vmatprep.subr.mxu0 0.0
    %1107 = vmatpush1.msra.mxu0 0.0
    %1108 = vmatprep.subr.mxu0 0.0
    %1109 = vmatpush1.msra.mxu0 0.0
    %1110 = vmatprep.subr.mxu0 0.0
    %1111 = vmatpush1.msra.mxu0 0.0
    %1112 = vmatprep.subr.mxu0 0.0
    %1113 = vmatpush1.msra.mxu0 0.0
    %1114 = vmatprep.subr.mxu0 0.0
    %1115 = vmatpush1.msra.mxu0 0.0
    %1116 = vmatprep.subr.mxu0 0.0
    %1117 = vmatpush1.msra.mxu0 0.0
    %1118 = vmatprep.subr.mxu0 0.0
    %1119 = vmatpush1.msra.mxu0 0.0
    %1120 = vmatprep.subr.mxu0 0.0
    %1121 = vmatpush1.msra.mxu0 0.0
    %1122 = vmatprep.subr.mxu0 0.0
    %1123 = vmatpush1.msra.mxu0 0.0
    %1124 = vmatprep.mubr.f32.mxu0 0.0
    %1125 = vmatmul.mubr.f32.gmra.mrb[0].mxu0 %v1055
    %v1126 = vpop.f32.mrb[0].mxu0
    %v1127 = vadd.f32 %v1046, %v1126
    %v1128 = vpop.f32.mrb[0].mxu0
    %1129 = vmatprep.mubr.f32.mxu0 0.0
    %1130 = vmatmul.mubr.f32.gmra.mrb[0].mxu0 %v1058
    %v1131 = vpop.f32.mrb[0].mxu0
    %v1132 = vadd.f32 %v1051, %v1131
    %v1133 = vpop.f32.mrb[0].mxu0
    %1134 = vdwg.mxu0
    %s1135 = scalar_lea.vmem %s3, 64
    %v1136 = vld [vmem:[%s1135] sm:$0xff]
    %v1137 = vld [vmem:[%s1135 + $0x8] sm:$0xff]
    %v1138 = vld [vmem:[%s1135 + $0x10] sm:$0xff]
    %v1139 = vld [vmem:[%s1135 + $0x18] sm:$0xff]
    %s1140 = scalar_lea.vmem %s3, 192
    %v1141 = vld [vmem:[%s1140] sm:$0xff]
    %v1142 = vld [vmem:[%s1140 + $0x8] sm:$0xff]
    %v1143 = vld [vmem:[%s1140 + $0x10] sm:$0xff]
    %v1144 = vld [vmem:[%s1140 + $0x18] sm:$0xff]
    %s1145 = scalar_lea.vmem %s3, 320
    %v1146 = vld [vmem:[%s1145] sm:$0xff]
    %v1147 = vld [vmem:[%s1145 + $0x8] sm:$0xff]
    %v1148 = vld [vmem:[%s1145 + $0x10] sm:$0xff]
    %v1149 = vld [vmem:[%s1145 + $0x18] sm:$0xff]
    %s1150 = scalar_lea.vmem %s4, 2
    %v1151 = vld [vmem:[%s1150] sm:$0x1]
    %s1152 = scalar_lea.vmem %s4, 6
    %v1153 = vld [vmem:[%s1152] sm:$0x1]
    %s1154 = scalar_lea.vmem %s4, 10
    %v1155 = vld [vmem:[%s1154] sm:$0x1]
    %v1157 = vlaneseq
    %v1158 = vshrl.u32 %v1157, 7
    %v1159 = vsub.s32 0, %v1158
    %v1160 = vrot.slane %v1151, %v1159
    %1162 = vmatprep.subr.mxu0 0.0
    %1163 = vmatpush1.msra.mxu0 %v1136
    %1164 = vmatprep.subr.mxu0 0.0
    %1165 = vmatpush1.msra.mxu0 %v1137
    %1166 = vmatprep.subr.mxu0 0.0
    %1167 = vmatpush1.msra.mxu0 %v1138
    %1168 = vmatprep.subr.mxu0 0.0
    %1169 = vmatpush1.msra.mxu0 %v1139
    %1170 = vmatprep.subr.mxu0 0.0
    %1171 = vmatpush1.msra.mxu0 0.0
    %1172 = vmatprep.subr.mxu0 0.0
    %1173 = vmatpush1.msra.mxu0 0.0
    %1174 = vmatprep.subr.mxu0 0.0
    %1175 = vmatpush1.msra.mxu0 0.0
    %1176 = vmatprep.subr.mxu0 0.0
    %1177 = vmatpush1.msra.mxu0 0.0
    %1178 = vmatprep.subr.mxu0 0.0
    %1179 = vmatpush1.msra.mxu0 0.0
    %1180 = vmatprep.subr.mxu0 0.0
    %1181 = vmatpush1.msra.mxu0 0.0
    %1182 = vmatprep.subr.mxu0 0.0
    %1183 = vmatpush1.msra.mxu0 0.0
    %1184 = vmatprep.subr.mxu0 0.0
    %1185 = vmatpush1.msra.mxu0 0.0
    %1186 = vmatprep.subr.mxu0 0.0
    %1187 = vmatpush1.msra.mxu0 0.0
    %1188 = vmatprep.subr.mxu0 0.0
    %1189 = vmatpush1.msra.mxu0 0.0
    %1190 = vmatprep.subr.mxu0 0.0
    %1191 = vmatpush1.msra.mxu0 0.0
    %1192 = vmatprep.subr.mxu0 0.0
    %1193 = vmatpush1.msra.mxu0 0.0
    %1194 = vmatprep.subr.mxu0 0.0
    %1195 = vmatpush1.msra.mxu0 0.0
    %1196 = vmatprep.subr.mxu0 0.0
    %1197 = vmatpush1.msra.mxu0 0.0
    %1198 = vmatprep.subr.mxu0 0.0
    %1199 = vmatpush1.msra.mxu0 0.0
    %1200 = vmatprep.subr.mxu0 0.0
    %1201 = vmatpush1.msra.mxu0 0.0
    %1202 = vmatprep.subr.mxu0 0.0
    %1203 = vmatpush1.msra.mxu0 0.0
    %1204 = vmatprep.subr.mxu0 0.0
    %1205 = vmatpush1.msra.mxu0 0.0
    %1206 = vmatprep.subr.mxu0 0.0
    %1207 = vmatpush1.msra.mxu0 0.0
    %1208 = vmatprep.subr.mxu0 0.0
    %1209 = vmatpush1.msra.mxu0 0.0
    %1210 = vmatprep.subr.mxu0 0.0
    %1211 = vmatpush1.msra.mxu0 0.0
    %1212 = vmatprep.subr.mxu0 0.0
    %1213 = vmatpush1.msra.mxu0 0.0
    %1214 = vmatprep.subr.mxu0 0.0
    %1215 = vmatpush1.msra.mxu0 0.0
    %1216 = vmatprep.subr.mxu0 0.0
    %1217 = vmatpush1.msra.mxu0 0.0
    %1218 = vmatprep.subr.mxu0 0.0
    %1219 = vmatpush1.msra.mxu0 0.0
    %1220 = vmatprep.subr.mxu0 0.0
    %1221 = vmatpush1.msra.mxu0 0.0
    %1222 = vmatprep.subr.mxu0 0.0
    %1223 = vmatpush1.msra.mxu0 0.0
    %1224 = vmatprep.subr.mxu0 0.0
    %1225 = vmatpush1.msra.mxu0 0.0
    %1226 = vmatprep.mubr.f32.mxu0 0.0
    %1227 = vmatmul.mubr.f32.gmra.mrb[0].mxu0 %v78
    %v1228 = vpop.f32.mrb[0].mxu0
    %v1229 = vadd.f32 %v1160, %v1228
    %v1230 = vpop.f32.mrb[0].mxu0
    %1231 = vmatprep.mubr.f32.mxu0 0.0
    %1232 = vmatmul.mubr.f32.gmra.mrb[0].mxu0 %v81
    %v1233 = vpop.f32.mrb[0].mxu0
    %v1234 = vadd.f32 %v1160, %v1233
    %v1235 = vpop.f32.mrb[0].mxu0
    %1236 = vdwg.mxu0
    %v1238 = vlaneseq
    %v1239 = vshrl.u32 %v1238, 7
    %v1240 = vsub.s32 0, %v1239
    %v1241 = vrot.slane %v1153, %v1240
    %1243 = vmatprep.subr.mxu0 0.0
    %1244 = vmatpush1.msra.mxu0 %v1141
    %1245 = vmatprep.subr.mxu0 0.0
    %1246 = vmatpush1.msra.mxu0 %v1142
    %1247 = vmatprep.subr.mxu0 0.0
    %1248 = vmatpush1.msra.mxu0 %v1143
    %1249 = vmatprep.subr.mxu0 0.0
    %1250 = vmatpush1.msra.mxu0 %v1144
    %1251 = vmatprep.subr.mxu0 0.0
    %1252 = vmatpush1.msra.mxu0 0.0
    %1253 = vmatprep.subr.mxu0 0.0
    %1254 = vmatpush1.msra.mxu0 0.0
    %1255 = vmatprep.subr.mxu0 0.0
    %1256 = vmatpush1.msra.mxu0 0.0
    %1257 = vmatprep.subr.mxu0 0.0
    %1258 = vmatpush1.msra.mxu0 0.0
    %1259 = vmatprep.subr.mxu0 0.0
    %1260 = vmatpush1.msra.mxu0 0.0
    %1261 = vmatprep.subr.mxu0 0.0
    %1262 = vmatpush1.msra.mxu0 0.0
    %1263 = vmatprep.subr.mxu0 0.0
    %1264 = vmatpush1.msra.mxu0 0.0
    %1265 = vmatprep.subr.mxu0 0.0
    %1266 = vmatpush1.msra.mxu0 0.0
    %1267 = vmatprep.subr.mxu0 0.0
    %1268 = vmatpush1.msra.mxu0 0.0
    %1269 = vmatprep.subr.mxu0 0.0
    %1270 = vmatpush1.msra.mxu0 0.0
    %1271 = vmatprep.subr.mxu0 0.0
    %1272 = vmatpush1.msra.mxu0 0.0
    %1273 = vmatprep.subr.mxu0 0.0
    %1274 = vmatpush1.msra.mxu0 0.0
    %1275 = vmatprep.subr.mxu0 0.0
    %1276 = vmatpush1.msra.mxu0 0.0
    %1277 = vmatprep.subr.mxu0 0.0
    %1278 = vmatpush1.msra.mxu0 0.0
    %1279 = vmatprep.subr.mxu0 0.0
    %1280 = vmatpush1.msra.mxu0 0.0
    %1281 = vmatprep.subr.mxu0 0.0
    %1282 = vmatpush1.msra.mxu0 0.0
    %1283 = vmatprep.subr.mxu0 0.0
    %1284 = vmatpush1.msra.mxu0 0.0
    %1285 = vmatprep.subr.mxu0 0.0
    %1286 = vmatpush1.msra.mxu0 0.0
    %1287 = vmatprep.subr.mxu0 0.0
    %1288 = vmatpush1.msra.mxu0 0.0
    %1289 = vmatprep.subr.mxu0 0.0
    %1290 = vmatpush1.msra.mxu0 0.0
    %1291 = vmatprep.subr.mxu0 0.0
    %1292 = vmatpush1.msra.mxu0 0.0
    %1293 = vmatprep.subr.mxu0 0.0
    %1294 = vmatpush1.msra.mxu0 0.0
    %1295 = vmatprep.subr.mxu0 0.0
    %1296 = vmatpush1.msra.mxu0 0.0
    %1297 = vmatprep.subr.mxu0 0.0
    %1298 = vmatpush1.msra.mxu0 0.0
    %1299 = vmatprep.subr.mxu0 0.0
    %1300 = vmatpush1.msra.mxu0 0.0
    %1301 = vmatprep.subr.mxu0 0.0
    %1302 = vmatpush1.msra.mxu0 0.0
    %1303 = vmatprep.subr.mxu0 0.0
    %1304 = vmatpush1.msra.mxu0 0.0
    %1305 = vmatprep.subr.mxu0 0.0
    %1306 = vmatpush1.msra.mxu0 0.0
    %1307 = vmatprep.mubr.f32.mxu0 0.0
    %1308 = vmatmul.mubr.f32.gmra.mrb[0].mxu0 %v78
    %v1309 = vpop.f32.mrb[0].mxu0
    %v1310 = vadd.f32 %v1241, %v1309
    %v1311 = vpop.f32.mrb[0].mxu0
    %1312 = vmatprep.mubr.f32.mxu0 0.0
    %1313 = vmatmul.mubr.f32.gmra.mrb[0].mxu0 %v81
    %v1314 = vpop.f32.mrb[0].mxu0
    %v1315 = vadd.f32 %v1241, %v1314
    %v1316 = vpop.f32.mrb[0].mxu0
    %1317 = vdwg.mxu0
    %v1319 = vlaneseq
    %v1320 = vshrl.u32 %v1319, 7
    %v1321 = vsub.s32 0, %v1320
    %v1322 = vrot.slane %v1155, %v1321
    %1324 = vmatprep.subr.mxu0 0.0
    %1325 = vmatpush1.msra.mxu0 %v1146
    %1326 = vmatprep.subr.mxu0 0.0
    %1327 = vmatpush1.msra.mxu0 %v1147
    %1328 = vmatprep.subr.mxu0 0.0
    %1329 = vmatpush1.msra.mxu0 %v1148
    %1330 = vmatprep.subr.mxu0 0.0
    %1331 = vmatpush1.msra.mxu0 %v1149
    %1332 = vmatprep.subr.mxu0 0.0
    %1333 = vmatpush1.msra.mxu0 0.0
    %1334 = vmatprep.subr.mxu0 0.0
    %1335 = vmatpush1.msra.mxu0 0.0
    %1336 = vmatprep.subr.mxu0 0.0
    %1337 = vmatpush1.msra.mxu0 0.0
    %1338 = vmatprep.subr.mxu0 0.0
    %1339 = vmatpush1.msra.mxu0 0.0
    %1340 = vmatprep.subr.mxu0 0.0
    %1341 = vmatpush1.msra.mxu0 0.0
    %1342 = vmatprep.subr.mxu0 0.0
    %1343 = vmatpush1.msra.mxu0 0.0
    %1344 = vmatprep.subr.mxu0 0.0
    %1345 = vmatpush1.msra.mxu0 0.0
    %1346 = vmatprep.subr.mxu0 0.0
    %1347 = vmatpush1.msra.mxu0 0.0
    %1348 = vmatprep.subr.mxu0 0.0
    %1349 = vmatpush1.msra.mxu0 0.0
    %1350 = vmatprep.subr.mxu0 0.0
    %1351 = vmatpush1.msra.mxu0 0.0
    %1352 = vmatprep.subr.mxu0 0.0
    %1353 = vmatpush1.msra.mxu0 0.0
    %1354 = vmatprep.subr.mxu0 0.0
    %1355 = vmatpush1.msra.mxu0 0.0
    %1356 = vmatprep.subr.mxu0 0.0
    %1357 = vmatpush1.msra.mxu0 0.0
    %1358 = vmatprep.subr.mxu0 0.0
    %1359 = vmatpush1.msra.mxu0 0.0
    %1360 = vmatprep.subr.mxu0 0.0
    %1361 = vmatpush1.msra.mxu0 0.0
    %1362 = vmatprep.subr.mxu0 0.0
    %1363 = vmatpush1.msra.mxu0 0.0
    %1364 = vmatprep.subr.mxu0 0.0
    %1365 = vmatpush1.msra.mxu0 0.0
    %1366 = vmatprep.subr.mxu0 0.0
    %1367 = vmatpush1.msra.mxu0 0.0
    %1368 = vmatprep.subr.mxu0 0.0
    %1369 = vmatpush1.msra.mxu0 0.0
    %1370 = vmatprep.subr.mxu0 0.0
    %1371 = vmatpush1.msra.mxu0 0.0
    %1372 = vmatprep.subr.mxu0 0.0
    %1373 = vmatpush1.msra.mxu0 0.0
    %1374 = vmatprep.subr.mxu0 0.0
    %1375 = vmatpush1.msra.mxu0 0.0
    %1376 = vmatprep.subr.mxu0 0.0
    %1377 = vmatpush1.msra.mxu0 0.0
    %1378 = vmatprep.subr.mxu0 0.0
    %1379 = vmatpush1.msra.mxu0 0.0
    %1380 = vmatprep.subr.mxu0 0.0
    %1381 = vmatpush1.msra.mxu0 0.0
    %1382 = vmatprep.subr.mxu0 0.0
    %1383 = vmatpush1.msra.mxu0 0.0
    %1384 = vmatprep.subr.mxu0 0.0
    %1385 = vmatpush1.msra.mxu0 0.0
    %1386 = vmatprep.subr.mxu0 0.0
    %1387 = vmatpush1.msra.mxu0 0.0
    %1388 = vmatprep.mubr.f32.mxu0 0.0
    %1389 = vmatmul.mubr.f32.gmra.mrb[0].mxu0 %v78
    %v1390 = vpop.f32.mrb[0].mxu0
    %v1391 = vadd.f32 %v1322, %v1390
    %v1392 = vpop.f32.mrb[0].mxu0
    %1393 = vmatprep.mubr.f32.mxu0 0.0
    %1394 = vmatmul.mubr.f32.gmra.mrb[0].mxu0 %v81
    %v1395 = vpop.f32.mrb[0].mxu0
    %v1396 = vadd.f32 %v1322, %v1395
    %v1397 = vpop.f32.mrb[0].mxu0
    %1398 = vdwg.mxu0
    %v1399 = vmul.f32 %v1229, 0.35355338
    %v1400 = vmul.f32 %v1234, 0.35355338
    %v1402 = vsel %vm322, %v1399, 0
    %v1405 = vsel %vm322, %v1400, 0
    %v1408 = vsel %vm322, %v1310, 0
    %v1411 = vsel %vm322, %v1315, 0
    %1413 = vmatprep.subr.mxu0 0.0
    %1414 = vmatpush1.xpose.msra.mxu0 %v1408
    %1415 = vmatprep.subr.mxu0 0.0
    %1416 = vmatpush1.xpose.msra.mxu0 %v1411
    %1417 = vmatprep.subr.mxu0 0.0
    %1418 = vmatpush1.xpose.msra.mxu0 0.0
    %1419 = vmatprep.subr.mxu0 0.0
    %1420 = vmatpush1.xpose.msra.mxu0 0.0
    %1421 = vmatprep.subr.mxu0 0.0
    %1422 = vmatpush1.xpose.msra.mxu0 0.0
    %1423 = vmatprep.subr.mxu0 0.0
    %1424 = vmatpush1.xpose.msra.mxu0 0.0
    %1425 = vmatprep.subr.mxu0 0.0
    %1426 = vmatpush1.xpose.msra.mxu0 0.0
    %1427 = vmatprep.subr.mxu0 0.0
    %1428 = vmatpush1.xpose.msra.mxu0 0.0
    %1429 = vmatprep.subr.mxu0 0.0
    %1430 = vmatpush1.xpose.msra.mxu0 0.0
    %1431 = vmatprep.subr.mxu0 0.0
    %1432 = vmatpush1.xpose.msra.mxu0 0.0
    %1433 = vmatprep.subr.mxu0 0.0
    %1434 = vmatpush1.xpose.msra.mxu0 0.0
    %1435 = vmatprep.subr.mxu0 0.0
    %1436 = vmatpush1.xpose.msra.mxu0 0.0
    %1437 = vmatprep.subr.mxu0 0.0
    %1438 = vmatpush1.xpose.msra.mxu0 0.0
    %1439 = vmatprep.subr.mxu0 0.0
    %1440 = vmatpush1.xpose.msra.mxu0 0.0
    %1441 = vmatprep.subr.mxu0 0.0
    %1442 = vmatpush1.xpose.msra.mxu0 0.0
    %1443 = vmatprep.subr.mxu0 0.0
    %1444 = vmatpush1.xpose.msra.mxu0 0.0
    %1445 = vmatprep.subr.mxu0 0.0
    %1446 = vmatpush1.xpose.msra.mxu0 0.0
    %1447 = vmatprep.subr.mxu0 0.0
    %1448 = vmatpush1.xpose.msra.mxu0 0.0
    %1449 = vmatprep.subr.mxu0 0.0
    %1450 = vmatpush1.xpose.msra.mxu0 0.0
    %1451 = vmatprep.subr.mxu0 0.0
    %1452 = vmatpush1.xpose.msra.mxu0 0.0
    %1453 = vmatprep.subr.mxu0 0.0
    %1454 = vmatpush1.xpose.msra.mxu0 0.0
    %1455 = vmatprep.subr.mxu0 0.0
    %1456 = vmatpush1.xpose.msra.mxu0 0.0
    %1457 = vmatprep.subr.mxu0 0.0
    %1458 = vmatpush1.xpose.msra.mxu0 0.0
    %1459 = vmatprep.subr.mxu0 0.0
    %1460 = vmatpush1.xpose.msra.mxu0 0.0
    %1461 = vmatprep.subr.mxu0 0.0
    %1462 = vmatpush1.xpose.msra.mxu0 0.0
    %1463 = vmatprep.subr.mxu0 0.0
    %1464 = vmatpush1.xpose.msra.mxu0 0.0
    %1465 = vmatprep.subr.mxu0 0.0
    %1466 = vmatpush1.xpose.msra.mxu0 0.0
    %1467 = vmatprep.subr.mxu0 0.0
    %1468 = vmatpush1.xpose.msra.mxu0 0.0
    %1469 = vmatprep.subr.mxu0 0.0
    %1470 = vmatpush1.xpose.msra.mxu0 0.0
    %1471 = vmatprep.subr.mxu0 0.0
    %1472 = vmatpush1.xpose.msra.mxu0 0.0
    %1473 = vmatprep.subr.mxu0 0.0
    %1474 = vmatpush1.xpose.msra.mxu0 0.0
    %1475 = vmatprep.subr.mxu0 0.0
    %1476 = vmatpush1.xpose.msra.mxu0 0.0
    %1477 = vmatprep.mubr.f32.mxu0 0.0
    %1478 = vmatmul.mubr.f32.gmra.mrb[0].mxu0 %v1402
    %v1479 = vpop.f32.mrb[0].mxu0
    %v1480 = vadd.f32 %v47, %v1479
    %v1481 = vpop.f32.mrb[0].mxu0
    %1482 = vmatprep.mubr.f32.mxu0 0.0
    %1483 = vmatmul.mubr.f32.gmra.mrb[0].mxu0 %v1405
    %v1484 = vpop.f32.mrb[0].mxu0
    %v1485 = vadd.f32 %v48, %v1484
    %v1486 = vpop.f32.mrb[0].mxu0
    %1487 = vdwg.mxu0
    %v1488 = vsel %vm410, %v1480, -inf
    %1489 = vmax.xlane.f32.xlu0 %v1488
    %v1490 = vpop.xlane.xlu0 %1489
    %v1491 = vsel %vm410, %v1485, -inf
    %1492 = vmax.xlane.f32.xlu0 %v1491
    %v1493 = vpop.xlane.xlu0 %1492
    %v1494 = vsub.f32 %v1480, %v1490
    %v1495 = vsub.f32 %v1485, %v1493
    %v1496 = vmul.f32 %v1494, 1.442695
    %v1497 = vpow.pop %v1496
    %v1498 = vmul.f32 %v1495, 1.442695
    %v1499 = vpow.pop %v1498
    %v1500 = vsel %vm410, %v1497, 0.0
    %1501 = vadd.xlane.f32.xlu0 %v1500
    %v1502 = vpop.xlane.xlu0 %1501
    %v1503 = vsel %vm410, %v1499, 0.0
    %1504 = vadd.xlane.f32.xlu0 %v1503
    %v1505 = vpop.xlane.xlu0 %1504
    %v1506 = vrcp.pop %v1502
    %v1507 = vrcp.pop %v1505
    %v1508 = vmul.f32 %v1497, %v1506
    %v1509 = vmul.f32 %v1499, %v1507
    %v1511 = vsel %vm410, %v1508, 0
    %v1514 = vsel %vm410, %v1509, 0
    %1516 = vmatprep.subr.mxu0 0.0
    %1517 = vmatpush1.msra.mxu0 %v1391
    %1518 = vmatprep.subr.mxu0 0.0
    %1519 = vmatpush1.msra.mxu0 %v1396
    %1520 = vmatprep.subr.mxu0 0.0
    %1521 = vmatpush1.msra.mxu0 0.0
    %1522 = vmatprep.subr.mxu0 0.0
    %1523 = vmatpush1.msra.mxu0 0.0
    %1524 = vmatprep.subr.mxu0 0.0
    %1525 = vmatpush1.msra.mxu0 0.0
    %1526 = vmatprep.subr.mxu0 0.0
    %1527 = vmatpush1.msra.mxu0 0.0
    %1528 = vmatprep.subr.mxu0 0.0
    %1529 = vmatpush1.msra.mxu0 0.0
    %1530 = vmatprep.subr.mxu0 0.0
    %1531 = vmatpush1.msra.mxu0 0.0
    %1532 = vmatprep.subr.mxu0 0.0
    %1533 = vmatpush1.msra.mxu0 0.0
    %1534 = vmatprep.subr.mxu0 0.0
    %1535 = vmatpush1.msra.mxu0 0.0
    %1536 = vmatprep.subr.mxu0 0.0
    %1537 = vmatpush1.msra.mxu0 0.0
    %1538 = vmatprep.subr.mxu0 0.0
    %1539 = vmatpush1.msra.mxu0 0.0
    %1540 = vmatprep.subr.mxu0 0.0
    %1541 = vmatpush1.msra.mxu0 0.0
    %1542 = vmatprep.subr.mxu0 0.0
    %1543 = vmatpush1.msra.mxu0 0.0
    %1544 = vmatprep.subr.mxu0 0.0
    %1545 = vmatpush1.msra.mxu0 0.0
    %1546 = vmatprep.subr.mxu0 0.0
    %1547 = vmatpush1.msra.mxu0 0.0
    %1548 = vmatprep.subr.mxu0 0.0
    %1549 = vmatpush1.msra.mxu0 0.0
    %1550 = vmatprep.subr.mxu0 0.0
    %1551 = vmatpush1.msra.mxu0 0.0
    %1552 = vmatprep.subr.mxu0 0.0
    %1553 = vmatpush1.msra.mxu0 0.0
    %1554 = vmatprep.subr.mxu0 0.0
    %1555 = vmatpush1.msra.mxu0 0.0
    %1556 = vmatprep.subr.mxu0 0.0
    %1557 = vmatpush1.msra.mxu0 0.0
    %1558 = vmatprep.subr.mxu0 0.0
    %1559 = vmatpush1.msra.mxu0 0.0
    %1560 = vmatprep.subr.mxu0 0.0
    %1561 = vmatpush1.msra.mxu0 0.0
    %1562 = vmatprep.subr.mxu0 0.0
    %1563 = vmatpush1.msra.mxu0 0.0
    %1564 = vmatprep.subr.mxu0 0.0
    %1565 = vmatpush1.msra.mxu0 0.0
    %1566 = vmatprep.subr.mxu0 0.0
    %1567 = vmatpush1.msra.mxu0 0.0
    %1568 = vmatprep.subr.mxu0 0.0
    %1569 = vmatpush1.msra.mxu0 0.0
    %1570 = vmatprep.subr.mxu0 0.0
    %1571 = vmatpush1.msra.mxu0 0.0
    %1572 = vmatprep.subr.mxu0 0.0
    %1573 = vmatpush1.msra.mxu0 0.0
    %1574 = vmatprep.subr.mxu0 0.0
    %1575 = vmatpush1.msra.mxu0 0.0
    %1576 = vmatprep.subr.mxu0 0.0
    %1577 = vmatpush1.msra.mxu0 0.0
    %1578 = vmatprep.subr.mxu0 0.0
    %1579 = vmatpush1.msra.mxu0 0.0
    %1580 = vmatprep.mubr.f32.mxu0 0.0
    %1581 = vmatmul.mubr.f32.gmra.mrb[0].mxu0 %v1511
    %v1582 = vpop.f32.mrb[0].mxu0
    %v1583 = vadd.f32 0.0, %v1582
    %v1584 = vpop.f32.mrb[0].mxu0
    %1585 = vmatprep.mubr.f32.mxu0 0.0
    %1586 = vmatmul.mubr.f32.gmra.mrb[0].mxu0 %v1514
    %v1587 = vpop.f32.mrb[0].mxu0
    %v1588 = vadd.f32 0.0, %v1587
    %v1589 = vpop.f32.mrb[0].mxu0
    %1590 = vdwg.mxu0
    %s1591 = scalar_lea.vmem %s5, 16
    %v1592 = vld [vmem:[%s1591] sm:$0xff]
    %v1594 = vsel %vm322, %v1583, 0
    %v1597 = vsel %vm322, %v1588, 0
    %1599 = vmatprep.subr.mxu0 0.0
    %1600 = vmatpush1.msra.mxu0 %v1592
    %1601 = vmatprep.subr.mxu0 0.0
    %1602 = vmatpush1.msra.mxu0 0.0
    %1603 = vmatprep.subr.mxu0 0.0
    %1604 = vmatpush1.msra.mxu0 0.0
    %1605 = vmatprep.subr.mxu0 0.0
    %1606 = vmatpush1.msra.mxu0 0.0
    %1607 = vmatprep.subr.mxu0 0.0
    %1608 = vmatpush1.msra.mxu0 0.0
    %1609 = vmatprep.subr.mxu0 0.0
    %1610 = vmatpush1.msra.mxu0 0.0
    %1611 = vmatprep.subr.mxu0 0.0
    %1612 = vmatpush1.msra.mxu0 0.0
    %1613 = vmatprep.subr.mxu0 0.0
    %1614 = vmatpush1.msra.mxu0 0.0
    %1615 = vmatprep.subr.mxu0 0.0
    %1616 = vmatpush1.msra.mxu0 0.0
    %1617 = vmatprep.subr.mxu0 0.0
    %1618 = vmatpush1.msra.mxu0 0.0
    %1619 = vmatprep.subr.mxu0 0.0
    %1620 = vmatpush1.msra.mxu0 0.0
    %1621 = vmatprep.subr.mxu0 0.0
    %1622 = vmatpush1.msra.mxu0 0.0
    %1623 = vmatprep.subr.mxu0 0.0
    %1624 = vmatpush1.msra.mxu0 0.0
    %1625 = vmatprep.subr.mxu0 0.0
    %1626 = vmatpush1.msra.mxu0 0.0
    %1627 = vmatprep.subr.mxu0 0.0
    %1628 = vmatpush1.msra.mxu0 0.0
    %1629 = vmatprep.subr.mxu0 0.0
    %1630 = vmatpush1.msra.mxu0 0.0
    %1631 = vmatprep.subr.mxu0 0.0
    %1632 = vmatpush1.msra.mxu0 0.0
    %1633 = vmatprep.subr.mxu0 0.0
    %1634 = vmatpush1.msra.mxu0 0.0
    %1635 = vmatprep.subr.mxu0 0.0
    %1636 = vmatpush1.msra.mxu0 0.0
    %1637 = vmatprep.subr.mxu0 0.0
    %1638 = vmatpush1.msra.mxu0 0.0
    %1639 = vmatprep.subr.mxu0 0.0
    %1640 = vmatpush1.msra.mxu0 0.0
    %1641 = vmatprep.subr.mxu0 0.0
    %1642 = vmatpush1.msra.mxu0 0.0
    %1643 = vmatprep.subr.mxu0 0.0
    %1644 = vmatpush1.msra.mxu0 0.0
    %1645 = vmatprep.subr.mxu0 0.0
    %1646 = vmatpush1.msra.mxu0 0.0
    %1647 = vmatprep.subr.mxu0 0.0
    %1648 = vmatpush1.msra.mxu0 0.0
    %1649 = vmatprep.subr.mxu0 0.0
    %1650 = vmatpush1.msra.mxu0 0.0
    %1651 = vmatprep.subr.mxu0 0.0
    %1652 = vmatpush1.msra.mxu0 0.0
    %1653 = vmatprep.subr.mxu0 0.0
    %1654 = vmatpush1.msra.mxu0 0.0
    %1655 = vmatprep.subr.mxu0 0.0
    %1656 = vmatpush1.msra.mxu0 0.0
    %1657 = vmatprep.subr.mxu0 0.0
    %1658 = vmatpush1.msra.mxu0 0.0
    %1659 = vmatprep.subr.mxu0 0.0
    %1660 = vmatpush1.msra.mxu0 0.0
    %1661 = vmatprep.subr.mxu0 0.0
    %1662 = vmatpush1.msra.mxu0 0.0
    %1663 = vmatprep.mubr.f32.mxu0 0.0
    %1664 = vmatmul.mubr.f32.gmra.mrb[0].mxu0 %v1594
    %v1665 = vpop.f32.mrb[0].mxu0
    %v1666 = vadd.f32 0.0, %v1665
    %v1667 = vpop.f32.mrb[0].mxu0
    %1668 = vmatprep.mubr.f32.mxu0 0.0
    %1669 = vmatmul.mubr.f32.gmra.mrb[0].mxu0 %v1597
    %v1670 = vpop.f32.mrb[0].mxu0
    %v1671 = vadd.f32 0.0, %v1670
    %v1672 = vpop.f32.mrb[0].mxu0
    %1673 = vdwg.mxu0
    %v1674 = vadd.f32 %v1127, %v1666
    %v1675 = vadd.f32 %v1132, %v1671
    %s1676 = scalar_lea.vmem %s3, 96
    %v1677 = vld [vmem:[%s1676] sm:$0xff]
    %v1678 = vld [vmem:[%s1676 + $0x8] sm:$0xff]
    %v1679 = vld [vmem:[%s1676 + $0x10] sm:$0xff]
    %v1680 = vld [vmem:[%s1676 + $0x18] sm:$0xff]
    %s1681 = scalar_lea.vmem %s3, 224
    %v1682 = vld [vmem:[%s1681] sm:$0xff]
    %v1683 = vld [vmem:[%s1681 + $0x8] sm:$0xff]
    %v1684 = vld [vmem:[%s1681 + $0x10] sm:$0xff]
    %v1685 = vld [vmem:[%s1681 + $0x18] sm:$0xff]
    %s1686 = scalar_lea.vmem %s3, 352
    %v1687 = vld [vmem:[%s1686] sm:$0xff]
    %v1688 = vld [vmem:[%s1686 + $0x8] sm:$0xff]
    %v1689 = vld [vmem:[%s1686 + $0x10] sm:$0xff]
    %v1690 = vld [vmem:[%s1686 + $0x18] sm:$0xff]
    %s1691 = scalar_lea.vmem %s4, 3
    %v1692 = vld [vmem:[%s1691] sm:$0x1]
    %s1693 = scalar_lea.vmem %s4, 7
    %v1694 = vld [vmem:[%s1693] sm:$0x1]
    %s1695 = scalar_lea.vmem %s4, 11
    %v1696 = vld [vmem:[%s1695] sm:$0x1]
    %v1698 = vlaneseq
    %v1699 = vshrl.u32 %v1698, 7
    %v1700 = vsub.s32 0, %v1699
    %v1701 = vrot.slane %v1692, %v1700
    %1703 = vmatprep.subr.mxu0 0.0
    %1704 = vmatpush1.msra.mxu0 %v1677
    %1705 = vmatprep.subr.mxu0 0.0
    %1706 = vmatpush1.msra.mxu0 %v1678
    %1707 = vmatprep.subr.mxu0 0.0
    %1708 = vmatpush1.msra.mxu0 %v1679
    %1709 = vmatprep.subr.mxu0 0.0
    %1710 = vmatpush1.msra.mxu0 %v1680
    %1711 = vmatprep.subr.mxu0 0.0
    %1712 = vmatpush1.msra.mxu0 0.0
    %1713 = vmatprep.subr.mxu0 0.0
    %1714 = vmatpush1.msra.mxu0 0.0
    %1715 = vmatprep.subr.mxu0 0.0
    %1716 = vmatpush1.msra.mxu0 0.0
    %1717 = vmatprep.subr.mxu0 0.0
    %1718 = vmatpush1.msra.mxu0 0.0
    %1719 = vmatprep.subr.mxu0 0.0
    %1720 = vmatpush1.msra.mxu0 0.0
    %1721 = vmatprep.subr.mxu0 0.0
    %1722 = vmatpush1.msra.mxu0 0.0
    %1723 = vmatprep.subr.mxu0 0.0
    %1724 = vmatpush1.msra.mxu0 0.0
    %1725 = vmatprep.subr.mxu0 0.0
    %1726 = vmatpush1.msra.mxu0 0.0
    %1727 = vmatprep.subr.mxu0 0.0
    %1728 = vmatpush1.msra.mxu0 0.0
    %1729 = vmatprep.subr.mxu0 0.0
    %1730 = vmatpush1.msra.mxu0 0.0
    %1731 = vmatprep.subr.mxu0 0.0
    %1732 = vmatpush1.msra.mxu0 0.0
    %1733 = vmatprep.subr.mxu0 0.0
    %1734 = vmatpush1.msra.mxu0 0.0
    %1735 = vmatprep.subr.mxu0 0.0
    %1736 = vmatpush1.msra.mxu0 0.0
    %1737 = vmatprep.subr.mxu0 0.0
    %1738 = vmatpush1.msra.mxu0 0.0
    %1739 = vmatprep.subr.mxu0 0.0
    %1740 = vmatpush1.msra.mxu0 0.0
    %1741 = vmatprep.subr.mxu0 0.0
    %1742 = vmatpush1.msra.mxu0 0.0
    %1743 = vmatprep.subr.mxu0 0.0
    %1744 = vmatpush1.msra.mxu0 0.0
    %1745 = vmatprep.subr.mxu0 0.0
    %1746 = vmatpush1.msra.mxu0 0.0
    %1747 = vmatprep.subr.mxu0 0.0
    %1748 = vmatpush1.msra.mxu0 0.0
    %1749 = vmatprep.subr.mxu0 0.0
    %1750 = vmatpush1.msra.mxu0 0.0
    %1751 = vmatprep.subr.mxu0 0.0
    %1752 = vmatpush1.msra.mxu0 0.0
    %1753 = vmatprep.subr.mxu0 0.0
    %1754 = vmatpush1.msra.mxu0 0.0
    %1755 = vmatprep.subr.mxu0 0.0
    %1756 = vmatpush1.msra.mxu0 0.0
    %1757 = vmatprep.subr.mxu0 0.0
    %1758 = vmatpush1.msra.mxu0 0.0
    %1759 = vmatprep.subr.mxu0 0.0
    %1760 = vmatpush1.msra.mxu0 0.0
    %1761 = vmatprep.subr.mxu0 0.0
    %1762 = vmatpush1.msra.mxu0 0.0
    %1763 = vmatprep.subr.mxu0 0.0
    %1764 = vmatpush1.msra.mxu0 0.0
    %1765 = vmatprep.subr.mxu0 0.0
    %1766 = vmatpush1.msra.mxu0 0.0
    %1767 = vmatprep.mubr.f32.mxu0 0.0
    %1768 = vmatmul.mubr.f32.gmra.mrb[0].mxu0 %v78
    %v1769 = vpop.f32.mrb[0].mxu0
    %v1770 = vadd.f32 %v1701, %v1769
    %v1771 = vpop.f32.mrb[0].mxu0
    %1772 = vmatprep.mubr.f32.mxu0 0.0
    %1773 = vmatmul.mubr.f32.gmra.mrb[0].mxu0 %v81
    %v1774 = vpop.f32.mrb[0].mxu0
    %v1775 = vadd.f32 %v1701, %v1774
    %v1776 = vpop.f32.mrb[0].mxu0
    %1777 = vdwg.mxu0
    %v1779 = vlaneseq
    %v1780 = vshrl.u32 %v1779, 7
    %v1781 = vsub.s32 0, %v1780
    %v1782 = vrot.slane %v1694, %v1781
    %1784 = vmatprep.subr.mxu0 0.0
    %1785 = vmatpush1.msra.mxu0 %v1682
    %1786 = vmatprep.subr.mxu0 0.0
    %1787 = vmatpush1.msra.mxu0 %v1683
    %1788 = vmatprep.subr.mxu0 0.0
    %1789 = vmatpush1.msra.mxu0 %v1684
    %1790 = vmatprep.subr.mxu0 0.0
    %1791 = vmatpush1.msra.mxu0 %v1685
    %1792 = vmatprep.subr.mxu0 0.0
    %1793 = vmatpush1.msra.mxu0 0.0
    %1794 = vmatprep.subr.mxu0 0.0
    %1795 = vmatpush1.msra.mxu0 0.0
    %1796 = vmatprep.subr.mxu0 0.0
    %1797 = vmatpush1.msra.mxu0 0.0
    %1798 = vmatprep.subr.mxu0 0.0
    %1799 = vmatpush1.msra.mxu0 0.0
    %1800 = vmatprep.subr.mxu0 0.0
    %1801 = vmatpush1.msra.mxu0 0.0
    %1802 = vmatprep.subr.mxu0 0.0
    %1803 = vmatpush1.msra.mxu0 0.0
    %1804 = vmatprep.subr.mxu0 0.0
    %1805 = vmatpush1.msra.mxu0 0.0
    %1806 = vmatprep.subr.mxu0 0.0
    %1807 = vmatpush1.msra.mxu0 0.0
    %1808 = vmatprep.subr.mxu0 0.0
    %1809 = vmatpush1.msra.mxu0 0.0
    %1810 = vmatprep.subr.mxu0 0.0
    %1811 = vmatpush1.msra.mxu0 0.0
    %1812 = vmatprep.subr.mxu0 0.0
    %1813 = vmatpush1.msra.mxu0 0.0
    %1814 = vmatprep.subr.mxu0 0.0
    %1815 = vmatpush1.msra.mxu0 0.0
    %1816 = vmatprep.subr.mxu0 0.0
    %1817 = vmatpush1.msra.mxu0 0.0
    %1818 = vmatprep.subr.mxu0 0.0
    %1819 = vmatpush1.msra.mxu0 0.0
    %1820 = vmatprep.subr.mxu0 0.0
    %1821 = vmatpush1.msra.mxu0 0.0
    %1822 = vmatprep.subr.mxu0 0.0
    %1823 = vmatpush1.msra.mxu0 0.0
    %1824 = vmatprep.subr.mxu0 0.0
    %1825 = vmatpush1.msra.mxu0 0.0
    %1826 = vmatprep.subr.mxu0 0.0
    %1827 = vmatpush1.msra.mxu0 0.0
    %1828 = vmatprep.subr.mxu0 0.0
    %1829 = vmatpush1.msra.mxu0 0.0
    %1830 = vmatprep.subr.mxu0 0.0
    %1831 = vmatpush1.msra.mxu0 0.0
    %1832 = vmatprep.subr.mxu0 0.0
    %1833 = vmatpush1.msra.mxu0 0.0
    %1834 = vmatprep.subr.mxu0 0.0
    %1835 = vmatpush1.msra.mxu0 0.0
    %1836 = vmatprep.subr.mxu0 0.0
    %1837 = vmatpush1.msra.mxu0 0.0
    %1838 = vmatprep.subr.mxu0 0.0
    %1839 = vmatpush1.msra.mxu0 0.0
    %1840 = vmatprep.subr.mxu0 0.0
    %1841 = vmatpush1.msra.mxu0 0.0
    %1842 = vmatprep.subr.mxu0 0.0
    %1843 = vmatpush1.msra.mxu0 0.0
    %1844 = vmatprep.subr.mxu0 0.0
    %1845 = vmatpush1.msra.mxu0 0.0
    %1846 = vmatprep.subr.mxu0 0.0
    %1847 = vmatpush1.msra.mxu0 0.0
    %1848 = vmatprep.mubr.f32.mxu0 0.0
    %1849 = vmatmul.mubr.f32.gmra.mrb[0].mxu0 %v78
    %v1850 = vpop.f32.mrb[0].mxu0
    %v1851 = vadd.f32 %v1782, %v1850
    %v1852 = vpop.f32.mrb[0].mxu0
    %1853 = vmatprep.mubr.f32.mxu0 0.0
    %1854 = vmatmul.mubr.f32.gmra.mrb[0].mxu0 %v81
    %v1855 = vpop.f32.mrb[0].mxu0
    %v1856 = vadd.f32 %v1782, %v1855
    %v1857 = vpop.f32.mrb[0].mxu0
    %1858 = vdwg.mxu0
    %v1860 = vlaneseq
    %v1861 = vshrl.u32 %v1860, 7
    %v1862 = vsub.s32 0, %v1861
    %v1863 = vrot.slane %v1696, %v1862
    %1865 = vmatprep.subr.mxu0 0.0
    %1866 = vmatpush1.msra.mxu0 %v1687
    %1867 = vmatprep.subr.mxu0 0.0
    %1868 = vmatpush1.msra.mxu0 %v1688
    %1869 = vmatprep.subr.mxu0 0.0
    %1870 = vmatpush1.msra.mxu0 %v1689
    %1871 = vmatprep.subr.mxu0 0.0
    %1872 = vmatpush1.msra.mxu0 %v1690
    %1873 = vmatprep.subr.mxu0 0.0
    %1874 = vmatpush1.msra.mxu0 0.0
    %1875 = vmatprep.subr.mxu0 0.0
    %1876 = vmatpush1.msra.mxu0 0.0
    %1877 = vmatprep.subr.mxu0 0.0
    %1878 = vmatpush1.msra.mxu0 0.0
    %1879 = vmatprep.subr.mxu0 0.0
    %1880 = vmatpush1.msra.mxu0 0.0
    %1881 = vmatprep.subr.mxu0 0.0
    %1882 = vmatpush1.msra.mxu0 0.0
    %1883 = vmatprep.subr.mxu0 0.0
    %1884 = vmatpush1.msra.mxu0 0.0
    %1885 = vmatprep.subr.mxu0 0.0
    %1886 = vmatpush1.msra.mxu0 0.0
    %1887 = vmatprep.subr.mxu0 0.0
    %1888 = vmatpush1.msra.mxu0 0.0
    %1889 = vmatprep.subr.mxu0 0.0
    %1890 = vmatpush1.msra.mxu0 0.0
    %1891 = vmatprep.subr.mxu0 0.0
    %1892 = vmatpush1.msra.mxu0 0.0
    %1893 = vmatprep.subr.mxu0 0.0
    %1894 = vmatpush1.msra.mxu0 0.0
    %1895 = vmatprep.subr.mxu0 0.0
    %1896 = vmatpush1.msra.mxu0 0.0
    %1897 = vmatprep.subr.mxu0 0.0
    %1898 = vmatpush1.msra.mxu0 0.0
    %1899 = vmatprep.subr.mxu0 0.0
    %1900 = vmatpush1.msra.mxu0 0.0
    %1901 = vmatprep.subr.mxu0 0.0
    %1902 = vmatpush1.msra.mxu0 0.0
    %1903 = vmatprep.subr.mxu0 0.0
    %1904 = vmatpush1.msra.mxu0 0.0
    %1905 = vmatprep.subr.mxu0 0.0
    %1906 = vmatpush1.msra.mxu0 0.0
    %1907 = vmatprep.subr.mxu0 0.0
    %1908 = vmatpush1.msra.mxu0 0.0
    %1909 = vmatprep.subr.mxu0 0.0
    %1910 = vmatpush1.msra.mxu0 0.0
    %1911 = vmatprep.subr.mxu0 0.0
    %1912 = vmatpush1.msra.mxu0 0.0
    %1913 = vmatprep.subr.mxu0 0.0
    %1914 = vmatpush1.msra.mxu0 0.0
    %1915 = vmatprep.subr.mxu0 0.0
    %1916 = vmatpush1.msra.mxu0 0.0
    %1917 = vmatprep.subr.mxu0 0.0
    %1918 = vmatpush1.msra.mxu0 0.0
    %1919 = vmatprep.subr.mxu0 0.0
    %1920 = vmatpush1.msra.mxu0 0.0
    %1921 = vmatprep.subr.mxu0 0.0
    %1922 = vmatpush1.msra.mxu0 0.0
    %1923 = vmatprep.subr.mxu0 0.0
    %1924 = vmatpush1.msra.mxu0 0.0
    %1925 = vmatprep.subr.mxu0 0.0
    %1926 = vmatpush1.msra.mxu0 0.0
    %1927 = vmatprep.subr.mxu0 0.0
    %1928 = vmatpush1.msra.mxu0 0.0
    %1929 = vmatprep.mubr.f32.mxu0 0.0
    %1930 = vmatmul.mubr.f32.gmra.mrb[0].mxu0 %v78
    %v1931 = vpop.f32.mrb[0].mxu0
    %v1932 = vadd.f32 %v1863, %v1931
    %v1933 = vpop.f32.mrb[0].mxu0
    %1934 = vmatprep.mubr.f32.mxu0 0.0
    %1935 = vmatmul.mubr.f32.gmra.mrb[0].mxu0 %v81
    %v1936 = vpop.f32.mrb[0].mxu0
    %v1937 = vadd.f32 %v1863, %v1936
    %v1938 = vpop.f32.mrb[0].mxu0
    %1939 = vdwg.mxu0
    %v1940 = vmul.f32 %v1770, 0.35355338
    %v1941 = vmul.f32 %v1775, 0.35355338
    %v1943 = vsel %vm322, %v1940, 0
    %v1946 = vsel %vm322, %v1941, 0
    %v1949 = vsel %vm322, %v1851, 0
    %v1952 = vsel %vm322, %v1856, 0
    %1954 = vmatprep.subr.mxu0 0.0
    %1955 = vmatpush1.xpose.msra.mxu0 %v1949
    %1956 = vmatprep.subr.mxu0 0.0
    %1957 = vmatpush1.xpose.msra.mxu0 %v1952
    %1958 = vmatprep.subr.mxu0 0.0
    %1959 = vmatpush1.xpose.msra.mxu0 0.0
    %1960 = vmatprep.subr.mxu0 0.0
    %1961 = vmatpush1.xpose.msra.mxu0 0.0
    %1962 = vmatprep.subr.mxu0 0.0
    %1963 = vmatpush1.xpose.msra.mxu0 0.0
    %1964 = vmatprep.subr.mxu0 0.0
    %1965 = vmatpush1.xpose.msra.mxu0 0.0
    %1966 = vmatprep.subr.mxu0 0.0
    %1967 = vmatpush1.xpose.msra.mxu0 0.0
    %1968 = vmatprep.subr.mxu0 0.0
    %1969 = vmatpush1.xpose.msra.mxu0 0.0
    %1970 = vmatprep.subr.mxu0 0.0
    %1971 = vmatpush1.xpose.msra.mxu0 0.0
    %1972 = vmatprep.subr.mxu0 0.0
    %1973 = vmatpush1.xpose.msra.mxu0 0.0
    %1974 = vmatprep.subr.mxu0 0.0
    %1975 = vmatpush1.xpose.msra.mxu0 0.0
    %1976 = vmatprep.subr.mxu0 0.0
    %1977 = vmatpush1.xpose.msra.mxu0 0.0
    %1978 = vmatprep.subr.mxu0 0.0
    %1979 = vmatpush1.xpose.msra.mxu0 0.0
    %1980 = vmatprep.subr.mxu0 0.0
    %1981 = vmatpush1.xpose.msra.mxu0 0.0
    %1982 = vmatprep.subr.mxu0 0.0
    %1983 = vmatpush1.xpose.msra.mxu0 0.0
    %1984 = vmatprep.subr.mxu0 0.0
    %1985 = vmatpush1.xpose.msra.mxu0 0.0
    %1986 = vmatprep.subr.mxu0 0.0
    %1987 = vmatpush1.xpose.msra.mxu0 0.0
    %1988 = vmatprep.subr.mxu0 0.0
    %1989 = vmatpush1.xpose.msra.mxu0 0.0
    %1990 = vmatprep.subr.mxu0 0.0
    %1991 = vmatpush1.xpose.msra.mxu0 0.0
    %1992 = vmatprep.subr.mxu0 0.0
    %1993 = vmatpush1.xpose.msra.mxu0 0.0
    %1994 = vmatprep.subr.mxu0 0.0
    %1995 = vmatpush1.xpose.msra.mxu0 0.0
    %1996 = vmatprep.subr.mxu0 0.0
    %1997 = vmatpush1.xpose.msra.mxu0 0.0
    %1998 = vmatprep.subr.mxu0 0.0
    %1999 = vmatpush1.xpose.msra.mxu0 0.0
    %2000 = vmatprep.subr.mxu0 0.0
    %2001 = vmatpush1.xpose.msra.mxu0 0.0
    %2002 = vmatprep.subr.mxu0 0.0
    %2003 = vmatpush1.xpose.msra.mxu0 0.0
    %2004 = vmatprep.subr.mxu0 0.0
    %2005 = vmatpush1.xpose.msra.mxu0 0.0
    %2006 = vmatprep.subr.mxu0 0.0
    %2007 = vmatpush1.xpose.msra.mxu0 0.0
    %2008 = vmatprep.subr.mxu0 0.0
    %2009 = vmatpush1.xpose.msra.mxu0 0.0
    %2010 = vmatprep.subr.mxu0 0.0
    %2011 = vmatpush1.xpose.msra.mxu0 0.0
    %2012 = vmatprep.subr.mxu0 0.0
    %2013 = vmatpush1.xpose.msra.mxu0 0.0
    %2014 = vmatprep.subr.mxu0 0.0
    %2015 = vmatpush1.xpose.msra.mxu0 0.0
    %2016 = vmatprep.subr.mxu0 0.0
    %2017 = vmatpush1.xpose.msra.mxu0 0.0
    %2018 = vmatprep.mubr.f32.mxu0 0.0
    %2019 = vmatmul.mubr.f32.gmra.mrb[0].mxu0 %v1943
    %v2020 = vpop.f32.mrb[0].mxu0
    %v2021 = vadd.f32 %v47, %v2020
    %v2022 = vpop.f32.mrb[0].mxu0
    %2023 = vmatprep.mubr.f32.mxu0 0.0
    %2024 = vmatmul.mubr.f32.gmra.mrb[0].mxu0 %v1946
    %v2025 = vpop.f32.mrb[0].mxu0
    %v2026 = vadd.f32 %v48, %v2025
    %v2027 = vpop.f32.mrb[0].mxu0
    %2028 = vdwg.mxu0
    %v2029 = vsel %vm410, %v2021, -inf
    %2030 = vmax.xlane.f32.xlu0 %v2029
    %v2031 = vpop.xlane.xlu0 %2030
    %v2032 = vsel %vm410, %v2026, -inf
    %2033 = vmax.xlane.f32.xlu0 %v2032
    %v2034 = vpop.xlane.xlu0 %2033
    %v2035 = vsub.f32 %v2021, %v2031
    %v2036 = vsub.f32 %v2026, %v2034
    %v2037 = vmul.f32 %v2035, 1.442695
    %v2038 = vpow.pop %v2037
    %v2039 = vmul.f32 %v2036, 1.442695
    %v2040 = vpow.pop %v2039
    %v2041 = vsel %vm410, %v2038, 0.0
    %2042 = vadd.xlane.f32.xlu0 %v2041
    %v2043 = vpop.xlane.xlu0 %2042
    %v2044 = vsel %vm410, %v2040, 0.0
    %2045 = vadd.xlane.f32.xlu0 %v2044
    %v2046 = vpop.xlane.xlu0 %2045
    %v2047 = vrcp.pop %v2043
    %v2048 = vrcp.pop %v2046
    %v2049 = vmul.f32 %v2038, %v2047
    %v2050 = vmul.f32 %v2040, %v2048
    %v2052 = vsel %vm410, %v2049, 0
    %v2055 = vsel %vm410, %v2050, 0
    %2057 = vmatprep.subr.mxu0 0.0
    %2058 = vmatpush1.msra.mxu0 %v1932
    %2059 = vmatprep.subr.mxu0 0.0
    %2060 = vmatpush1.msra.mxu0 %v1937
    %2061 = vmatprep.subr.mxu0 0.0
    %2062 = vmatpush1.msra.mxu0 0.0
    %2063 = vmatprep.subr.mxu0 0.0
    %2064 = vmatpush1.msra.mxu0 0.0
    %2065 = vmatprep.subr.mxu0 0.0
    %2066 = vmatpush1.msra.mxu0 0.0
    %2067 = vmatprep.subr.mxu0 0.0
    %2068 = vmatpush1.msra.mxu0 0.0
    %2069 = vmatprep.subr.mxu0 0.0
    %2070 = vmatpush1.msra.mxu0 0.0
    %2071 = vmatprep.subr.mxu0 0.0
    %2072 = vmatpush1.msra.mxu0 0.0
    %2073 = vmatprep.subr.mxu0 0.0
    %2074 = vmatpush1.msra.mxu0 0.0
    %2075 = vmatprep.subr.mxu0 0.0
    %2076 = vmatpush1.msra.mxu0 0.0
    %2077 = vmatprep.subr.mxu0 0.0
    %2078 = vmatpush1.msra.mxu0 0.0
    %2079 = vmatprep.subr.mxu0 0.0
    %2080 = vmatpush1.msra.mxu0 0.0
    %2081 = vmatprep.subr.mxu0 0.0
    %2082 = vmatpush1.msra.mxu0 0.0
    %2083 = vmatprep.subr.mxu0 0.0
    %2084 = vmatpush1.msra.mxu0 0.0
    %2085 = vmatprep.subr.mxu0 0.0
    %2086 = vmatpush1.msra.mxu0 0.0
    %2087 = vmatprep.subr.mxu0 0.0
    %2088 = vmatpush1.msra.mxu0 0.0
    %2089 = vmatprep.subr.mxu0 0.0
    %2090 = vmatpush1.msra.mxu0 0.0
    %2091 = vmatprep.subr.mxu0 0.0
    %2092 = vmatpush1.msra.mxu0 0.0
    %2093 = vmatprep.subr.mxu0 0.0
    %2094 = vmatpush1.msra.mxu0 0.0
    %2095 = vmatprep.subr.mxu0 0.0
    %2096 = vmatpush1.msra.mxu0 0.0
    %2097 = vmatprep.subr.mxu0 0.0
    %2098 = vmatpush1.msra.mxu0 0.0
    %2099 = vmatprep.subr.mxu0 0.0
    %2100 = vmatpush1.msra.mxu0 0.0
    %2101 = vmatprep.subr.mxu0 0.0
    %2102 = vmatpush1.msra.mxu0 0.0
    %2103 = vmatprep.subr.mxu0 0.0
    %2104 = vmatpush1.msra.mxu0 0.0
    %2105 = vmatprep.subr.mxu0 0.0
    %2106 = vmatpush1.msra.mxu0 0.0
    %2107 = vmatprep.subr.mxu0 0.0
    %2108 = vmatpush1.msra.mxu0 0.0
    %2109 = vmatprep.subr.mxu0 0.0
    %2110 = vmatpush1.msra.mxu0 0.0
    %2111 = vmatprep.subr.mxu0 0.0
    %2112 = vmatpush1.msra.mxu0 0.0
    %2113 = vmatprep.subr.mxu0 0.0
    %2114 = vmatpush1.msra.mxu0 0.0
    %2115 = vmatprep.subr.mxu0 0.0
    %2116 = vmatpush1.msra.mxu0 0.0
    %2117 = vmatprep.subr.mxu0 0.0
    %2118 = vmatpush1.msra.mxu0 0.0
    %2119 = vmatprep.subr.mxu0 0.0
    %2120 = vmatpush1.msra.mxu0 0.0
    %2121 = vmatprep.mubr.f32.mxu0 0.0
    %2122 = vmatmul.mubr.f32.gmra.mrb[0].mxu0 %v2052
    %v2123 = vpop.f32.mrb[0].mxu0
    %v2124 = vadd.f32 0.0, %v2123
    %v2125 = vpop.f32.mrb[0].mxu0
    %2126 = vmatprep.mubr.f32.mxu0 0.0
    %2127 = vmatmul.mubr.f32.gmra.mrb[0].mxu0 %v2055
    %v2128 = vpop.f32.mrb[0].mxu0
    %v2129 = vadd.f32 0.0, %v2128
    %v2130 = vpop.f32.mrb[0].mxu0
    %2131 = vdwg.mxu0
    %s2132 = scalar_lea.vmem %s5, 24
    %v2133 = vld [vmem:[%s2132] sm:$0xff]
    %v2135 = vsel %vm322, %v2124, 0
    %v2138 = vsel %vm322, %v2129, 0
    %2140 = vmatprep.subr.mxu0 0.0
    %2141 = vmatpush1.msra.mxu0 %v2133
    %2142 = vmatprep.subr.mxu0 0.0
    %2143 = vmatpush1.msra.mxu0 0.0
    %2144 = vmatprep.subr.mxu0 0.0
    %2145 = vmatpush1.msra.mxu0 0.0
    %2146 = vmatprep.subr.mxu0 0.0
    %2147 = vmatpush1.msra.mxu0 0.0
    %2148 = vmatprep.subr.mxu0 0.0
    %2149 = vmatpush1.msra.mxu0 0.0
    %2150 = vmatprep.subr.mxu0 0.0
    %2151 = vmatpush1.msra.mxu0 0.0
    %2152 = vmatprep.subr.mxu0 0.0
    %2153 = vmatpush1.msra.mxu0 0.0
    %2154 = vmatprep.subr.mxu0 0.0
    %2155 = vmatpush1.msra.mxu0 0.0
    %2156 = vmatprep.subr.mxu0 0.0
    %2157 = vmatpush1.msra.mxu0 0.0
    %2158 = vmatprep.subr.mxu0 0.0
    %2159 = vmatpush1.msra.mxu0 0.0
    %2160 = vmatprep.subr.mxu0 0.0
    %2161 = vmatpush1.msra.mxu0 0.0
    %2162 = vmatprep.subr.mxu0 0.0
    %2163 = vmatpush1.msra.mxu0 0.0
    %2164 = vmatprep.subr.mxu0 0.0
    %2165 = vmatpush1.msra.mxu0 0.0
    %2166 = vmatprep.subr.mxu0 0.0
    %2167 = vmatpush1.msra.mxu0 0.0
    %2168 = vmatprep.subr.mxu0 0.0
    %2169 = vmatpush1.msra.mxu0 0.0
    %2170 = vmatprep.subr.mxu0 0.0
    %2171 = vmatpush1.msra.mxu0 0.0
    %2172 = vmatprep.subr.mxu0 0.0
    %2173 = vmatpush1.msra.mxu0 0.0
    %2174 = vmatprep.subr.mxu0 0.0
    %2175 = vmatpush1.msra.mxu0 0.0
    %2176 = vmatprep.subr.mxu0 0.0
    %2177 = vmatpush1.msra.mxu0 0.0
    %2178 = vmatprep.subr.mxu0 0.0
    %2179 = vmatpush1.msra.mxu0 0.0
    %2180 = vmatprep.subr.mxu0 0.0
    %2181 = vmatpush1.msra.mxu0 0.0
    %2182 = vmatprep.subr.mxu0 0.0
    %2183 = vmatpush1.msra.mxu0 0.0
    %2184 = vmatprep.subr.mxu0 0.0
    %2185 = vmatpush1.msra.mxu0 0.0
    %2186 = vmatprep.subr.mxu0 0.0
    %2187 = vmatpush1.msra.mxu0 0.0
    %2188 = vmatprep.subr.mxu0 0.0
    %2189 = vmatpush1.msra.mxu0 0.0
    %2190 = vmatprep.subr.mxu0 0.0
    %2191 = vmatpush1.msra.mxu0 0.0
    %2192 = vmatprep.subr.mxu0 0.0
    %2193 = vmatpush1.msra.mxu0 0.0
    %2194 = vmatprep.subr.mxu0 0.0
    %2195 = vmatpush1.msra.mxu0 0.0
    %2196 = vmatprep.subr.mxu0 0.0
    %2197 = vmatpush1.msra.mxu0 0.0
    %2198 = vmatprep.subr.mxu0 0.0
    %2199 = vmatpush1.msra.mxu0 0.0
    %2200 = vmatprep.subr.mxu0 0.0
    %2201 = vmatpush1.msra.mxu0 0.0
    %2202 = vmatprep.subr.mxu0 0.0
    %2203 = vmatpush1.msra.mxu0 0.0
    %2204 = vmatprep.mubr.f32.mxu0 0.0
    %2205 = vmatmul.mubr.f32.gmra.mrb[0].mxu0 %v2135
    %v2206 = vpop.f32.mrb[0].mxu0
    %v2207 = vadd.f32 0.0, %v2206
    %v2208 = vpop.f32.mrb[0].mxu0
    %2209 = vmatprep.mubr.f32.mxu0 0.0
    %2210 = vmatmul.mubr.f32.gmra.mrb[0].mxu0 %v2138
    %v2211 = vpop.f32.mrb[0].mxu0
    %v2212 = vadd.f32 0.0, %v2211
    %v2213 = vpop.f32.mrb[0].mxu0
    %2214 = vdwg.mxu0
    %v2215 = vadd.f32 %v1674, %v2207
    %v2216 = vadd.f32 %v1675, %v2212
    %v2217 = vlaneseq
    %v2218 = vshrl.u32 %v2217, 7
    %v2219 = vsub.s32 0, %v2218
    %v2220 = vrot.slane %v49, %v2219
    %v2221 = vadd.f32 %v2215, %v2220
    %v2222 = vadd.f32 %v2216, %v2220
    %v2223 = vadd.f32 %v45, %v2221
    %v2224 = vadd.f32 %v46, %v2222
    %v2225 = vsel %vm76, %v2223, 0.0
    %2226 = vadd.xlane.f32.xlu0 %v2225
    %v2227 = vpop.xlane.xlu0 %2226
    %v2228 = vsel %vm76, %v2224, 0.0
    %2229 = vadd.xlane.f32.xlu0 %v2228
    %v2230 = vpop.xlane.xlu0 %2229
    %v2231 = vrcp.pop 32.0
    %v2232 = vmul.f32 %v2227, %v2231
    %v2233 = vmul.f32 %v2230, %v2231
    %v2234 = vsub.f32 %v2223, %v2232
    %v2235 = vsub.f32 %v2224, %v2233
    %v2236 = vmul.f32 %v2234, %v2234
    %v2237 = vmul.f32 %v2235, %v2235
    %v2238 = vsel %vm76, %v2236, 0.0
    %2239 = vadd.xlane.f32.xlu0 %v2238
    %v2240 = vpop.xlane.xlu0 %2239
    %v2241 = vsel %vm76, %v2237, 0.0
    %2242 = vadd.xlane.f32.xlu0 %v2241
    %v2243 = vpop.xlane.xlu0 %2242
    %v2244 = vmul.f32 %v2240, %v2231
    %v2245 = vmul.f32 %v2243, %v2231
    %v2246 = vadd.f32 %v2244, 1e-05
    %v2247 = vadd.f32 %v2245, 1e-05
    %v2248 = vrsqrt.pop %v2246
    %v2249 = vrsqrt.pop %v2247
    %v2250 = vmul.f32 %v2234, %v2248
    %v2251 = vmul.f32 %v2235, %v2249
    %v2252 = vlaneseq
    %v2253 = vshrl.u32 %v2252, 7
    %v2254 = vsub.s32 1, %v2253
    %v2255 = vrot.slane %v49, %v2254
    %v2256 = vmul.f32 %v2250, %v2255
    %v2257 = vmul.f32 %v2251, %v2255
    %v2258 = vlaneseq
    %v2259 = vshrl.u32 %v2258, 7
    %v2260 = vsub.s32 2, %v2259
    %v2261 = vrot.slane %v49, %v2260
    %v2262 = vadd.f32 %v2256, %v2261
    %v2263 = vadd.f32 %v2257, %v2261
    %v2264 = vld [vmem:[%s6] sm:$0xff]
    %v2265 = vld [vmem:[%s6 + $0x8] sm:$0xff]
    %v2266 = vld [vmem:[%s6 + $0x10] sm:$0xff]
    %v2267 = vld [vmem:[%s6 + $0x18] sm:$0xff]
    %v2269 = vlaneseq
    %v2270 = vshrl.u32 %v2269, 7
    %v2271 = vsub.s32 0, %v2270
    %v2272 = vrot.slane %v50, %v2271
    %v2275 = vsel %vm76, %v2262, 0
    %v2278 = vsel %vm76, %v2263, 0
    %2280 = vmatprep.subr.mxu0 0.0
    %2281 = vmatpush1.msra.mxu0 %v2264
    %2282 = vmatprep.subr.mxu0 0.0
    %2283 = vmatpush1.msra.mxu0 %v2265
    %2284 = vmatprep.subr.mxu0 0.0
    %2285 = vmatpush1.msra.mxu0 %v2266
    %2286 = vmatprep.subr.mxu0 0.0
    %2287 = vmatpush1.msra.mxu0 %v2267
    %2288 = vmatprep.subr.mxu0 0.0
    %2289 = vmatpush1.msra.mxu0 0.0
    %2290 = vmatprep.subr.mxu0 0.0
    %2291 = vmatpush1.msra.mxu0 0.0
    %2292 = vmatprep.subr.mxu0 0.0
    %2293 = vmatpush1.msra.mxu0 0.0
    %2294 = vmatprep.subr.mxu0 0.0
    %2295 = vmatpush1.msra.mxu0 0.0
    %2296 = vmatprep.subr.mxu0 0.0
    %2297 = vmatpush1.msra.mxu0 0.0
    %2298 = vmatprep.subr.mxu0 0.0
    %2299 = vmatpush1.msra.mxu0 0.0
    %2300 = vmatprep.subr.mxu0 0.0
    %2301 = vmatpush1.msra.mxu0 0.0
    %2302 = vmatprep.subr.mxu0 0.0
    %2303 = vmatpush1.msra.mxu0 0.0
    %2304 = vmatprep.subr.mxu0 0.0
    %2305 = vmatpush1.msra.mxu0 0.0
    %2306 = vmatprep.subr.mxu0 0.0
    %2307 = vmatpush1.msra.mxu0 0.0
    %2308 = vmatprep.subr.mxu0 0.0
    %2309 = vmatpush1.msra.mxu0 0.0
    %2310 = vmatprep.subr.mxu0 0.0
    %2311 = vmatpush1.msra.mxu0 0.0
    %2312 = vmatprep.subr.mxu0 0.0
    %2313 = vmatpush1.msra.mxu0 0.0
    %2314 = vmatprep.subr.mxu0 0.0
    %2315 = vmatpush1.msra.mxu0 0.0
    %2316 = vmatprep.subr.mxu0 0.0
    %2317 = vmatpush1.msra.mxu0 0.0
    %2318 = vmatprep.subr.mxu0 0.0
    %2319 = vmatpush1.msra.mxu0 0.0
    %2320 = vmatprep.subr.mxu0 0.0
    %2321 = vmatpush1.msra.mxu0 0.0
    %2322 = vmatprep.subr.mxu0 0.0
    %2323 = vmatpush1.msra.mxu0 0.0
    %2324 = vmatprep.subr.mxu0 0.0
    %2325 = vmatpush1.msra.mxu0 0.0
    %2326 = vmatprep.subr.mxu0 0.0
    %2327 = vmatpush1.msra.mxu0 0.0
    %2328 = vmatprep.subr.mxu0 0.0
    %2329 = vmatpush1.msra.mxu0 0.0
    %2330 = vmatprep.subr.mxu0 0.0
    %2331 = vmatpush1.msra.mxu0 0.0
    %2332 = vmatprep.subr.mxu0 0.0
    %2333 = vmatpush1.msra.mxu0 0.0
    %2334 = vmatprep.subr.mxu0 0.0
    %2335 = vmatpush1.msra.mxu0 0.0
    %2336 = vmatprep.subr.mxu0 0.0
    %2337 = vmatpush1.msra.mxu0 0.0
    %2338 = vmatprep.subr.mxu0 0.0
    %2339 = vmatpush1.msra.mxu0 0.0
    %2340 = vmatprep.subr.mxu0 0.0
    %2341 = vmatpush1.msra.mxu0 0.0
    %2342 = vmatprep.subr.mxu0 0.0
    %2343 = vmatpush1.msra.mxu0 0.0
    %2344 = vmatprep.mubr.f32.mxu0 0.0
    %2345 = vmatmul.mubr.f32.gmra.mrb[0].mxu0 %v2275
    %v2346 = vpop.f32.mrb[0].mxu0
    %v2347 = vadd.f32 %v2272, %v2346
    %v2348 = vpop.f32.mrb[0].mxu0
    %2349 = vmatprep.mubr.f32.mxu0 0.0
    %2350 = vmatmul.mubr.f32.gmra.mrb[0].mxu0 %v2278
    %v2351 = vpop.f32.mrb[0].mxu0
    %v2352 = vadd.f32 %v2272, %v2351
    %v2353 = vpop.f32.mrb[0].mxu0
    %2354 = vdwg.mxu0
    %v2355 = vmax.f32 %v2347, 0.0
    %v2356 = vmax.f32 %v2352, 0.0
    %v2357 = vld [vmem:[%s8] sm:$0xff]
    %v2358 = vld [vmem:[%s8 + $0x8] sm:$0xff]
    %v2359 = vld [vmem:[%s8 + $0x10] sm:$0xff]
    %v2360 = vld [vmem:[%s8 + $0x18] sm:$0xff]
    %v2361 = vld [vmem:[%s8 + $0x20] sm:$0xff]
    %v2362 = vld [vmem:[%s8 + $0x28] sm:$0xff]
    %v2363 = vld [vmem:[%s8 + $0x30] sm:$0xff]
    %v2364 = vld [vmem:[%s8 + $0x38] sm:$0xff]
    %v2365 = vlaneseq
    %v2366 = vshrl.u32 %v2365, 7
    %v2367 = vsub.s32 3, %v2366
    %v2368 = vrot.slane %v49, %v2367
    %vm2369 = vcmask 523264
    %v2371 = vsel %vm2369, %v2355, 0
    %v2374 = vsel %vm2369, %v2356, 0
    %2376 = vmatprep.subr.mxu0 0.0
    %2377 = vmatpush1.msra.mxu0 %v2357
    %2378 = vmatprep.subr.mxu0 0.0
    %2379 = vmatpush1.msra.mxu0 %v2358
    %2380 = vmatprep.subr.mxu0 0.0
    %2381 = vmatpush1.msra.mxu0 %v2359
    %2382 = vmatprep.subr.mxu0 0.0
    %2383 = vmatpush1.msra.mxu0 %v2360
    %2384 = vmatprep.subr.mxu0 0.0
    %2385 = vmatpush1.msra.mxu0 %v2361
    %2386 = vmatprep.subr.mxu0 0.0
    %2387 = vmatpush1.msra.mxu0 %v2362
    %2388 = vmatprep.subr.mxu0 0.0
    %2389 = vmatpush1.msra.mxu0 %v2363
    %2390 = vmatprep.subr.mxu0 0.0
    %2391 = vmatpush1.msra.mxu0 %v2364
    %2392 = vmatprep.subr.mxu0 0.0
    %2393 = vmatpush1.msra.mxu0 0.0
    %2394 = vmatprep.subr.mxu0 0.0
    %2395 = vmatpush1.msra.mxu0 0.0
    %2396 = vmatprep.subr.mxu0 0.0
    %2397 = vmatpush1.msra.mxu0 0.0
    %2398 = vmatprep.subr.mxu0 0.0
    %2399 = vmatpush1.msra.mxu0 0.0
    %2400 = vmatprep.subr.mxu0 0.0
    %2401 = vmatpush1.msra.mxu0 0.0
    %2402 = vmatprep.subr.mxu0 0.0
    %2403 = vmatpush1.msra.mxu0 0.0
    %2404 = vmatprep.subr.mxu0 0.0
    %2405 = vmatpush1.msra.mxu0 0.0
    %2406 = vmatprep.subr.mxu0 0.0
    %2407 = vmatpush1.msra.mxu0 0.0
    %2408 = vmatprep.subr.mxu0 0.0
    %2409 = vmatpush1.msra.mxu0 0.0
    %2410 = vmatprep.subr.mxu0 0.0
    %2411 = vmatpush1.msra.mxu0 0.0
    %2412 = vmatprep.subr.mxu0 0.0
    %2413 = vmatpush1.msra.mxu0 0.0
    %2414 = vmatprep.subr.mxu0 0.0
    %2415 = vmatpush1.msra.mxu0 0.0
    %2416 = vmatprep.subr.mxu0 0.0
    %2417 = vmatpush1.msra.mxu0 0.0
    %2418 = vmatprep.subr.mxu0 0.0
    %2419 = vmatpush1.msra.mxu0 0.0
    %2420 = vmatprep.subr.mxu0 0.0
    %2421 = vmatpush1.msra.mxu0 0.0
    %2422 = vmatprep.subr.mxu0 0.0
    %2423 = vmatpush1.msra.mxu0 0.0
    %2424 = vmatprep.subr.mxu0 0.0
    %2425 = vmatpush1.msra.mxu0 0.0
    %2426 = vmatprep.subr.mxu0 0.0
    %2427 = vmatpush1.msra.mxu0 0.0
    %2428 = vmatprep.subr.mxu0 0.0
    %2429 = vmatpush1.msra.mxu0 0.0
    %2430 = vmatprep.subr.mxu0 0.0
    %2431 = vmatpush1.msra.mxu0 0.0
    %2432 = vmatprep.subr.mxu0 0.0
    %2433 = vmatpush1.msra.mxu0 0.0
    %2434 = vmatprep.subr.mxu0 0.0
    %2435 = vmatpush1.msra.mxu0 0.0
    %2436 = vmatprep.subr.mxu0 0.0
    %2437 = vmatpush1.msra.mxu0 0.0
    %2438 = vmatprep.subr.mxu0 0.0
    %2439 = vmatpush1.msra.mxu0 0.0
    %2440 = vmatprep.mubr.f32.mxu0 0.0
    %2441 = vmatmul.mubr.f32.gmra.mrb[0].mxu0 %v2371
    %v2442 = vpop.f32.mrb[0].mxu0
    %v2443 = vadd.f32 %v2368, %v2442
    %v2444 = vpop.f32.mrb[0].mxu0
    %2445 = vmatprep.mubr.f32.mxu0 0.0
    %2446 = vmatmul.mubr.f32.gmra.mrb[0].mxu0 %v2374
    %v2447 = vpop.f32.mrb[0].mxu0
    %v2448 = vadd.f32 %v2368, %v2447
    %v2449 = vpop.f32.mrb[0].mxu0
    %2450 = vdwg.mxu0
    %v2451 = vadd.f32 %v2262, %v2443
    %v2452 = vadd.f32 %v2263, %v2448
    %v2453 = vsel %vm76, %v2451, 0.0
    %2454 = vadd.xlane.f32.xlu0 %v2453
    %v2455 = vpop.xlane.xlu0 %2454
    %v2456 = vsel %vm76, %v2452, 0.0
    %2457 = vadd.xlane.f32.xlu0 %v2456
    %v2458 = vpop.xlane.xlu0 %2457
    %v2459 = vmul.f32 %v2455, %v2231
    %v2460 = vmul.f32 %v2458, %v2231
    %v2461 = vsub.f32 %v2451, %v2459
    %v2462 = vsub.f32 %v2452, %v2460
    %v2463 = vmul.f32 %v2461, %v2461
    %v2464 = vmul.f32 %v2462, %v2462
    %v2465 = vsel %vm76, %v2463, 0.0
    %2466 = vadd.xlane.f32.xlu0 %v2465
    %v2467 = vpop.xlane.xlu0 %2466
    %v2468 = vsel %vm76, %v2464, 0.0
    %2469 = vadd.xlane.f32.xlu0 %v2468
    %v2470 = vpop.xlane.xlu0 %2469
    %v2471 = vmul.f32 %v2467, %v2231
    %v2472 = vmul.f32 %v2470, %v2231
    %v2473 = vadd.f32 %v2471, 1e-05
    %v2474 = vadd.f32 %v2472, 1e-05
    %v2475 = vrsqrt.pop %v2473
    %v2476 = vrsqrt.pop %v2474
    %v2477 = vmul.f32 %v2461, %v2475
    %v2478 = vmul.f32 %v2462, %v2476
    %v2479 = vlaneseq
    %v2480 = vshrl.u32 %v2479, 7
    %v2481 = vsub.s32 4, %v2480
    %v2482 = vrot.slane %v49, %v2481
    %v2483 = vmul.f32 %v2477, %v2482
    %v2484 = vmul.f32 %v2478, %v2482
    %v2485 = vlaneseq
    %v2486 = vshrl.u32 %v2485, 7
    %v2487 = vsub.s32 5, %v2486
    %v2488 = vrot.slane %v49, %v2487
    %v2489 = vadd.f32 %v2483, %v2488
    %v2490 = vadd.f32 %v2484, %v2488
    %s2491 = scalar_lea.vmem %s9, 8
    %v2492 = vld [vmem:[%s2491] sm:$0x3f]
    %s2493 = scalar_lea.vmem %s7, 1
    %v2494 = vld [vmem:[%s2493] sm:$0x1]
    %s2495 = scalar_lea.vmem %s3, 384
    %v2496 = vld [vmem:[%s2495] sm:$0xff]
    %v2497 = vld [vmem:[%s2495 + $0x8] sm:$0xff]
    %v2498 = vld [vmem:[%s2495 + $0x10] sm:$0xff]
    %v2499 = vld [vmem:[%s2495 + $0x18] sm:$0xff]
    %s2500 = scalar_lea.vmem %s3, 512
    %v2501 = vld [vmem:[%s2500] sm:$0xff]
    %v2502 = vld [vmem:[%s2500 + $0x8] sm:$0xff]
    %v2503 = vld [vmem:[%s2500 + $0x10] sm:$0xff]
    %v2504 = vld [vmem:[%s2500 + $0x18] sm:$0xff]
    %s2505 = scalar_lea.vmem %s3, 640
    %v2506 = vld [vmem:[%s2505] sm:$0xff]
    %v2507 = vld [vmem:[%s2505 + $0x8] sm:$0xff]
    %v2508 = vld [vmem:[%s2505 + $0x10] sm:$0xff]
    %v2509 = vld [vmem:[%s2505 + $0x18] sm:$0xff]
    %s2510 = scalar_lea.vmem %s4, 12
    %v2511 = vld [vmem:[%s2510] sm:$0x1]
    %s2512 = scalar_lea.vmem %s4, 16
    %v2513 = vld [vmem:[%s2512] sm:$0x1]
    %s2514 = scalar_lea.vmem %s4, 20
    %v2515 = vld [vmem:[%s2514] sm:$0x1]
    %v2517 = vlaneseq
    %v2518 = vshrl.u32 %v2517, 7
    %v2519 = vsub.s32 0, %v2518
    %v2520 = vrot.slane %v2511, %v2519
    %v2523 = vsel %vm76, %v2489, 0
    %v2526 = vsel %vm76, %v2490, 0
    %2528 = vmatprep.subr.mxu0 0.0
    %2529 = vmatpush1.msra.mxu0 %v2496
    %2530 = vmatprep.subr.mxu0 0.0
    %2531 = vmatpush1.msra.mxu0 %v2497
    %2532 = vmatprep.subr.mxu0 0.0
    %2533 = vmatpush1.msra.mxu0 %v2498
    %2534 = vmatprep.subr.mxu0 0.0
    %2535 = vmatpush1.msra.mxu0 %v2499
    %2536 = vmatprep.subr.mxu0 0.0
    %2537 = vmatpush1.msra.mxu0 0.0
    %2538 = vmatprep.subr.mxu0 0.0
    %2539 = vmatpush1.msra.mxu0 0.0
    %2540 = vmatprep.subr.mxu0 0.0
    %2541 = vmatpush1.msra.mxu0 0.0
    %2542 = vmatprep.subr.mxu0 0.0
    %2543 = vmatpush1.msra.mxu0 0.0
    %2544 = vmatprep.subr.mxu0 0.0
    %2545 = vmatpush1.msra.mxu0 0.0
    %2546 = vmatprep.subr.mxu0 0.0
    %2547 = vmatpush1.msra.mxu0 0.0
    %2548 = vmatprep.subr.mxu0 0.0
    %2549 = vmatpush1.msra.mxu0 0.0
    %2550 = vmatprep.subr.mxu0 0.0
    %2551 = vmatpush1.msra.mxu0 0.0
    %2552 = vmatprep.subr.mxu0 0.0
    %2553 = vmatpush1.msra.mxu0 0.0
    %2554 = vmatprep.subr.mxu0 0.0
    %2555 = vmatpush1.msra.mxu0 0.0
    %2556 = vmatprep.subr.mxu0 0.0
    %2557 = vmatpush1.msra.mxu0 0.0
    %2558 = vmatprep.subr.mxu0 0.0
    %2559 = vmatpush1.msra.mxu0 0.0
    %2560 = vmatprep.subr.mxu0 0.0
    %2561 = vmatpush1.msra.mxu0 0.0
    %2562 = vmatprep.subr.mxu0 0.0
    %2563 = vmatpush1.msra.mxu0 0.0
    %2564 = vmatprep.subr.mxu0 0.0
    %2565 = vmatpush1.msra.mxu0 0.0
    %2566 = vmatprep.subr.mxu0 0.0
    %2567 = vmatpush1.msra.mxu0 0.0
    %2568 = vmatprep.subr.mxu0 0.0
    %2569 = vmatpush1.msra.mxu0 0.0
    %2570 = vmatprep.subr.mxu0 0.0
    %2571 = vmatpush1.msra.mxu0 0.0
    %2572 = vmatprep.subr.mxu0 0.0
    %2573 = vmatpush1.msra.mxu0 0.0
    %2574 = vmatprep.subr.mxu0 0.0
    %2575 = vmatpush1.msra.mxu0 0.0
    %2576 = vmatprep.subr.mxu0 0.0
    %2577 = vmatpush1.msra.mxu0 0.0
    %2578 = vmatprep.subr.mxu0 0.0
    %2579 = vmatpush1.msra.mxu0 0.0
    %2580 = vmatprep.subr.mxu0 0.0
    %2581 = vmatpush1.msra.mxu0 0.0
    %2582 = vmatprep.subr.mxu0 0.0
    %2583 = vmatpush1.msra.mxu0 0.0
    %2584 = vmatprep.subr.mxu0 0.0
    %2585 = vmatpush1.msra.mxu0 0.0
    %2586 = vmatprep.subr.mxu0 0.0
    %2587 = vmatpush1.msra.mxu0 0.0
    %2588 = vmatprep.subr.mxu0 0.0
    %2589 = vmatpush1.msra.mxu0 0.0
    %2590 = vmatprep.subr.mxu0 0.0
    %2591 = vmatpush1.msra.mxu0 0.0
    %2592 = vmatprep.mubr.f32.mxu0 0.0
    %2593 = vmatmul.mubr.f32.gmra.mrb[0].mxu0 %v2523
    %v2594 = vpop.f32.mrb[0].mxu0
    %v2595 = vadd.f32 %v2520, %v2594
    %v2596 = vpop.f32.mrb[0].mxu0
    %2597 = vmatprep.mubr.f32.mxu0 0.0
    %2598 = vmatmul.mubr.f32.gmra.mrb[0].mxu0 %v2526
    %v2599 = vpop.f32.mrb[0].mxu0
    %v2600 = vadd.f32 %v2520, %v2599
    %v2601 = vpop.f32.mrb[0].mxu0
    %2602 = vdwg.mxu0
    %v2604 = vlaneseq
    %v2605 = vshrl.u32 %v2604, 7
    %v2606 = vsub.s32 0, %v2605
    %v2607 = vrot.slane %v2513, %v2606
    %2609 = vmatprep.subr.mxu0 0.0
    %2610 = vmatpush1.msra.mxu0 %v2501
    %2611 = vmatprep.subr.mxu0 0.0
    %2612 = vmatpush1.msra.mxu0 %v2502
    %2613 = vmatprep.subr.mxu0 0.0
    %2614 = vmatpush1.msra.mxu0 %v2503
    %2615 = vmatprep.subr.mxu0 0.0
    %2616 = vmatpush1.msra.mxu0 %v2504
    %2617 = vmatprep.subr.mxu0 0.0
    %2618 = vmatpush1.msra.mxu0 0.0
    %2619 = vmatprep.subr.mxu0 0.0
    %2620 = vmatpush1.msra.mxu0 0.0
    %2621 = vmatprep.subr.mxu0 0.0
    %2622 = vmatpush1.msra.mxu0 0.0
    %2623 = vmatprep.subr.mxu0 0.0
    %2624 = vmatpush1.msra.mxu0 0.0
    %2625 = vmatprep.subr.mxu0 0.0
    %2626 = vmatpush1.msra.mxu0 0.0
    %2627 = vmatprep.subr.mxu0 0.0
    %2628 = vmatpush1.msra.mxu0 0.0
    %2629 = vmatprep.subr.mxu0 0.0
    %2630 = vmatpush1.msra.mxu0 0.0
    %2631 = vmatprep.subr.mxu0 0.0
    %2632 = vmatpush1.msra.mxu0 0.0
    %2633 = vmatprep.subr.mxu0 0.0
    %2634 = vmatpush1.msra.mxu0 0.0
    %2635 = vmatprep.subr.mxu0 0.0
    %2636 = vmatpush1.msra.mxu0 0.0
    %2637 = vmatprep.subr.mxu0 0.0
    %2638 = vmatpush1.msra.mxu0 0.0
    %2639 = vmatprep.subr.mxu0 0.0
    %2640 = vmatpush1.msra.mxu0 0.0
    %2641 = vmatprep.subr.mxu0 0.0
    %2642 = vmatpush1.msra.mxu0 0.0
    %2643 = vmatprep.subr.mxu0 0.0
    %2644 = vmatpush1.msra.mxu0 0.0
    %2645 = vmatprep.subr.mxu0 0.0
    %2646 = vmatpush1.msra.mxu0 0.0
    %2647 = vmatprep.subr.mxu0 0.0
    %2648 = vmatpush1.msra.mxu0 0.0
    %2649 = vmatprep.subr.mxu0 0.0
    %2650 = vmatpush1.msra.mxu0 0.0
    %2651 = vmatprep.subr.mxu0 0.0
    %2652 = vmatpush1.msra.mxu0 0.0
    %2653 = vmatprep.subr.mxu0 0.0
    %2654 = vmatpush1.msra.mxu0 0.0
    %2655 = vmatprep.subr.mxu0 0.0
    %2656 = vmatpush1.msra.mxu0 0.0
    %2657 = vmatprep.subr.mxu0 0.0
    %2658 = vmatpush1.msra.mxu0 0.0
    %2659 = vmatprep.subr.mxu0 0.0
    %2660 = vmatpush1.msra.mxu0 0.0
    %2661 = vmatprep.subr.mxu0 0.0
    %2662 = vmatpush1.msra.mxu0 0.0
    %2663 = vmatprep.subr.mxu0 0.0
    %2664 = vmatpush1.msra.mxu0 0.0
    %2665 = vmatprep.subr.mxu0 0.0
    %2666 = vmatpush1.msra.mxu0 0.0
    %2667 = vmatprep.subr.mxu0 0.0
    %2668 = vmatpush1.msra.mxu0 0.0
    %2669 = vmatprep.subr.mxu0 0.0
    %2670 = vmatpush1.msra.mxu0 0.0
    %2671 = vmatprep.subr.mxu0 0.0
    %2672 = vmatpush1.msra.mxu0 0.0
    %2673 = vmatprep.mubr.f32.mxu0 0.0
    %2674 = vmatmul.mubr.f32.gmra.mrb[0].mxu0 %v2523
    %v2675 = vpop.f32.mrb[0].mxu0
    %v2676 = vadd.f32 %v2607, %v2675
    %v2677 = vpop.f32.mrb[0].mxu0
    %2678 = vmatprep.mubr.f32.mxu0 0.0
    %2679 = vmatmul.mubr.f32.gmra.mrb[0].mxu0 %v2526
    %v2680 = vpop.f32.mrb[0].mxu0
    %v2681 = vadd.f32 %v2607, %v2680
    %v2682 = vpop.f32.mrb[0].mxu0
    %2683 = vdwg.mxu0
    %v2685 = vlaneseq
    %v2686 = vshrl.u32 %v2685, 7
    %v2687 = vsub.s32 0, %v2686
    %v2688 = vrot.slane %v2515, %v2687
    %2690 = vmatprep.subr.mxu0 0.0
    %2691 = vmatpush1.msra.mxu0 %v2506
    %2692 = vmatprep.subr.mxu0 0.0
    %2693 = vmatpush1.msra.mxu0 %v2507
    %2694 = vmatprep.subr.mxu0 0.0
    %2695 = vmatpush1.msra.mxu0 %v2508
    %2696 = vmatprep.subr.mxu0 0.0
    %2697 = vmatpush1.msra.mxu0 %v2509
    %2698 = vmatprep.subr.mxu0 0.0
    %2699 = vmatpush1.msra.mxu0 0.0
    %2700 = vmatprep.subr.mxu0 0.0
    %2701 = vmatpush1.msra.mxu0 0.0
    %2702 = vmatprep.subr.mxu0 0.0
    %2703 = vmatpush1.msra.mxu0 0.0
    %2704 = vmatprep.subr.mxu0 0.0
    %2705 = vmatpush1.msra.mxu0 0.0
    %2706 = vmatprep.subr.mxu0 0.0
    %2707 = vmatpush1.msra.mxu0 0.0
    %2708 = vmatprep.subr.mxu0 0.0
    %2709 = vmatpush1.msra.mxu0 0.0
    %2710 = vmatprep.subr.mxu0 0.0
    %2711 = vmatpush1.msra.mxu0 0.0
    %2712 = vmatprep.subr.mxu0 0.0
    %2713 = vmatpush1.msra.mxu0 0.0
    %2714 = vmatprep.subr.mxu0 0.0
    %2715 = vmatpush1.msra.mxu0 0.0
    %2716 = vmatprep.subr.mxu0 0.0
    %2717 = vmatpush1.msra.mxu0 0.0
    %2718 = vmatprep.subr.mxu0 0.0
    %2719 = vmatpush1.msra.mxu0 0.0
    %2720 = vmatprep.subr.mxu0 0.0
    %2721 = vmatpush1.msra.mxu0 0.0
    %2722 = vmatprep.subr.mxu0 0.0
    %2723 = vmatpush1.msra.mxu0 0.0
    %2724 = vmatprep.subr.mxu0 0.0
    %2725 = vmatpush1.msra.mxu0 0.0
    %2726 = vmatprep.subr.mxu0 0.0
    %2727 = vmatpush1.msra.mxu0 0.0
    %2728 = vmatprep.subr.mxu0 0.0
    %2729 = vmatpush1.msra.mxu0 0.0
    %2730 = vmatprep.subr.mxu0 0.0
    %2731 = vmatpush1.msra.mxu0 0.0
    %2732 = vmatprep.subr.mxu0 0.0
    %2733 = vmatpush1.msra.mxu0 0.0
    %2734 = vmatprep.subr.mxu0 0.0
    %2735 = vmatpush1.msra.mxu0 0.0
    %2736 = vmatprep.subr.mxu0 0.0
    %2737 = vmatpush1.msra.mxu0 0.0
    %2738 = vmatprep.subr.mxu0 0.0
    %2739 = vmatpush1.msra.mxu0 0.0
    %2740 = vmatprep.subr.mxu0 0.0
    %2741 = vmatpush1.msra.mxu0 0.0
    %2742 = vmatprep.subr.mxu0 0.0
    %2743 = vmatpush1.msra.mxu0 0.0
    %2744 = vmatprep.subr.mxu0 0.0
    %2745 = vmatpush1.msra.mxu0 0.0
    %2746 = vmatprep.subr.mxu0 0.0
    %2747 = vmatpush1.msra.mxu0 0.0
    %2748 = vmatprep.subr.mxu0 0.0
    %2749 = vmatpush1.msra.mxu0 0.0
    %2750 = vmatprep.subr.mxu0 0.0
    %2751 = vmatpush1.msra.mxu0 0.0
    %2752 = vmatprep.subr.mxu0 0.0
    %2753 = vmatpush1.msra.mxu0 0.0
    %2754 = vmatprep.mubr.f32.mxu0 0.0
    %2755 = vmatmul.mubr.f32.gmra.mrb[0].mxu0 %v2523
    %v2756 = vpop.f32.mrb[0].mxu0
    %v2757 = vadd.f32 %v2688, %v2756
    %v2758 = vpop.f32.mrb[0].mxu0
    %2759 = vmatprep.mubr.f32.mxu0 0.0
    %2760 = vmatmul.mubr.f32.gmra.mrb[0].mxu0 %v2526
    %v2761 = vpop.f32.mrb[0].mxu0
    %v2762 = vadd.f32 %v2688, %v2761
    %v2763 = vpop.f32.mrb[0].mxu0
    %2764 = vdwg.mxu0
    %v2765 = vmul.f32 %v2595, 0.35355338
    %v2766 = vmul.f32 %v2600, 0.35355338
    %v2768 = vsel %vm322, %v2765, 0
    %v2771 = vsel %vm322, %v2766, 0
    %v2774 = vsel %vm322, %v2676, 0
    %v2777 = vsel %vm322, %v2681, 0
    %2779 = vmatprep.subr.mxu0 0.0
    %2780 = vmatpush1.xpose.msra.mxu0 %v2774
    %2781 = vmatprep.subr.mxu0 0.0
    %2782 = vmatpush1.xpose.msra.mxu0 %v2777
    %2783 = vmatprep.subr.mxu0 0.0
    %2784 = vmatpush1.xpose.msra.mxu0 0.0
    %2785 = vmatprep.subr.mxu0 0.0
    %2786 = vmatpush1.xpose.msra.mxu0 0.0
    %2787 = vmatprep.subr.mxu0 0.0
    %2788 = vmatpush1.xpose.msra.mxu0 0.0
    %2789 = vmatprep.subr.mxu0 0.0
    %2790 = vmatpush1.xpose.msra.mxu0 0.0
    %2791 = vmatprep.subr.mxu0 0.0
    %2792 = vmatpush1.xpose.msra.mxu0 0.0
    %2793 = vmatprep.subr.mxu0 0.0
    %2794 = vmatpush1.xpose.msra.mxu0 0.0
    %2795 = vmatprep.subr.mxu0 0.0
    %2796 = vmatpush1.xpose.msra.mxu0 0.0
    %2797 = vmatprep.subr.mxu0 0.0
    %2798 = vmatpush1.xpose.msra.mxu0 0.0
    %2799 = vmatprep.subr.mxu0 0.0
    %2800 = vmatpush1.xpose.msra.mxu0 0.0
    %2801 = vmatprep.subr.mxu0 0.0
    %2802 = vmatpush1.xpose.msra.mxu0 0.0
    %2803 = vmatprep.subr.mxu0 0.0
    %2804 = vmatpush1.xpose.msra.mxu0 0.0
    %2805 = vmatprep.subr.mxu0 0.0
    %2806 = vmatpush1.xpose.msra.mxu0 0.0
    %2807 = vmatprep.subr.mxu0 0.0
    %2808 = vmatpush1.xpose.msra.mxu0 0.0
    %2809 = vmatprep.subr.mxu0 0.0
    %2810 = vmatpush1.xpose.msra.mxu0 0.0
    %2811 = vmatprep.subr.mxu0 0.0
    %2812 = vmatpush1.xpose.msra.mxu0 0.0
    %2813 = vmatprep.subr.mxu0 0.0
    %2814 = vmatpush1.xpose.msra.mxu0 0.0
    %2815 = vmatprep.subr.mxu0 0.0
    %2816 = vmatpush1.xpose.msra.mxu0 0.0
    %2817 = vmatprep.subr.mxu0 0.0
    %2818 = vmatpush1.xpose.msra.mxu0 0.0
    %2819 = vmatprep.subr.mxu0 0.0
    %2820 = vmatpush1.xpose.msra.mxu0 0.0
    %2821 = vmatprep.subr.mxu0 0.0
    %2822 = vmatpush1.xpose.msra.mxu0 0.0
    %2823 = vmatprep.subr.mxu0 0.0
    %2824 = vmatpush1.xpose.msra.mxu0 0.0
    %2825 = vmatprep.subr.mxu0 0.0
    %2826 = vmatpush1.xpose.msra.mxu0 0.0
    %2827 = vmatprep.subr.mxu0 0.0
    %2828 = vmatpush1.xpose.msra.mxu0 0.0
    %2829 = vmatprep.subr.mxu0 0.0
    %2830 = vmatpush1.xpose.msra.mxu0 0.0
    %2831 = vmatprep.subr.mxu0 0.0
    %2832 = vmatpush1.xpose.msra.mxu0 0.0
    %2833 = vmatprep.subr.mxu0 0.0
    %2834 = vmatpush1.xpose.msra.mxu0 0.0
    %2835 = vmatprep.subr.mxu0 0.0
    %2836 = vmatpush1.xpose.msra.mxu0 0.0
    %2837 = vmatprep.subr.mxu0 0.0
    %2838 = vmatpush1.xpose.msra.mxu0 0.0
    %2839 = vmatprep.subr.mxu0 0.0
    %2840 = vmatpush1.xpose.msra.mxu0 0.0
    %2841 = vmatprep.subr.mxu0 0.0
    %2842 = vmatpush1.xpose.msra.mxu0 0.0
    %2843 = vmatprep.mubr.f32.mxu0 0.0
    %2844 = vmatmul.mubr.f32.gmra.mrb[0].mxu0 %v2768
    %v2845 = vpop.f32.mrb[0].mxu0
    %v2846 = vadd.f32 %v47, %v2845
    %v2847 = vpop.f32.mrb[0].mxu0
    %2848 = vmatprep.mubr.f32.mxu0 0.0
    %2849 = vmatmul.mubr.f32.gmra.mrb[0].mxu0 %v2771
    %v2850 = vpop.f32.mrb[0].mxu0
    %v2851 = vadd.f32 %v48, %v2850
    %v2852 = vpop.f32.mrb[0].mxu0
    %2853 = vdwg.mxu0
    %v2854 = vsel %vm410, %v2846, -inf
    %2855 = vmax.xlane.f32.xlu0 %v2854
    %v2856 = vpop.xlane.xlu0 %2855
    %v2857 = vsel %vm410, %v2851, -inf
    %2858 = vmax.xlane.f32.xlu0 %v2857
    %v2859 = vpop.xlane.xlu0 %2858
    %v2860 = vsub.f32 %v2846, %v2856
    %v2861 = vsub.f32 %v2851, %v2859
    %v2862 = vmul.f32 %v2860, 1.442695
    %v2863 = vpow.pop %v2862
    %v2864 = vmul.f32 %v2861, 1.442695
    %v2865 = vpow.pop %v2864
    %v2866 = vsel %vm410, %v2863, 0.0
    %2867 = vadd.xlane.f32.xlu0 %v2866
    %v2868 = vpop.xlane.xlu0 %2867
    %v2869 = vsel %vm410, %v2865, 0.0
    %2870 = vadd.xlane.f32.xlu0 %v2869
    %v2871 = vpop.xlane.xlu0 %2870
    %v2872 = vrcp.pop %v2868
    %v2873 = vrcp.pop %v2871
    %v2874 = vmul.f32 %v2863, %v2872
    %v2875 = vmul.f32 %v2865, %v2873
    %v2877 = vsel %vm410, %v2874, 0
    %v2880 = vsel %vm410, %v2875, 0
    %2882 = vmatprep.subr.mxu0 0.0
    %2883 = vmatpush1.msra.mxu0 %v2757
    %2884 = vmatprep.subr.mxu0 0.0
    %2885 = vmatpush1.msra.mxu0 %v2762
    %2886 = vmatprep.subr.mxu0 0.0
    %2887 = vmatpush1.msra.mxu0 0.0
    %2888 = vmatprep.subr.mxu0 0.0
    %2889 = vmatpush1.msra.mxu0 0.0
    %2890 = vmatprep.subr.mxu0 0.0
    %2891 = vmatpush1.msra.mxu0 0.0
    %2892 = vmatprep.subr.mxu0 0.0
    %2893 = vmatpush1.msra.mxu0 0.0
    %2894 = vmatprep.subr.mxu0 0.0
    %2895 = vmatpush1.msra.mxu0 0.0
    %2896 = vmatprep.subr.mxu0 0.0
    %2897 = vmatpush1.msra.mxu0 0.0
    %2898 = vmatprep.subr.mxu0 0.0
    %2899 = vmatpush1.msra.mxu0 0.0
    %2900 = vmatprep.subr.mxu0 0.0
    %2901 = vmatpush1.msra.mxu0 0.0
    %2902 = vmatprep.subr.mxu0 0.0
    %2903 = vmatpush1.msra.mxu0 0.0
    %2904 = vmatprep.subr.mxu0 0.0
    %2905 = vmatpush1.msra.mxu0 0.0
    %2906 = vmatprep.subr.mxu0 0.0
    %2907 = vmatpush1.msra.mxu0 0.0
    %2908 = vmatprep.subr.mxu0 0.0
    %2909 = vmatpush1.msra.mxu0 0.0
    %2910 = vmatprep.subr.mxu0 0.0
    %2911 = vmatpush1.msra.mxu0 0.0
    %2912 = vmatprep.subr.mxu0 0.0
    %2913 = vmatpush1.msra.mxu0 0.0
    %2914 = vmatprep.subr.mxu0 0.0
    %2915 = vmatpush1.msra.mxu0 0.0
    %2916 = vmatprep.subr.mxu0 0.0
    %2917 = vmatpush1.msra.mxu0 0.0
    %2918 = vmatprep.subr.mxu0 0.0
    %2919 = vmatpush1.msra.mxu0 0.0
    %2920 = vmatprep.subr.mxu0 0.0
    %2921 = vmatpush1.msra.mxu0 0.0
    %2922 = vmatprep.subr.mxu0 0.0
    %2923 = vmatpush1.msra.mxu0 0.0
    %2924 = vmatprep.subr.mxu0 0.0
    %2925 = vmatpush1.msra.mxu0 0.0
    %2926 = vmatprep.subr.mxu0 0.0
    %2927 = vmatpush1.msra.mxu0 0.0
    %2928 = vmatprep.subr.mxu0 0.0
    %2929 = vmatpush1.msra.mxu0 0.0
    %2930 = vmatprep.subr.mxu0 0.0
    %2931 = vmatpush1.msra.mxu0 0.0
    %2932 = vmatprep.subr.mxu0 0.0
    %2933 = vmatpush1.msra.mxu0 0.0
    %2934 = vmatprep.subr.mxu0 0.0
    %2935 = vmatpush1.msra.mxu0 0.0
    %2936 = vmatprep.subr.mxu0 0.0
    %2937 = vmatpush1.msra.mxu0 0.0
    %2938 = vmatprep.subr.mxu0 0.0
    %2939 = vmatpush1.msra.mxu0 0.0
    %2940 = vmatprep.subr.mxu0 0.0
    %2941 = vmatpush1.msra.mxu0 0.0
    %2942 = vmatprep.subr.mxu0 0.0
    %2943 = vmatpush1.msra.mxu0 0.0
    %2944 = vmatprep.subr.mxu0 0.0
    %2945 = vmatpush1.msra.mxu0 0.0
    %2946 = vmatprep.mubr.f32.mxu0 0.0
    %2947 = vmatmul.mubr.f32.gmra.mrb[0].mxu0 %v2877
    %v2948 = vpop.f32.mrb[0].mxu0
    %v2949 = vadd.f32 0.0, %v2948
    %v2950 = vpop.f32.mrb[0].mxu0
    %2951 = vmatprep.mubr.f32.mxu0 0.0
    %2952 = vmatmul.mubr.f32.gmra.mrb[0].mxu0 %v2880
    %v2953 = vpop.f32.mrb[0].mxu0
    %v2954 = vadd.f32 0.0, %v2953
    %v2955 = vpop.f32.mrb[0].mxu0
    %2956 = vdwg.mxu0
    %s2957 = scalar_lea.vmem %s5, 32
    %v2958 = vld [vmem:[%s2957] sm:$0xff]
    %s2959 = scalar_lea.vmem %s3, 416
    %v2960 = vld [vmem:[%s2959] sm:$0xff]
    %v2961 = vld [vmem:[%s2959 + $0x8] sm:$0xff]
    %v2962 = vld [vmem:[%s2959 + $0x10] sm:$0xff]
    %v2963 = vld [vmem:[%s2959 + $0x18] sm:$0xff]
    %s2964 = scalar_lea.vmem %s3, 544
    %v2965 = vld [vmem:[%s2964] sm:$0xff]
    %v2966 = vld [vmem:[%s2964 + $0x8] sm:$0xff]
    %v2967 = vld [vmem:[%s2964 + $0x10] sm:$0xff]
    %v2968 = vld [vmem:[%s2964 + $0x18] sm:$0xff]
    %s2969 = scalar_lea.vmem %s3, 672
    %v2970 = vld [vmem:[%s2969] sm:$0xff]
    %v2971 = vld [vmem:[%s2969 + $0x8] sm:$0xff]
    %v2972 = vld [vmem:[%s2969 + $0x10] sm:$0xff]
    %v2973 = vld [vmem:[%s2969 + $0x18] sm:$0xff]
    %s2974 = scalar_lea.vmem %s4, 13
    %v2975 = vld [vmem:[%s2974] sm:$0x1]
    %s2976 = scalar_lea.vmem %s4, 17
    %v2977 = vld [vmem:[%s2976] sm:$0x1]
    %s2978 = scalar_lea.vmem %s4, 21
    %v2979 = vld [vmem:[%s2978] sm:$0x1]
    %v2981 = vlaneseq
    %v2982 = vshrl.u32 %v2981, 7
    %v2983 = vsub.s32 0, %v2982
    %v2984 = vrot.slane %v2975, %v2983
    %2986 = vmatprep.subr.mxu0 0.0
    %2987 = vmatpush1.msra.mxu0 %v2960
    %2988 = vmatprep.subr.mxu0 0.0
    %2989 = vmatpush1.msra.mxu0 %v2961
    %2990 = vmatprep.subr.mxu0 0.0
    %2991 = vmatpush1.msra.mxu0 %v2962
    %2992 = vmatprep.subr.mxu0 0.0
    %2993 = vmatpush1.msra.mxu0 %v2963
    %2994 = vmatprep.subr.mxu0 0.0
    %2995 = vmatpush1.msra.mxu0 0.0
    %2996 = vmatprep.subr.mxu0 0.0
    %2997 = vmatpush1.msra.mxu0 0.0
    %2998 = vmatprep.subr.mxu0 0.0
    %2999 = vmatpush1.msra.mxu0 0.0
    %3000 = vmatprep.subr.mxu0 0.0
    %3001 = vmatpush1.msra.mxu0 0.0
    %3002 = vmatprep.subr.mxu0 0.0
    %3003 = vmatpush1.msra.mxu0 0.0
    %3004 = vmatprep.subr.mxu0 0.0
    %3005 = vmatpush1.msra.mxu0 0.0
    %3006 = vmatprep.subr.mxu0 0.0
    %3007 = vmatpush1.msra.mxu0 0.0
    %3008 = vmatprep.subr.mxu0 0.0
    %3009 = vmatpush1.msra.mxu0 0.0
    %3010 = vmatprep.subr.mxu0 0.0
    %3011 = vmatpush1.msra.mxu0 0.0
    %3012 = vmatprep.subr.mxu0 0.0
    %3013 = vmatpush1.msra.mxu0 0.0
    %3014 = vmatprep.subr.mxu0 0.0
    %3015 = vmatpush1.msra.mxu0 0.0
    %3016 = vmatprep.subr.mxu0 0.0
    %3017 = vmatpush1.msra.mxu0 0.0
    %3018 = vmatprep.subr.mxu0 0.0
    %3019 = vmatpush1.msra.mxu0 0.0
    %3020 = vmatprep.subr.mxu0 0.0
    %3021 = vmatpush1.msra.mxu0 0.0
    %3022 = vmatprep.subr.mxu0 0.0
    %3023 = vmatpush1.msra.mxu0 0.0
    %3024 = vmatprep.subr.mxu0 0.0
    %3025 = vmatpush1.msra.mxu0 0.0
    %3026 = vmatprep.subr.mxu0 0.0
    %3027 = vmatpush1.msra.mxu0 0.0
    %3028 = vmatprep.subr.mxu0 0.0
    %3029 = vmatpush1.msra.mxu0 0.0
    %3030 = vmatprep.subr.mxu0 0.0
    %3031 = vmatpush1.msra.mxu0 0.0
    %3032 = vmatprep.subr.mxu0 0.0
    %3033 = vmatpush1.msra.mxu0 0.0
    %3034 = vmatprep.subr.mxu0 0.0
    %3035 = vmatpush1.msra.mxu0 0.0
    %3036 = vmatprep.subr.mxu0 0.0
    %3037 = vmatpush1.msra.mxu0 0.0
    %3038 = vmatprep.subr.mxu0 0.0
    %3039 = vmatpush1.msra.mxu0 0.0
    %3040 = vmatprep.subr.mxu0 0.0
    %3041 = vmatpush1.msra.mxu0 0.0
    %3042 = vmatprep.subr.mxu0 0.0
    %3043 = vmatpush1.msra.mxu0 0.0
    %3044 = vmatprep.subr.mxu0 0.0
    %3045 = vmatpush1.msra.mxu0 0.0
    %3046 = vmatprep.subr.mxu0 0.0
    %3047 = vmatpush1.msra.mxu0 0.0
    %3048 = vmatprep.subr.mxu0 0.0
    %3049 = vmatpush1.msra.mxu0 0.0
    %3050 = vmatprep.mubr.f32.mxu0 0.0
    %3051 = vmatmul.mubr.f32.gmra.mrb[0].mxu0 %v2523
    %v3052 = vpop.f32.mrb[0].mxu0
    %v3053 = vadd.f32 %v2984, %v3052
    %v3054 = vpop.f32.mrb[0].mxu0
    %3055 = vmatprep.mubr.f32.mxu0 0.0
    %3056 = vmatmul.mubr.f32.gmra.mrb[0].mxu0 %v2526
    %v3057 = vpop.f32.mrb[0].mxu0
    %v3058 = vadd.f32 %v2984, %v3057
    %v3059 = vpop.f32.mrb[0].mxu0
    %3060 = vdwg.mxu0
    %v3062 = vlaneseq
    %v3063 = vshrl.u32 %v3062, 7
    %v3064 = vsub.s32 0, %v3063
    %v3065 = vrot.slane %v2977, %v3064
    %3067 = vmatprep.subr.mxu0 0.0
    %3068 = vmatpush1.msra.mxu0 %v2965
    %3069 = vmatprep.subr.mxu0 0.0
    %3070 = vmatpush1.msra.mxu0 %v2966
    %3071 = vmatprep.subr.mxu0 0.0
    %3072 = vmatpush1.msra.mxu0 %v2967
    %3073 = vmatprep.subr.mxu0 0.0
    %3074 = vmatpush1.msra.mxu0 %v2968
    %3075 = vmatprep.subr.mxu0 0.0
    %3076 = vmatpush1.msra.mxu0 0.0
    %3077 = vmatprep.subr.mxu0 0.0
    %3078 = vmatpush1.msra.mxu0 0.0
    %3079 = vmatprep.subr.mxu0 0.0
    %3080 = vmatpush1.msra.mxu0 0.0
    %3081 = vmatprep.subr.mxu0 0.0
    %3082 = vmatpush1.msra.mxu0 0.0
    %3083 = vmatprep.subr.mxu0 0.0
    %3084 = vmatpush1.msra.mxu0 0.0
    %3085 = vmatprep.subr.mxu0 0.0
    %3086 = vmatpush1.msra.mxu0 0.0
    %3087 = vmatprep.subr.mxu0 0.0
    %3088 = vmatpush1.msra.mxu0 0.0
    %3089 = vmatprep.subr.mxu0 0.0
    %3090 = vmatpush1.msra.mxu0 0.0
    %3091 = vmatprep.subr.mxu0 0.0
    %3092 = vmatpush1.msra.mxu0 0.0
    %3093 = vmatprep.subr.mxu0 0.0
    %3094 = vmatpush1.msra.mxu0 0.0
    %3095 = vmatprep.subr.mxu0 0.0
    %3096 = vmatpush1.msra.mxu0 0.0
    %3097 = vmatprep.subr.mxu0 0.0
    %3098 = vmatpush1.msra.mxu0 0.0
    %3099 = vmatprep.subr.mxu0 0.0
    %3100 = vmatpush1.msra.mxu0 0.0
    %3101 = vmatprep.subr.mxu0 0.0
    %3102 = vmatpush1.msra.mxu0 0.0
    %3103 = vmatprep.subr.mxu0 0.0
    %3104 = vmatpush1.msra.mxu0 0.0
    %3105 = vmatprep.subr.mxu0 0.0
    %3106 = vmatpush1.msra.mxu0 0.0
    %3107 = vmatprep.subr.mxu0 0.0
    %3108 = vmatpush1.msra.mxu0 0.0
    %3109 = vmatprep.subr.mxu0 0.0
    %3110 = vmatpush1.msra.mxu0 0.0
    %3111 = vmatprep.subr.mxu0 0.0
    %3112 = vmatpush1.msra.mxu0 0.0
    %3113 = vmatprep.subr.mxu0 0.0
    %3114 = vmatpush1.msra.mxu0 0.0
    %3115 = vmatprep.subr.mxu0 0.0
    %3116 = vmatpush1.msra.mxu0 0.0
    %3117 = vmatprep.subr.mxu0 0.0
    %3118 = vmatpush1.msra.mxu0 0.0
    %3119 = vmatprep.subr.mxu0 0.0
    %3120 = vmatpush1.msra.mxu0 0.0
    %3121 = vmatprep.subr.mxu0 0.0
    %3122 = vmatpush1.msra.mxu0 0.0
    %3123 = vmatprep.subr.mxu0 0.0
    %3124 = vmatpush1.msra.mxu0 0.0
    %3125 = vmatprep.subr.mxu0 0.0
    %3126 = vmatpush1.msra.mxu0 0.0
    %3127 = vmatprep.subr.mxu0 0.0
    %3128 = vmatpush1.msra.mxu0 0.0
    %3129 = vmatprep.subr.mxu0 0.0
    %3130 = vmatpush1.msra.mxu0 0.0
    %3131 = vmatprep.mubr.f32.mxu0 0.0
    %3132 = vmatmul.mubr.f32.gmra.mrb[0].mxu0 %v2523
    %v3133 = vpop.f32.mrb[0].mxu0
    %v3134 = vadd.f32 %v3065, %v3133
    %v3135 = vpop.f32.mrb[0].mxu0
    %3136 = vmatprep.mubr.f32.mxu0 0.0
    %3137 = vmatmul.mubr.f32.gmra.mrb[0].mxu0 %v2526
    %v3138 = vpop.f32.mrb[0].mxu0
    %v3139 = vadd.f32 %v3065, %v3138
    %v3140 = vpop.f32.mrb[0].mxu0
    %3141 = vdwg.mxu0
    %v3143 = vlaneseq
    %v3144 = vshrl.u32 %v3143, 7
    %v3145 = vsub.s32 0, %v3144
    %v3146 = vrot.slane %v2979, %v3145
    %3148 = vmatprep.subr.mxu0 0.0
    %3149 = vmatpush1.msra.mxu0 %v2970
    %3150 = vmatprep.subr.mxu0 0.0
    %3151 = vmatpush1.msra.mxu0 %v2971
    %3152 = vmatprep.subr.mxu0 0.0
    %3153 = vmatpush1.msra.mxu0 %v2972
    %3154 = vmatprep.subr.mxu0 0.0
    %3155 = vmatpush1.msra.mxu0 %v2973
    %3156 = vmatprep.subr.mxu0 0.0
    %3157 = vmatpush1.msra.mxu0 0.0
    %3158 = vmatprep.subr.mxu0 0.0
    %3159 = vmatpush1.msra.mxu0 0.0
    %3160 = vmatprep.subr.mxu0 0.0
    %3161 = vmatpush1.msra.mxu0 0.0
    %3162 = vmatprep.subr.mxu0 0.0
    %3163 = vmatpush1.msra.mxu0 0.0
    %3164 = vmatprep.subr.mxu0 0.0
    %3165 = vmatpush1.msra.mxu0 0.0
    %3166 = vmatprep.subr.mxu0 0.0
    %3167 = vmatpush1.msra.mxu0 0.0
    %3168 = vmatprep.subr.mxu0 0.0
    %3169 = vmatpush1.msra.mxu0 0.0
    %3170 = vmatprep.subr.mxu0 0.0
    %3171 = vmatpush1.msra.mxu0 0.0
    %3172 = vmatprep.subr.mxu0 0.0
    %3173 = vmatpush1.msra.mxu0 0.0
    %3174 = vmatprep.subr.mxu0 0.0
    %3175 = vmatpush1.msra.mxu0 0.0
    %3176 = vmatprep.subr.mxu0 0.0
    %3177 = vmatpush1.msra.mxu0 0.0
    %3178 = vmatprep.subr.mxu0 0.0
    %3179 = vmatpush1.msra.mxu0 0.0
    %3180 = vmatprep.subr.mxu0 0.0
    %3181 = vmatpush1.msra.mxu0 0.0
    %3182 = vmatprep.subr.mxu0 0.0
    %3183 = vmatpush1.msra.mxu0 0.0
    %3184 = vmatprep.subr.mxu0 0.0
    %3185 = vmatpush1.msra.mxu0 0.0
    %3186 = vmatprep.subr.mxu0 0.0
    %3187 = vmatpush1.msra.mxu0 0.0
    %3188 = vmatprep.subr.mxu0 0.0
    %3189 = vmatpush1.msra.mxu0 0.0
    %3190 = vmatprep.subr.mxu0 0.0
    %3191 = vmatpush1.msra.mxu0 0.0
    %3192 = vmatprep.subr.mxu0 0.0
    %3193 = vmatpush1.msra.mxu0 0.0
    %3194 = vmatprep.subr.mxu0 0.0
    %3195 = vmatpush1.msra.mxu0 0.0
    %3196 = vmatprep.subr.mxu0 0.0
    %3197 = vmatpush1.msra.mxu0 0.0
    %3198 = vmatprep.subr.mxu0 0.0
    %3199 = vmatpush1.msra.mxu0 0.0
    %3200 = vmatprep.subr.mxu0 0.0
    %3201 = vmatpush1.msra.mxu0 0.0
    %3202 = vmatprep.subr.mxu0 0.0
    %3203 = vmatpush1.msra.mxu0 0.0
    %3204 = vmatprep.subr.mxu0 0.0
    %3205 = vmatpush1.msra.mxu0 0.0
    %3206 = vmatprep.subr.mxu0 0.0
    %3207 = vmatpush1.msra.mxu0 0.0
    %3208 = vmatprep.subr.mxu0 0.0
    %3209 = vmatpush1.msra.mxu0 0.0
    %3210 = vmatprep.subr.mxu0 0.0
    %3211 = vmatpush1.msra.mxu0 0.0
    %3212 = vmatprep.mubr.f32.mxu0 0.0
    %3213 = vmatmul.mubr.f32.gmra.mrb[0].mxu0 %v2523
    %v3214 = vpop.f32.mrb[0].mxu0
    %v3215 = vadd.f32 %v3146, %v3214
    %v3216 = vpop.f32.mrb[0].mxu0
    %3217 = vmatprep.mubr.f32.mxu0 0.0
    %3218 = vmatmul.mubr.f32.gmra.mrb[0].mxu0 %v2526
    %v3219 = vpop.f32.mrb[0].mxu0
    %v3220 = vadd.f32 %v3146, %v3219
    %v3221 = vpop.f32.mrb[0].mxu0
    %3222 = vdwg.mxu0
    %v3223 = vmul.f32 %v3053, 0.35355338
    %v3224 = vmul.f32 %v3058, 0.35355338
    %v3226 = vsel %vm322, %v3223, 0
    %v3229 = vsel %vm322, %v3224, 0
    %v3232 = vsel %vm322, %v3134, 0
    %v3235 = vsel %vm322, %v3139, 0
    %3237 = vmatprep.subr.mxu0 0.0
    %3238 = vmatpush1.xpose.msra.mxu0 %v3232
    %3239 = vmatprep.subr.mxu0 0.0
    %3240 = vmatpush1.xpose.msra.mxu0 %v3235
    %3241 = vmatprep.subr.mxu0 0.0
    %3242 = vmatpush1.xpose.msra.mxu0 0.0
    %3243 = vmatprep.subr.mxu0 0.0
    %3244 = vmatpush1.xpose.msra.mxu0 0.0
    %3245 = vmatprep.subr.mxu0 0.0
    %3246 = vmatpush1.xpose.msra.mxu0 0.0
    %3247 = vmatprep.subr.mxu0 0.0
    %3248 = vmatpush1.xpose.msra.mxu0 0.0
    %3249 = vmatprep.subr.mxu0 0.0
    %3250 = vmatpush1.xpose.msra.mxu0 0.0
    %3251 = vmatprep.subr.mxu0 0.0
    %3252 = vmatpush1.xpose.msra.mxu0 0.0
    %3253 = vmatprep.subr.mxu0 0.0
    %3254 = vmatpush1.xpose.msra.mxu0 0.0
    %3255 = vmatprep.subr.mxu0 0.0
    %3256 = vmatpush1.xpose.msra.mxu0 0.0
    %3257 = vmatprep.subr.mxu0 0.0
    %3258 = vmatpush1.xpose.msra.mxu0 0.0
    %3259 = vmatprep.subr.mxu0 0.0
    %3260 = vmatpush1.xpose.msra.mxu0 0.0
    %3261 = vmatprep.subr.mxu0 0.0
    %3262 = vmatpush1.xpose.msra.mxu0 0.0
    %3263 = vmatprep.subr.mxu0 0.0
    %3264 = vmatpush1.xpose.msra.mxu0 0.0
    %3265 = vmatprep.subr.mxu0 0.0
    %3266 = vmatpush1.xpose.msra.mxu0 0.0
    %3267 = vmatprep.subr.mxu0 0.0
    %3268 = vmatpush1.xpose.msra.mxu0 0.0
    %3269 = vmatprep.subr.mxu0 0.0
    %3270 = vmatpush1.xpose.msra.mxu0 0.0
    %3271 = vmatprep.subr.mxu0 0.0
    %3272 = vmatpush1.xpose.msra.mxu0 0.0
    %3273 = vmatprep.subr.mxu0 0.0
    %3274 = vmatpush1.xpose.msra.mxu0 0.0
    %3275 = vmatprep.subr.mxu0 0.0
    %3276 = vmatpush1.xpose.msra.mxu0 0.0
    %3277 = vmatprep.subr.mxu0 0.0
    %3278 = vmatpush1.xpose.msra.mxu0 0.0
    %3279 = vmatprep.subr.mxu0 0.0
    %3280 = vmatpush1.xpose.msra.mxu0 0.0
    %3281 = vmatprep.subr.mxu0 0.0
    %3282 = vmatpush1.xpose.msra.mxu0 0.0
    %3283 = vmatprep.subr.mxu0 0.0
    %3284 = vmatpush1.xpose.msra.mxu0 0.0
    %3285 = vmatprep.subr.mxu0 0.0
    %3286 = vmatpush1.xpose.msra.mxu0 0.0
    %3287 = vmatprep.subr.mxu0 0.0
    %3288 = vmatpush1.xpose.msra.mxu0 0.0
    %3289 = vmatprep.subr.mxu0 0.0
    %3290 = vmatpush1.xpose.msra.mxu0 0.0
    %3291 = vmatprep.subr.mxu0 0.0
    %3292 = vmatpush1.xpose.msra.mxu0 0.0
    %3293 = vmatprep.subr.mxu0 0.0
    %3294 = vmatpush1.xpose.msra.mxu0 0.0
    %3295 = vmatprep.subr.mxu0 0.0
    %3296 = vmatpush1.xpose.msra.mxu0 0.0
    %3297 = vmatprep.subr.mxu0 0.0
    %3298 = vmatpush1.xpose.msra.mxu0 0.0
    %3299 = vmatprep.subr.mxu0 0.0
    %3300 = vmatpush1.xpose.msra.mxu0 0.0
    %3301 = vmatprep.mubr.f32.mxu0 0.0
    %3302 = vmatmul.mubr.f32.gmra.mrb[0].mxu0 %v3226
    %v3303 = vpop.f32.mrb[0].mxu0
    %v3304 = vadd.f32 %v47, %v3303
    %v3305 = vpop.f32.mrb[0].mxu0
    %3306 = vmatprep.mubr.f32.mxu0 0.0
    %3307 = vmatmul.mubr.f32.gmra.mrb[0].mxu0 %v3229
    %v3308 = vpop.f32.mrb[0].mxu0
    %v3309 = vadd.f32 %v48, %v3308
    %v3310 = vpop.f32.mrb[0].mxu0
    %3311 = vdwg.mxu0
    %v3312 = vsel %vm410, %v3304, -inf
    %3313 = vmax.xlane.f32.xlu0 %v3312
    %v3314 = vpop.xlane.xlu0 %3313
    %v3315 = vsel %vm410, %v3309, -inf
    %3316 = vmax.xlane.f32.xlu0 %v3315
    %v3317 = vpop.xlane.xlu0 %3316
    %v3318 = vsub.f32 %v3304, %v3314
    %v3319 = vsub.f32 %v3309, %v3317
    %v3320 = vmul.f32 %v3318, 1.442695
    %v3321 = vpow.pop %v3320
    %v3322 = vmul.f32 %v3319, 1.442695
    %v3323 = vpow.pop %v3322
    %v3324 = vsel %vm410, %v3321, 0.0
    %3325 = vadd.xlane.f32.xlu0 %v3324
    %v3326 = vpop.xlane.xlu0 %3325
    %v3327 = vsel %vm410, %v3323, 0.0
    %3328 = vadd.xlane.f32.xlu0 %v3327
    %v3329 = vpop.xlane.xlu0 %3328
    %v3330 = vrcp.pop %v3326
    %v3331 = vrcp.pop %v3329
    %v3332 = vmul.f32 %v3321, %v3330
    %v3333 = vmul.f32 %v3323, %v3331
    %v3335 = vsel %vm410, %v3332, 0
    %v3338 = vsel %vm410, %v3333, 0
    %3340 = vmatprep.subr.mxu0 0.0
    %3341 = vmatpush1.msra.mxu0 %v3215
    %3342 = vmatprep.subr.mxu0 0.0
    %3343 = vmatpush1.msra.mxu0 %v3220
    %3344 = vmatprep.subr.mxu0 0.0
    %3345 = vmatpush1.msra.mxu0 0.0
    %3346 = vmatprep.subr.mxu0 0.0
    %3347 = vmatpush1.msra.mxu0 0.0
    %3348 = vmatprep.subr.mxu0 0.0
    %3349 = vmatpush1.msra.mxu0 0.0
    %3350 = vmatprep.subr.mxu0 0.0
    %3351 = vmatpush1.msra.mxu0 0.0
    %3352 = vmatprep.subr.mxu0 0.0
    %3353 = vmatpush1.msra.mxu0 0.0
    %3354 = vmatprep.subr.mxu0 0.0
    %3355 = vmatpush1.msra.mxu0 0.0
    %3356 = vmatprep.subr.mxu0 0.0
    %3357 = vmatpush1.msra.mxu0 0.0
    %3358 = vmatprep.subr.mxu0 0.0
    %3359 = vmatpush1.msra.mxu0 0.0
    %3360 = vmatprep.subr.mxu0 0.0
    %3361 = vmatpush1.msra.mxu0 0.0
    %3362 = vmatprep.subr.mxu0 0.0
    %3363 = vmatpush1.msra.mxu0 0.0
    %3364 = vmatprep.subr.mxu0 0.0
    %3365 = vmatpush1.msra.mxu0 0.0
    %3366 = vmatprep.subr.mxu0 0.0
    %3367 = vmatpush1.msra.mxu0 0.0
    %3368 = vmatprep.subr.mxu0 0.0
    %3369 = vmatpush1.msra.mxu0 0.0
    %3370 = vmatprep.subr.mxu0 0.0
    %3371 = vmatpush1.msra.mxu0 0.0
    %3372 = vmatprep.subr.mxu0 0.0
    %3373 = vmatpush1.msra.mxu0 0.0
    %3374 = vmatprep.subr.mxu0 0.0
    %3375 = vmatpush1.msra.mxu0 0.0
    %3376 = vmatprep.subr.mxu0 0.0
    %3377 = vmatpush1.msra.mxu0 0.0
    %3378 = vmatprep.subr.mxu0 0.0
    %3379 = vmatpush1.msra.mxu0 0.0
    %3380 = vmatprep.subr.mxu0 0.0
    %3381 = vmatpush1.msra.mxu0 0.0
    %3382 = vmatprep.subr.mxu0 0.0
    %3383 = vmatpush1.msra.mxu0 0.0
    %3384 = vmatprep.subr.mxu0 0.0
    %3385 = vmatpush1.msra.mxu0 0.0
    %3386 = vmatprep.subr.mxu0 0.0
    %3387 = vmatpush1.msra.mxu0 0.0
    %3388 = vmatprep.subr.mxu0 0.0
    %3389 = vmatpush1.msra.mxu0 0.0
    %3390 = vmatprep.subr.mxu0 0.0
    %3391 = vmatpush1.msra.mxu0 0.0
    %3392 = vmatprep.subr.mxu0 0.0
    %3393 = vmatpush1.msra.mxu0 0.0
    %3394 = vmatprep.subr.mxu0 0.0
    %3395 = vmatpush1.msra.mxu0 0.0
    %3396 = vmatprep.subr.mxu0 0.0
    %3397 = vmatpush1.msra.mxu0 0.0
    %3398 = vmatprep.subr.mxu0 0.0
    %3399 = vmatpush1.msra.mxu0 0.0
    %3400 = vmatprep.subr.mxu0 0.0
    %3401 = vmatpush1.msra.mxu0 0.0
    %3402 = vmatprep.subr.mxu0 0.0
    %3403 = vmatpush1.msra.mxu0 0.0
    %3404 = vmatprep.mubr.f32.mxu0 0.0
    %3405 = vmatmul.mubr.f32.gmra.mrb[0].mxu0 %v3335
    %v3406 = vpop.f32.mrb[0].mxu0
    %v3407 = vadd.f32 0.0, %v3406
    %v3408 = vpop.f32.mrb[0].mxu0
    %3409 = vmatprep.mubr.f32.mxu0 0.0
    %3410 = vmatmul.mubr.f32.gmra.mrb[0].mxu0 %v3338
    %v3411 = vpop.f32.mrb[0].mxu0
    %v3412 = vadd.f32 0.0, %v3411
    %v3413 = vpop.f32.mrb[0].mxu0
    %3414 = vdwg.mxu0
    %s3415 = scalar_lea.vmem %s5, 40
    %v3416 = vld [vmem:[%s3415] sm:$0xff]
    %v3418 = vsel %vm322, %v3407, 0
    %v3421 = vsel %vm322, %v3412, 0
    %3423 = vmatprep.subr.mxu0 0.0
    %3424 = vmatpush1.msra.mxu0 %v3416
    %3425 = vmatprep.subr.mxu0 0.0
    %3426 = vmatpush1.msra.mxu0 0.0
    %3427 = vmatprep.subr.mxu0 0.0
    %3428 = vmatpush1.msra.mxu0 0.0
    %3429 = vmatprep.subr.mxu0 0.0
    %3430 = vmatpush1.msra.mxu0 0.0
    %3431 = vmatprep.subr.mxu0 0.0
    %3432 = vmatpush1.msra.mxu0 0.0
    %3433 = vmatprep.subr.mxu0 0.0
    %3434 = vmatpush1.msra.mxu0 0.0
    %3435 = vmatprep.subr.mxu0 0.0
    %3436 = vmatpush1.msra.mxu0 0.0
    %3437 = vmatprep.subr.mxu0 0.0
    %3438 = vmatpush1.msra.mxu0 0.0
    %3439 = vmatprep.subr.mxu0 0.0
    %3440 = vmatpush1.msra.mxu0 0.0
    %3441 = vmatprep.subr.mxu0 0.0
    %3442 = vmatpush1.msra.mxu0 0.0
    %3443 = vmatprep.subr.mxu0 0.0
    %3444 = vmatpush1.msra.mxu0 0.0
    %3445 = vmatprep.subr.mxu0 0.0
    %3446 = vmatpush1.msra.mxu0 0.0
    %3447 = vmatprep.subr.mxu0 0.0
    %3448 = vmatpush1.msra.mxu0 0.0
    %3449 = vmatprep.subr.mxu0 0.0
    %3450 = vmatpush1.msra.mxu0 0.0
    %3451 = vmatprep.subr.mxu0 0.0
    %3452 = vmatpush1.msra.mxu0 0.0
    %3453 = vmatprep.subr.mxu0 0.0
    %3454 = vmatpush1.msra.mxu0 0.0
    %3455 = vmatprep.subr.mxu0 0.0
    %3456 = vmatpush1.msra.mxu0 0.0
    %3457 = vmatprep.subr.mxu0 0.0
    %3458 = vmatpush1.msra.mxu0 0.0
    %3459 = vmatprep.subr.mxu0 0.0
    %3460 = vmatpush1.msra.mxu0 0.0
    %3461 = vmatprep.subr.mxu0 0.0
    %3462 = vmatpush1.msra.mxu0 0.0
    %3463 = vmatprep.subr.mxu0 0.0
    %3464 = vmatpush1.msra.mxu0 0.0
    %3465 = vmatprep.subr.mxu0 0.0
    %3466 = vmatpush1.msra.mxu0 0.0
    %3467 = vmatprep.subr.mxu0 0.0
    %3468 = vmatpush1.msra.mxu0 0.0
    %3469 = vmatprep.subr.mxu0 0.0
    %3470 = vmatpush1.msra.mxu0 0.0
    %3471 = vmatprep.subr.mxu0 0.0
    %3472 = vmatpush1.msra.mxu0 0.0
    %3473 = vmatprep.subr.mxu0 0.0
    %3474 = vmatpush1.msra.mxu0 0.0
    %3475 = vmatprep.subr.mxu0 0.0
    %3476 = vmatpush1.msra.mxu0 0.0
    %3477 = vmatprep.subr.mxu0 0.0
    %3478 = vmatpush1.msra.mxu0 0.0
    %3479 = vmatprep.subr.mxu0 0.0
    %3480 = vmatpush1.msra.mxu0 0.0
    %3481 = vmatprep.subr.mxu0 0.0
    %3482 = vmatpush1.msra.mxu0 0.0
    %3483 = vmatprep.subr.mxu0 0.0
    %3484 = vmatpush1.msra.mxu0 0.0
    %3485 = vmatprep.subr.mxu0 0.0
    %3486 = vmatpush1.msra.mxu0 0.0
    %3487 = vmatprep.mubr.f32.mxu0 0.0
    %3488 = vmatmul.mubr.f32.gmra.mrb[0].mxu0 %v3418
    %v3489 = vpop.f32.mrb[0].mxu0
    %v3490 = vadd.f32 0.0, %v3489
    %v3491 = vpop.f32.mrb[0].mxu0
    %3492 = vmatprep.mubr.f32.mxu0 0.0
    %3493 = vmatmul.mubr.f32.gmra.mrb[0].mxu0 %v3421
    %v3494 = vpop.f32.mrb[0].mxu0
    %v3495 = vadd.f32 0.0, %v3494
    %v3496 = vpop.f32.mrb[0].mxu0
    %3497 = vdwg.mxu0
    %v3499 = vsel %vm322, %v2949, 0
    %v3502 = vsel %vm322, %v2954, 0
    %3504 = vmatprep.subr.mxu0 0.0
    %3505 = vmatpush1.msra.mxu0 %v2958
    %3506 = vmatprep.subr.mxu0 0.0
    %3507 = vmatpush1.msra.mxu0 0.0
    %3508 = vmatprep.subr.mxu0 0.0
    %3509 = vmatpush1.msra.mxu0 0.0
    %3510 = vmatprep.subr.mxu0 0.0
    %3511 = vmatpush1.msra.mxu0 0.0
    %3512 = vmatprep.subr.mxu0 0.0
    %3513 = vmatpush1.msra.mxu0 0.0
    %3514 = vmatprep.subr.mxu0 0.0
    %3515 = vmatpush1.msra.mxu0 0.0
    %3516 = vmatprep.subr.mxu0 0.0
    %3517 = vmatpush1.msra.mxu0 0.0
    %3518 = vmatprep.subr.mxu0 0.0
    %3519 = vmatpush1.msra.mxu0 0.0
    %3520 = vmatprep.subr.mxu0 0.0
    %3521 = vmatpush1.msra.mxu0 0.0
    %3522 = vmatprep.subr.mxu0 0.0
    %3523 = vmatpush1.msra.mxu0 0.0
    %3524 = vmatprep.subr.mxu0 0.0
    %3525 = vmatpush1.msra.mxu0 0.0
    %3526 = vmatprep.subr.mxu0 0.0
    %3527 = vmatpush1.msra.mxu0 0.0
    %3528 = vmatprep.subr.mxu0 0.0
    %3529 = vmatpush1.msra.mxu0 0.0
    %3530 = vmatprep.subr.mxu0 0.0
    %3531 = vmatpush1.msra.mxu0 0.0
    %3532 = vmatprep.subr.mxu0 0.0
    %3533 = vmatpush1.msra.mxu0 0.0
    %3534 = vmatprep.subr.mxu0 0.0
    %3535 = vmatpush1.msra.mxu0 0.0
    %3536 = vmatprep.subr.mxu0 0.0
    %3537 = vmatpush1.msra.mxu0 0.0
    %3538 = vmatprep.subr.mxu0 0.0
    %3539 = vmatpush1.msra.mxu0 0.0
    %3540 = vmatprep.subr.mxu0 0.0
    %3541 = vmatpush1.msra.mxu0 0.0
    %3542 = vmatprep.subr.mxu0 0.0
    %3543 = vmatpush1.msra.mxu0 0.0
    %3544 = vmatprep.subr.mxu0 0.0
    %3545 = vmatpush1.msra.mxu0 0.0
    %3546 = vmatprep.subr.mxu0 0.0
    %3547 = vmatpush1.msra.mxu0 0.0
    %3548 = vmatprep.subr.mxu0 0.0
    %3549 = vmatpush1.msra.mxu0 0.0
    %3550 = vmatprep.subr.mxu0 0.0
    %3551 = vmatpush1.msra.mxu0 0.0
    %3552 = vmatprep.subr.mxu0 0.0
    %3553 = vmatpush1.msra.mxu0 0.0
    %3554 = vmatprep.subr.mxu0 0.0
    %3555 = vmatpush1.msra.mxu0 0.0
    %3556 = vmatprep.subr.mxu0 0.0
    %3557 = vmatpush1.msra.mxu0 0.0
    %3558 = vmatprep.subr.mxu0 0.0
    %3559 = vmatpush1.msra.mxu0 0.0
    %3560 = vmatprep.subr.mxu0 0.0
    %3561 = vmatpush1.msra.mxu0 0.0
    %3562 = vmatprep.subr.mxu0 0.0
    %3563 = vmatpush1.msra.mxu0 0.0
    %3564 = vmatprep.subr.mxu0 0.0
    %3565 = vmatpush1.msra.mxu0 0.0
    %3566 = vmatprep.subr.mxu0 0.0
    %3567 = vmatpush1.msra.mxu0 0.0
    %3568 = vmatprep.mubr.f32.mxu0 0.0
    %3569 = vmatmul.mubr.f32.gmra.mrb[0].mxu0 %v3499
    %v3570 = vpop.f32.mrb[0].mxu0
    %v3571 = vadd.f32 %v3490, %v3570
    %v3572 = vpop.f32.mrb[0].mxu0
    %3573 = vmatprep.mubr.f32.mxu0 0.0
    %3574 = vmatmul.mubr.f32.gmra.mrb[0].mxu0 %v3502
    %v3575 = vpop.f32.mrb[0].mxu0
    %v3576 = vadd.f32 %v3495, %v3575
    %v3577 = vpop.f32.mrb[0].mxu0
    %3578 = vdwg.mxu0
    %s3579 = scalar_lea.vmem %s3, 448
    %v3580 = vld [vmem:[%s3579] sm:$0xff]
    %v3581 = vld [vmem:[%s3579 + $0x8] sm:$0xff]
    %v3582 = vld [vmem:[%s3579 + $0x10] sm:$0xff]
    %v3583 = vld [vmem:[%s3579 + $0x18] sm:$0xff]
    %s3584 = scalar_lea.vmem %s3, 576
    %v3585 = vld [vmem:[%s3584] sm:$0xff]
    %v3586 = vld [vmem:[%s3584 + $0x8] sm:$0xff]
    %v3587 = vld [vmem:[%s3584 + $0x10] sm:$0xff]
    %v3588 = vld [vmem:[%s3584 + $0x18] sm:$0xff]
    %s3589 = scalar_lea.vmem %s3, 704
    %v3590 = vld [vmem:[%s3589] sm:$0xff]
    %v3591 = vld [vmem:[%s3589 + $0x8] sm:$0xff]
    %v3592 = vld [vmem:[%s3589 + $0x10] sm:$0xff]
    %v3593 = vld [vmem:[%s3589 + $0x18] sm:$0xff]
    %s3594 = scalar_lea.vmem %s4, 14
    %v3595 = vld [vmem:[%s3594] sm:$0x1]
    %s3596 = scalar_lea.vmem %s4, 18
    %v3597 = vld [vmem:[%s3596] sm:$0x1]
    %s3598 = scalar_lea.vmem %s4, 22
    %v3599 = vld [vmem:[%s3598] sm:$0x1]
    %v3601 = vlaneseq
    %v3602 = vshrl.u32 %v3601, 7
    %v3603 = vsub.s32 0, %v3602
    %v3604 = vrot.slane %v3595, %v3603
    %3606 = vmatprep.subr.mxu0 0.0
    %3607 = vmatpush1.msra.mxu0 %v3580
    %3608 = vmatprep.subr.mxu0 0.0
    %3609 = vmatpush1.msra.mxu0 %v3581
    %3610 = vmatprep.subr.mxu0 0.0
    %3611 = vmatpush1.msra.mxu0 %v3582
    %3612 = vmatprep.subr.mxu0 0.0
    %3613 = vmatpush1.msra.mxu0 %v3583
    %3614 = vmatprep.subr.mxu0 0.0
    %3615 = vmatpush1.msra.mxu0 0.0
    %3616 = vmatprep.subr.mxu0 0.0
    %3617 = vmatpush1.msra.mxu0 0.0
    %3618 = vmatprep.subr.mxu0 0.0
    %3619 = vmatpush1.msra.mxu0 0.0
    %3620 = vmatprep.subr.mxu0 0.0
    %3621 = vmatpush1.msra.mxu0 0.0
    %3622 = vmatprep.subr.mxu0 0.0
    %3623 = vmatpush1.msra.mxu0 0.0
    %3624 = vmatprep.subr.mxu0 0.0
    %3625 = vmatpush1.msra.mxu0 0.0
    %3626 = vmatprep.subr.mxu0 0.0
    %3627 = vmatpush1.msra.mxu0 0.0
    %3628 = vmatprep.subr.mxu0 0.0
    %3629 = vmatpush1.msra.mxu0 0.0
    %3630 = vmatprep.subr.mxu0 0.0
    %3631 = vmatpush1.msra.mxu0 0.0
    %3632 = vmatprep.subr.mxu0 0.0
    %3633 = vmatpush1.msra.mxu0 0.0
    %3634 = vmatprep.subr.mxu0 0.0
    %3635 = vmatpush1.msra.mxu0 0.0
    %3636 = vmatprep.subr.mxu0 0.0
    %3637 = vmatpush1.msra.mxu0 0.0
    %3638 = vmatprep.subr.mxu0 0.0
    %3639 = vmatpush1.msra.mxu0 0.0
    %3640 = vmatprep.subr.mxu0 0.0
    %3641 = vmatpush1.msra.mxu0 0.0
    %3642 = vmatprep.subr.mxu0 0.0
    %3643 = vmatpush1.msra.mxu0 0.0
    %3644 = vmatprep.subr.mxu0 0.0
    %3645 = vmatpush1.msra.mxu0 0.0
    %3646 = vmatprep.subr.mxu0 0.0
    %3647 = vmatpush1.msra.mxu0 0.0
    %3648 = vmatprep.subr.mxu0 0.0
    %3649 = vmatpush1.msra.mxu0 0.0
    %3650 = vmatprep.subr.mxu0 0.0
    %3651 = vmatpush1.msra.mxu0 0.0
    %3652 = vmatprep.subr.mxu0 0.0
    %3653 = vmatpush1.msra.mxu0 0.0
    %3654 = vmatprep.subr.mxu0 0.0
    %3655 = vmatpush1.msra.mxu0 0.0
    %3656 = vmatprep.subr.mxu0 0.0
    %3657 = vmatpush1.msra.mxu0 0.0
    %3658 = vmatprep.subr.mxu0 0.0
    %3659 = vmatpush1.msra.mxu0 0.0
    %3660 = vmatprep.subr.mxu0 0.0
    %3661 = vmatpush1.msra.mxu0 0.0
    %3662 = vmatprep.subr.mxu0 0.0
    %3663 = vmatpush1.msra.mxu0 0.0
    %3664 = vmatprep.subr.mxu0 0.0
    %3665 = vmatpush1.msra.mxu0 0.0
    %3666 = vmatprep.subr.mxu0 0.0
    %3667 = vmatpush1.msra.mxu0 0.0
    %3668 = vmatprep.subr.mxu0 0.0
    %3669 = vmatpush1.msra.mxu0 0.0
    %3670 = vmatprep.mubr.f32.mxu0 0.0
    %3671 = vmatmul.mubr.f32.gmra.mrb[0].mxu0 %v2523
    %v3672 = vpop.f32.mrb[0].mxu0
    %v3673 = vadd.f32 %v3604, %v3672
    %v3674 = vpop.f32.mrb[0].mxu0
    %3675 = vmatprep.mubr.f32.mxu0 0.0
    %3676 = vmatmul.mubr.f32.gmra.mrb[0].mxu0 %v2526
    %v3677 = vpop.f32.mrb[0].mxu0
    %v3678 = vadd.f32 %v3604, %v3677
    %v3679 = vpop.f32.mrb[0].mxu0
    %3680 = vdwg.mxu0
    %v3682 = vlaneseq
    %v3683 = vshrl.u32 %v3682, 7
    %v3684 = vsub.s32 0, %v3683
    %v3685 = vrot.slane %v3597, %v3684
    %3687 = vmatprep.subr.mxu0 0.0
    %3688 = vmatpush1.msra.mxu0 %v3585
    %3689 = vmatprep.subr.mxu0 0.0
    %3690 = vmatpush1.msra.mxu0 %v3586
    %3691 = vmatprep.subr.mxu0 0.0
    %3692 = vmatpush1.msra.mxu0 %v3587
    %3693 = vmatprep.subr.mxu0 0.0
    %3694 = vmatpush1.msra.mxu0 %v3588
    %3695 = vmatprep.subr.mxu0 0.0
    %3696 = vmatpush1.msra.mxu0 0.0
    %3697 = vmatprep.subr.mxu0 0.0
    %3698 = vmatpush1.msra.mxu0 0.0
    %3699 = vmatprep.subr.mxu0 0.0
    %3700 = vmatpush1.msra.mxu0 0.0
    %3701 = vmatprep.subr.mxu0 0.0
    %3702 = vmatpush1.msra.mxu0 0.0
    %3703 = vmatprep.subr.mxu0 0.0
    %3704 = vmatpush1.msra.mxu0 0.0
    %3705 = vmatprep.subr.mxu0 0.0
    %3706 = vmatpush1.msra.mxu0 0.0
    %3707 = vmatprep.subr.mxu0 0.0
    %3708 = vmatpush1.msra.mxu0 0.0
    %3709 = vmatprep.subr.mxu0 0.0
    %3710 = vmatpush1.msra.mxu0 0.0
    %3711 = vmatprep.subr.mxu0 0.0
    %3712 = vmatpush1.msra.mxu0 0.0
    %3713 = vmatprep.subr.mxu0 0.0
    %3714 = vmatpush1.msra.mxu0 0.0
    %3715 = vmatprep.subr.mxu0 0.0
    %3716 = vmatpush1.msra.mxu0 0.0
    %3717 = vmatprep.subr.mxu0 0.0
    %3718 = vmatpush1.msra.mxu0 0.0
    %3719 = vmatprep.subr.mxu0 0.0
    %3720 = vmatpush1.msra.mxu0 0.0
    %3721 = vmatprep.subr.mxu0 0.0
    %3722 = vmatpush1.msra.mxu0 0.0
    %3723 = vmatprep.subr.mxu0 0.0
    %3724 = vmatpush1.msra.mxu0 0.0
    %3725 = vmatprep.subr.mxu0 0.0
    %3726 = vmatpush1.msra.mxu0 0.0
    %3727 = vmatprep.subr.mxu0 0.0
    %3728 = vmatpush1.msra.mxu0 0.0
    %3729 = vmatprep.subr.mxu0 0.0
    %3730 = vmatpush1.msra.mxu0 0.0
    %3731 = vmatprep.subr.mxu0 0.0
    %3732 = vmatpush1.msra.mxu0 0.0
    %3733 = vmatprep.subr.mxu0 0.0
    %3734 = vmatpush1.msra.mxu0 0.0
    %3735 = vmatprep.subr.mxu0 0.0
    %3736 = vmatpush1.msra.mxu0 0.0
    %3737 = vmatprep.subr.mxu0 0.0
    %3738 = vmatpush1.msra.mxu0 0.0
    %3739 = vmatprep.subr.mxu0 0.0
    %3740 = vmatpush1.msra.mxu0 0.0
    %3741 = vmatprep.subr.mxu0 0.0
    %3742 = vmatpush1.msra.mxu0 0.0
    %3743 = vmatprep.subr.mxu0 0.0
    %3744 = vmatpush1.msra.mxu0 0.0
    %3745 = vmatprep.subr.mxu0 0.0
    %3746 = vmatpush1.msra.mxu0 0.0
    %3747 = vmatprep.subr.mxu0 0.0
    %3748 = vmatpush1.msra.mxu0 0.0
    %3749 = vmatprep.subr.mxu0 0.0
    %3750 = vmatpush1.msra.mxu0 0.0
    %3751 = vmatprep.mubr.f32.mxu0 0.0
    %3752 = vmatmul.mubr.f32.gmra.mrb[0].mxu0 %v2523
    %v3753 = vpop.f32.mrb[0].mxu0
    %v3754 = vadd.f32 %v3685, %v3753
    %v3755 = vpop.f32.mrb[0].mxu0
    %3756 = vmatprep.mubr.f32.mxu0 0.0
    %3757 = vmatmul.mubr.f32.gmra.mrb[0].mxu0 %v2526
    %v3758 = vpop.f32.mrb[0].mxu0
    %v3759 = vadd.f32 %v3685, %v3758
    %v3760 = vpop.f32.mrb[0].mxu0
    %3761 = vdwg.mxu0
    %v3763 = vlaneseq
    %v3764 = vshrl.u32 %v3763, 7
    %v3765 = vsub.s32 0, %v3764
    %v3766 = vrot.slane %v3599, %v3765
    %3768 = vmatprep.subr.mxu0 0.0
    %3769 = vmatpush1.msra.mxu0 %v3590
    %3770 = vmatprep.subr.mxu0 0.0
    %3771 = vmatpush1.msra.mxu0 %v3591
    %3772 = vmatprep.subr.mxu0 0.0
    %3773 = vmatpush1.msra.mxu0 %v3592
    %3774 = vmatprep.subr.mxu0 0.0
    %3775 = vmatpush1.msra.mxu0 %v3593
    %3776 = vmatprep.subr.mxu0 0.0
    %3777 = vmatpush1.msra.mxu0 0.0
    %3778 = vmatprep.subr.mxu0 0.0
    %3779 = vmatpush1.msra.mxu0 0.0
    %3780 = vmatprep.subr.mxu0 0.0
    %3781 = vmatpush1.msra.mxu0 0.0
    %3782 = vmatprep.subr.mxu0 0.0
    %3783 = vmatpush1.msra.mxu0 0.0
    %3784 = vmatprep.subr.mxu0 0.0
    %3785 = vmatpush1.msra.mxu0 0.0
    %3786 = vmatprep.subr.mxu0 0.0
    %3787 = vmatpush1.msra.mxu0 0.0
    %3788 = vmatprep.subr.mxu0 0.0
    %3789 = vmatpush1.msra.mxu0 0.0
    %3790 = vmatprep.subr.mxu0 0.0
    %3791 = vmatpush1.msra.mxu0 0.0
    %3792 = vmatprep.subr.mxu0 0.0
    %3793 = vmatpush1.msra.mxu0 0.0
    %3794 = vmatprep.subr.mxu0 0.0
    %3795 = vmatpush1.msra.mxu0 0.0
    %3796 = vmatprep.subr.mxu0 0.0
    %3797 = vmatpush1.msra.mxu0 0.0
    %3798 = vmatprep.subr.mxu0 0.0
    %3799 = vmatpush1.msra.mxu0 0.0
    %3800 = vmatprep.subr.mxu0 0.0
    %3801 = vmatpush1.msra.mxu0 0.0
    %3802 = vmatprep.subr.mxu0 0.0
    %3803 = vmatpush1.msra.mxu0 0.0
    %3804 = vmatprep.subr.mxu0 0.0
    %3805 = vmatpush1.msra.mxu0 0.0
    %3806 = vmatprep.subr.mxu0 0.0
    %3807 = vmatpush1.msra.mxu0 0.0
    %3808 = vmatprep.subr.mxu0 0.0
    %3809 = vmatpush1.msra.mxu0 0.0
    %3810 = vmatprep.subr.mxu0 0.0
    %3811 = vmatpush1.msra.mxu0 0.0
    %3812 = vmatprep.subr.mxu0 0.0
    %3813 = vmatpush1.msra.mxu0 0.0
    %3814 = vmatprep.subr.mxu0 0.0
    %3815 = vmatpush1.msra.mxu0 0.0
    %3816 = vmatprep.subr.mxu0 0.0
    %3817 = vmatpush1.msra.mxu0 0.0
    %3818 = vmatprep.subr.mxu0 0.0
    %3819 = vmatpush1.msra.mxu0 0.0
    %3820 = vmatprep.subr.mxu0 0.0
    %3821 = vmatpush1.msra.mxu0 0.0
    %3822 = vmatprep.subr.mxu0 0.0
    %3823 = vmatpush1.msra.mxu0 0.0
    %3824 = vmatprep.subr.mxu0 0.0
    %3825 = vmatpush1.msra.mxu0 0.0
    %3826 = vmatprep.subr.mxu0 0.0
    %3827 = vmatpush1.msra.mxu0 0.0
    %3828 = vmatprep.subr.mxu0 0.0
    %3829 = vmatpush1.msra.mxu0 0.0
    %3830 = vmatprep.subr.mxu0 0.0
    %3831 = vmatpush1.msra.mxu0 0.0
    %3832 = vmatprep.mubr.f32.mxu0 0.0
    %3833 = vmatmul.mubr.f32.gmra.mrb[0].mxu0 %v2523
    %v3834 = vpop.f32.mrb[0].mxu0
    %v3835 = vadd.f32 %v3766, %v3834
    %v3836 = vpop.f32.mrb[0].mxu0
    %3837 = vmatprep.mubr.f32.mxu0 0.0
    %3838 = vmatmul.mubr.f32.gmra.mrb[0].mxu0 %v2526
    %v3839 = vpop.f32.mrb[0].mxu0
    %v3840 = vadd.f32 %v3766, %v3839
    %v3841 = vpop.f32.mrb[0].mxu0
    %3842 = vdwg.mxu0
    %v3843 = vmul.f32 %v3673, 0.35355338
    %v3844 = vmul.f32 %v3678, 0.35355338
    %v3846 = vsel %vm322, %v3843, 0
    %v3849 = vsel %vm322, %v3844, 0
    %v3852 = vsel %vm322, %v3754, 0
    %v3855 = vsel %vm322, %v3759, 0
    %3857 = vmatprep.subr.mxu0 0.0
    %3858 = vmatpush1.xpose.msra.mxu0 %v3852
    %3859 = vmatprep.subr.mxu0 0.0
    %3860 = vmatpush1.xpose.msra.mxu0 %v3855
    %3861 = vmatprep.subr.mxu0 0.0
    %3862 = vmatpush1.xpose.msra.mxu0 0.0
    %3863 = vmatprep.subr.mxu0 0.0
    %3864 = vmatpush1.xpose.msra.mxu0 0.0
    %3865 = vmatprep.subr.mxu0 0.0
    %3866 = vmatpush1.xpose.msra.mxu0 0.0
    %3867 = vmatprep.subr.mxu0 0.0
    %3868 = vmatpush1.xpose.msra.mxu0 0.0
    %3869 = vmatprep.subr.mxu0 0.0
    %3870 = vmatpush1.xpose.msra.mxu0 0.0
    %3871 = vmatprep.subr.mxu0 0.0
    %3872 = vmatpush1.xpose.msra.mxu0 0.0
    %3873 = vmatprep.subr.mxu0 0.0
    %3874 = vmatpush1.xpose.msra.mxu0 0.0
    %3875 = vmatprep.subr.mxu0 0.0
    %3876 = vmatpush1.xpose.msra.mxu0 0.0
    %3877 = vmatprep.subr.mxu0 0.0
    %3878 = vmatpush1.xpose.msra.mxu0 0.0
    %3879 = vmatprep.subr.mxu0 0.0
    %3880 = vmatpush1.xpose.msra.mxu0 0.0
    %3881 = vmatprep.subr.mxu0 0.0
    %3882 = vmatpush1.xpose.msra.mxu0 0.0
    %3883 = vmatprep.subr.mxu0 0.0
    %3884 = vmatpush1.xpose.msra.mxu0 0.0
    %3885 = vmatprep.subr.mxu0 0.0
    %3886 = vmatpush1.xpose.msra.mxu0 0.0
    %3887 = vmatprep.subr.mxu0 0.0
    %3888 = vmatpush1.xpose.msra.mxu0 0.0
    %3889 = vmatprep.subr.mxu0 0.0
    %3890 = vmatpush1.xpose.msra.mxu0 0.0
    %3891 = vmatprep.subr.mxu0 0.0
    %3892 = vmatpush1.xpose.msra.mxu0 0.0
    %3893 = vmatprep.subr.mxu0 0.0
    %3894 = vmatpush1.xpose.msra.mxu0 0.0
    %3895 = vmatprep.subr.mxu0 0.0
    %3896 = vmatpush1.xpose.msra.mxu0 0.0
    %3897 = vmatprep.subr.mxu0 0.0
    %3898 = vmatpush1.xpose.msra.mxu0 0.0
    %3899 = vmatprep.subr.mxu0 0.0
    %3900 = vmatpush1.xpose.msra.mxu0 0.0
    %3901 = vmatprep.subr.mxu0 0.0
    %3902 = vmatpush1.xpose.msra.mxu0 0.0
    %3903 = vmatprep.subr.mxu0 0.0
    %3904 = vmatpush1.xpose.msra.mxu0 0.0
    %3905 = vmatprep.subr.mxu0 0.0
    %3906 = vmatpush1.xpose.msra.mxu0 0.0
    %3907 = vmatprep.subr.mxu0 0.0
    %3908 = vmatpush1.xpose.msra.mxu0 0.0
    %3909 = vmatprep.subr.mxu0 0.0
    %3910 = vmatpush1.xpose.msra.mxu0 0.0
    %3911 = vmatprep.subr.mxu0 0.0
    %3912 = vmatpush1.xpose.msra.mxu0 0.0
    %3913 = vmatprep.subr.mxu0 0.0
    %3914 = vmatpush1.xpose.msra.mxu0 0.0
    %3915 = vmatprep.subr.mxu0 0.0
    %3916 = vmatpush1.xpose.msra.mxu0 0.0
    %3917 = vmatprep.subr.mxu0 0.0
    %3918 = vmatpush1.xpose.msra.mxu0 0.0
    %3919 = vmatprep.subr.mxu0 0.0
    %3920 = vmatpush1.xpose.msra.mxu0 0.0
    %3921 = vmatprep.mubr.f32.mxu0 0.0
    %3922 = vmatmul.mubr.f32.gmra.mrb[0].mxu0 %v3846
    %v3923 = vpop.f32.mrb[0].mxu0
    %v3924 = vadd.f32 %v47, %v3923
    %v3925 = vpop.f32.mrb[0].mxu0
    %3926 = vmatprep.mubr.f32.mxu0 0.0
    %3927 = vmatmul.mubr.f32.gmra.mrb[0].mxu0 %v3849
    %v3928 = vpop.f32.mrb[0].mxu0
    %v3929 = vadd.f32 %v48, %v3928
    %v3930 = vpop.f32.mrb[0].mxu0
    %3931 = vdwg.mxu0
    %v3932 = vsel %vm410, %v3924, -inf
    %3933 = vmax.xlane.f32.xlu0 %v3932
    %v3934 = vpop.xlane.xlu0 %3933
    %v3935 = vsel %vm410, %v3929, -inf
    %3936 = vmax.xlane.f32.xlu0 %v3935
    %v3937 = vpop.xlane.xlu0 %3936
    %v3938 = vsub.f32 %v3924, %v3934
    %v3939 = vsub.f32 %v3929, %v3937
    %v3940 = vmul.f32 %v3938, 1.442695
    %v3941 = vpow.pop %v3940
    %v3942 = vmul.f32 %v3939, 1.442695
    %v3943 = vpow.pop %v3942
    %v3944 = vsel %vm410, %v3941, 0.0
    %3945 = vadd.xlane.f32.xlu0 %v3944
    %v3946 = vpop.xlane.xlu0 %3945
    %v3947 = vsel %vm410, %v3943, 0.0
    %3948 = vadd.xlane.f32.xlu0 %v3947
    %v3949 = vpop.xlane.xlu0 %3948
    %v3950 = vrcp.pop %v3946
    %v3951 = vrcp.pop %v3949
    %v3952 = vmul.f32 %v3941, %v3950
    %v3953 = vmul.f32 %v3943, %v3951
    %v3955 = vsel %vm410, %v3952, 0
    %v3958 = vsel %vm410, %v3953, 0
    %3960 = vmatprep.subr.mxu0 0.0
    %3961 = vmatpush1.msra.mxu0 %v3835
    %3962 = vmatprep.subr.mxu0 0.0
    %3963 = vmatpush1.msra.mxu0 %v3840
    %3964 = vmatprep.subr.mxu0 0.0
    %3965 = vmatpush1.msra.mxu0 0.0
    %3966 = vmatprep.subr.mxu0 0.0
    %3967 = vmatpush1.msra.mxu0 0.0
    %3968 = vmatprep.subr.mxu0 0.0
    %3969 = vmatpush1.msra.mxu0 0.0
    %3970 = vmatprep.subr.mxu0 0.0
    %3971 = vmatpush1.msra.mxu0 0.0
    %3972 = vmatprep.subr.mxu0 0.0
    %3973 = vmatpush1.msra.mxu0 0.0
    %3974 = vmatprep.subr.mxu0 0.0
    %3975 = vmatpush1.msra.mxu0 0.0
    %3976 = vmatprep.subr.mxu0 0.0
    %3977 = vmatpush1.msra.mxu0 0.0
    %3978 = vmatprep.subr.mxu0 0.0
    %3979 = vmatpush1.msra.mxu0 0.0
    %3980 = vmatprep.subr.mxu0 0.0
    %3981 = vmatpush1.msra.mxu0 0.0
    %3982 = vmatprep.subr.mxu0 0.0
    %3983 = vmatpush1.msra.mxu0 0.0
    %3984 = vmatprep.subr.mxu0 0.0
    %3985 = vmatpush1.msra.mxu0 0.0
    %3986 = vmatprep.subr.mxu0 0.0
    %3987 = vmatpush1.msra.mxu0 0.0
    %3988 = vmatprep.subr.mxu0 0.0
    %3989 = vmatpush1.msra.mxu0 0.0
    %3990 = vmatprep.subr.mxu0 0.0
    %3991 = vmatpush1.msra.mxu0 0.0
    %3992 = vmatprep.subr.mxu0 0.0
    %3993 = vmatpush1.msra.mxu0 0.0
    %3994 = vmatprep.subr.mxu0 0.0
    %3995 = vmatpush1.msra.mxu0 0.0
    %3996 = vmatprep.subr.mxu0 0.0
    %3997 = vmatpush1.msra.mxu0 0.0
    %3998 = vmatprep.subr.mxu0 0.0
    %3999 = vmatpush1.msra.mxu0 0.0
    %4000 = vmatprep.subr.mxu0 0.0
    %4001 = vmatpush1.msra.mxu0 0.0
    %4002 = vmatprep.subr.mxu0 0.0
    %4003 = vmatpush1.msra.mxu0 0.0
    %4004 = vmatprep.subr.mxu0 0.0
    %4005 = vmatpush1.msra.mxu0 0.0
    %4006 = vmatprep.subr.mxu0 0.0
    %4007 = vmatpush1.msra.mxu0 0.0
    %4008 = vmatprep.subr.mxu0 0.0
    %4009 = vmatpush1.msra.mxu0 0.0
    %4010 = vmatprep.subr.mxu0 0.0
    %4011 = vmatpush1.msra.mxu0 0.0
    %4012 = vmatprep.subr.mxu0 0.0
    %4013 = vmatpush1.msra.mxu0 0.0
    %4014 = vmatprep.subr.mxu0 0.0
    %4015 = vmatpush1.msra.mxu0 0.0
    %4016 = vmatprep.subr.mxu0 0.0
    %4017 = vmatpush1.msra.mxu0 0.0
    %4018 = vmatprep.subr.mxu0 0.0
    %4019 = vmatpush1.msra.mxu0 0.0
    %4020 = vmatprep.subr.mxu0 0.0
    %4021 = vmatpush1.msra.mxu0 0.0
    %4022 = vmatprep.subr.mxu0 0.0
    %4023 = vmatpush1.msra.mxu0 0.0
    %4024 = vmatprep.mubr.f32.mxu0 0.0
    %4025 = vmatmul.mubr.f32.gmra.mrb[0].mxu0 %v3955
    %v4026 = vpop.f32.mrb[0].mxu0
    %v4027 = vadd.f32 0.0, %v4026
    %v4028 = vpop.f32.mrb[0].mxu0
    %4029 = vmatprep.mubr.f32.mxu0 0.0
    %4030 = vmatmul.mubr.f32.gmra.mrb[0].mxu0 %v3958
    %v4031 = vpop.f32.mrb[0].mxu0
    %v4032 = vadd.f32 0.0, %v4031
    %v4033 = vpop.f32.mrb[0].mxu0
    %4034 = vdwg.mxu0
    %s4035 = scalar_lea.vmem %s5, 48
    %v4036 = vld [vmem:[%s4035] sm:$0xff]
    %v4038 = vsel %vm322, %v4027, 0
    %v4041 = vsel %vm322, %v4032, 0
    %4043 = vmatprep.subr.mxu0 0.0
    %4044 = vmatpush1.msra.mxu0 %v4036
    %4045 = vmatprep.subr.mxu0 0.0
    %4046 = vmatpush1.msra.mxu0 0.0
    %4047 = vmatprep.subr.mxu0 0.0
    %4048 = vmatpush1.msra.mxu0 0.0
    %4049 = vmatprep.subr.mxu0 0.0
    %4050 = vmatpush1.msra.mxu0 0.0
    %4051 = vmatprep.subr.mxu0 0.0
    %4052 = vmatpush1.msra.mxu0 0.0
    %4053 = vmatprep.subr.mxu0 0.0
    %4054 = vmatpush1.msra.mxu0 0.0
    %4055 = vmatprep.subr.mxu0 0.0
    %4056 = vmatpush1.msra.mxu0 0.0
    %4057 = vmatprep.subr.mxu0 0.0
    %4058 = vmatpush1.msra.mxu0 0.0
    %4059 = vmatprep.subr.mxu0 0.0
    %4060 = vmatpush1.msra.mxu0 0.0
    %4061 = vmatprep.subr.mxu0 0.0
    %4062 = vmatpush1.msra.mxu0 0.0
    %4063 = vmatprep.subr.mxu0 0.0
    %4064 = vmatpush1.msra.mxu0 0.0
    %4065 = vmatprep.subr.mxu0 0.0
    %4066 = vmatpush1.msra.mxu0 0.0
    %4067 = vmatprep.subr.mxu0 0.0
    %4068 = vmatpush1.msra.mxu0 0.0
    %4069 = vmatprep.subr.mxu0 0.0
    %4070 = vmatpush1.msra.mxu0 0.0
    %4071 = vmatprep.subr.mxu0 0.0
    %4072 = vmatpush1.msra.mxu0 0.0
    %4073 = vmatprep.subr.mxu0 0.0
    %4074 = vmatpush1.msra.mxu0 0.0
    %4075 = vmatprep.subr.mxu0 0.0
    %4076 = vmatpush1.msra.mxu0 0.0
    %4077 = vmatprep.subr.mxu0 0.0
    %4078 = vmatpush1.msra.mxu0 0.0
    %4079 = vmatprep.subr.mxu0 0.0
    %4080 = vmatpush1.msra.mxu0 0.0
    %4081 = vmatprep.subr.mxu0 0.0
    %4082 = vmatpush1.msra.mxu0 0.0
    %4083 = vmatprep.subr.mxu0 0.0
    %4084 = vmatpush1.msra.mxu0 0.0
    %4085 = vmatprep.subr.mxu0 0.0
    %4086 = vmatpush1.msra.mxu0 0.0
    %4087 = vmatprep.subr.mxu0 0.0
    %4088 = vmatpush1.msra.mxu0 0.0
    %4089 = vmatprep.subr.mxu0 0.0
    %4090 = vmatpush1.msra.mxu0 0.0
    %4091 = vmatprep.subr.mxu0 0.0
    %4092 = vmatpush1.msra.mxu0 0.0
    %4093 = vmatprep.subr.mxu0 0.0
    %4094 = vmatpush1.msra.mxu0 0.0
    %4095 = vmatprep.subr.mxu0 0.0
    %4096 = vmatpush1.msra.mxu0 0.0
    %4097 = vmatprep.subr.mxu0 0.0
    %4098 = vmatpush1.msra.mxu0 0.0
    %4099 = vmatprep.subr.mxu0 0.0
    %4100 = vmatpush1.msra.mxu0 0.0
    %4101 = vmatprep.subr.mxu0 0.0
    %4102 = vmatpush1.msra.mxu0 0.0
    %4103 = vmatprep.subr.mxu0 0.0
    %4104 = vmatpush1.msra.mxu0 0.0
    %4105 = vmatprep.subr.mxu0 0.0
    %4106 = vmatpush1.msra.mxu0 0.0
    %4107 = vmatprep.mubr.f32.mxu0 0.0
    %4108 = vmatmul.mubr.f32.gmra.mrb[0].mxu0 %v4038
    %v4109 = vpop.f32.mrb[0].mxu0
    %v4110 = vadd.f32 0.0, %v4109
    %v4111 = vpop.f32.mrb[0].mxu0
    %4112 = vmatprep.mubr.f32.mxu0 0.0
    %4113 = vmatmul.mubr.f32.gmra.mrb[0].mxu0 %v4041
    %v4114 = vpop.f32.mrb[0].mxu0
    %v4115 = vadd.f32 0.0, %v4114
    %v4116 = vpop.f32.mrb[0].mxu0
    %4117 = vdwg.mxu0
    %v4118 = vadd.f32 %v3571, %v4110
    %v4119 = vadd.f32 %v3576, %v4115
    %s4120 = scalar_lea.vmem %s3, 480
    %v4121 = vld [vmem:[%s4120] sm:$0xff]
    %v4122 = vld [vmem:[%s4120 + $0x8] sm:$0xff]
    %v4123 = vld [vmem:[%s4120 + $0x10] sm:$0xff]
    %v4124 = vld [vmem:[%s4120 + $0x18] sm:$0xff]
    %s4125 = scalar_lea.vmem %s3, 608
    %v4126 = vld [vmem:[%s4125] sm:$0xff]
    %v4127 = vld [vmem:[%s4125 + $0x8] sm:$0xff]
    %v4128 = vld [vmem:[%s4125 + $0x10] sm:$0xff]
    %v4129 = vld [vmem:[%s4125 + $0x18] sm:$0xff]
    %s4130 = scalar_lea.vmem %s3, 736
    %v4131 = vld [vmem:[%s4130] sm:$0xff]
    %v4132 = vld [vmem:[%s4130 + $0x8] sm:$0xff]
    %v4133 = vld [vmem:[%s4130 + $0x10] sm:$0xff]
    %v4134 = vld [vmem:[%s4130 + $0x18] sm:$0xff]
    %s4135 = scalar_lea.vmem %s4, 15
    %v4136 = vld [vmem:[%s4135] sm:$0x1]
    %s4137 = scalar_lea.vmem %s4, 19
    %v4138 = vld [vmem:[%s4137] sm:$0x1]
    %s4139 = scalar_lea.vmem %s4, 23
    %v4140 = vld [vmem:[%s4139] sm:$0x1]
    %v4142 = vlaneseq
    %v4143 = vshrl.u32 %v4142, 7
    %v4144 = vsub.s32 0, %v4143
    %v4145 = vrot.slane %v4136, %v4144
    %4147 = vmatprep.subr.mxu0 0.0
    %4148 = vmatpush1.msra.mxu0 %v4121
    %4149 = vmatprep.subr.mxu0 0.0
    %4150 = vmatpush1.msra.mxu0 %v4122
    %4151 = vmatprep.subr.mxu0 0.0
    %4152 = vmatpush1.msra.mxu0 %v4123
    %4153 = vmatprep.subr.mxu0 0.0
    %4154 = vmatpush1.msra.mxu0 %v4124
    %4155 = vmatprep.subr.mxu0 0.0
    %4156 = vmatpush1.msra.mxu0 0.0
    %4157 = vmatprep.subr.mxu0 0.0
    %4158 = vmatpush1.msra.mxu0 0.0
    %4159 = vmatprep.subr.mxu0 0.0
    %4160 = vmatpush1.msra.mxu0 0.0
    %4161 = vmatprep.subr.mxu0 0.0
    %4162 = vmatpush1.msra.mxu0 0.0
    %4163 = vmatprep.subr.mxu0 0.0
    %4164 = vmatpush1.msra.mxu0 0.0
    %4165 = vmatprep.subr.mxu0 0.0
    %4166 = vmatpush1.msra.mxu0 0.0
    %4167 = vmatprep.subr.mxu0 0.0
    %4168 = vmatpush1.msra.mxu0 0.0
    %4169 = vmatprep.subr.mxu0 0.0
    %4170 = vmatpush1.msra.mxu0 0.0
    %4171 = vmatprep.subr.mxu0 0.0
    %4172 = vmatpush1.msra.mxu0 0.0
    %4173 = vmatprep.subr.mxu0 0.0
    %4174 = vmatpush1.msra.mxu0 0.0
    %4175 = vmatprep.subr.mxu0 0.0
    %4176 = vmatpush1.msra.mxu0 0.0
    %4177 = vmatprep.subr.mxu0 0.0
    %4178 = vmatpush1.msra.mxu0 0.0
    %4179 = vmatprep.subr.mxu0 0.0
    %4180 = vmatpush1.msra.mxu0 0.0
    %4181 = vmatprep.subr.mxu0 0.0
    %4182 = vmatpush1.msra.mxu0 0.0
    %4183 = vmatprep.subr.mxu0 0.0
    %4184 = vmatpush1.msra.mxu0 0.0
    %4185 = vmatprep.subr.mxu0 0.0
    %4186 = vmatpush1.msra.mxu0 0.0
    %4187 = vmatprep.subr.mxu0 0.0
    %4188 = vmatpush1.msra.mxu0 0.0
    %4189 = vmatprep.subr.mxu0 0.0
    %4190 = vmatpush1.msra.mxu0 0.0
    %4191 = vmatprep.subr.mxu0 0.0
    %4192 = vmatpush1.msra.mxu0 0.0
    %4193 = vmatprep.subr.mxu0 0.0
    %4194 = vmatpush1.msra.mxu0 0.0
    %4195 = vmatprep.subr.mxu0 0.0
    %4196 = vmatpush1.msra.mxu0 0.0
    %4197 = vmatprep.subr.mxu0 0.0
    %4198 = vmatpush1.msra.mxu0 0.0
    %4199 = vmatprep.subr.mxu0 0.0
    %4200 = vmatpush1.msra.mxu0 0.0
    %4201 = vmatprep.subr.mxu0 0.0
    %4202 = vmatpush1.msra.mxu0 0.0
    %4203 = vmatprep.subr.mxu0 0.0
    %4204 = vmatpush1.msra.mxu0 0.0
    %4205 = vmatprep.subr.mxu0 0.0
    %4206 = vmatpush1.msra.mxu0 0.0
    %4207 = vmatprep.subr.mxu0 0.0
    %4208 = vmatpush1.msra.mxu0 0.0
    %4209 = vmatprep.subr.mxu0 0.0
    %4210 = vmatpush1.msra.mxu0 0.0
    %4211 = vmatprep.mubr.f32.mxu0 0.0
    %4212 = vmatmul.mubr.f32.gmra.mrb[0].mxu0 %v2523
    %v4213 = vpop.f32.mrb[0].mxu0
    %v4214 = vadd.f32 %v4145, %v4213
    %v4215 = vpop.f32.mrb[0].mxu0
    %4216 = vmatprep.mubr.f32.mxu0 0.0
    %4217 = vmatmul.mubr.f32.gmra.mrb[0].mxu0 %v2526
    %v4218 = vpop.f32.mrb[0].mxu0
    %v4219 = vadd.f32 %v4145, %v4218
    %v4220 = vpop.f32.mrb[0].mxu0
    %4221 = vdwg.mxu0
    %v4223 = vlaneseq
    %v4224 = vshrl.u32 %v4223, 7
    %v4225 = vsub.s32 0, %v4224
    %v4226 = vrot.slane %v4138, %v4225
    %4228 = vmatprep.subr.mxu0 0.0
    %4229 = vmatpush1.msra.mxu0 %v4126
    %4230 = vmatprep.subr.mxu0 0.0
    %4231 = vmatpush1.msra.mxu0 %v4127
    %4232 = vmatprep.subr.mxu0 0.0
    %4233 = vmatpush1.msra.mxu0 %v4128
    %4234 = vmatprep.subr.mxu0 0.0
    %4235 = vmatpush1.msra.mxu0 %v4129
    %4236 = vmatprep.subr.mxu0 0.0
    %4237 = vmatpush1.msra.mxu0 0.0
    %4238 = vmatprep.subr.mxu0 0.0
    %4239 = vmatpush1.msra.mxu0 0.0
    %4240 = vmatprep.subr.mxu0 0.0
    %4241 = vmatpush1.msra.mxu0 0.0
    %4242 = vmatprep.subr.mxu0 0.0
    %4243 = vmatpush1.msra.mxu0 0.0
    %4244 = vmatprep.subr.mxu0 0.0
    %4245 = vmatpush1.msra.mxu0 0.0
    %4246 = vmatprep.subr.mxu0 0.0
    %4247 = vmatpush1.msra.mxu0 0.0
    %4248 = vmatprep.subr.mxu0 0.0
    %4249 = vmatpush1.msra.mxu0 0.0
    %4250 = vmatprep.subr.mxu0 0.0
    %4251 = vmatpush1.msra.mxu0 0.0
    %4252 = vmatprep.subr.mxu0 0.0
    %4253 = vmatpush1.msra.mxu0 0.0
    %4254 = vmatprep.subr.mxu0 0.0
    %4255 = vmatpush1.msra.mxu0 0.0
    %4256 = vmatprep.subr.mxu0 0.0
    %4257 = vmatpush1.msra.mxu0 0.0
    %4258 = vmatprep.subr.mxu0 0.0
    %4259 = vmatpush1.msra.mxu0 0.0
    %4260 = vmatprep.subr.mxu0 0.0
    %4261 = vmatpush1.msra.mxu0 0.0
    %4262 = vmatprep.subr.mxu0 0.0
    %4263 = vmatpush1.msra.mxu0 0.0
    %4264 = vmatprep.subr.mxu0 0.0
    %4265 = vmatpush1.msra.mxu0 0.0
    %4266 = vmatprep.subr.mxu0 0.0
    %4267 = vmatpush1.msra.mxu0 0.0
    %4268 = vmatprep.subr.mxu0 0.0
    %4269 = vmatpush1.msra.mxu0 0.0
    %4270 = vmatprep.subr.mxu0 0.0
    %4271 = vmatpush1.msra.mxu0 0.0
    %4272 = vmatprep.subr.mxu0 0.0
    %4273 = vmatpush1.msra.mxu0 0.0
    %4274 = vmatprep.subr.mxu0 0.0
    %4275 = vmatpush1.msra.mxu0 0.0
    %4276 = vmatprep.subr.mxu0 0.0
    %4277 = vmatpush1.msra.mxu0 0.0
    %4278 = vmatprep.subr.mxu0 0.0
    %4279 = vmatpush1.msra.mxu0 0.0
    %4280 = vmatprep.subr.mxu0 0.0
    %4281 = vmatpush1.msra.mxu0 0.0
    %4282 = vmatprep.subr.mxu0 0.0
    %4283 = vmatpush1.msra.mxu0 0.0
    %4284 = vmatprep.subr.mxu0 0.0
    %4285 = vmatpush1.msra.mxu0 0.0
    %4286 = vmatprep.subr.mxu0 0.0
    %4287 = vmatpush1.msra.mxu0 0.0
    %4288 = vmatprep.subr.mxu0 0.0
    %4289 = vmatpush1.msra.mxu0 0.0
    %4290 = vmatprep.subr.mxu0 0.0
    %4291 = vmatpush1.msra.mxu0 0.0
    %4292 = vmatprep.mubr.f32.mxu0 0.0
    %4293 = vmatmul.mubr.f32.gmra.mrb[0].mxu0 %v2523
    %v4294 = vpop.f32.mrb[0].mxu0
    %v4295 = vadd.f32 %v4226, %v4294
    %v4296 = vpop.f32.mrb[0].mxu0
    %4297 = vmatprep.mubr.f32.mxu0 0.0
    %4298 = vmatmul.mubr.f32.gmra.mrb[0].mxu0 %v2526
    %v4299 = vpop.f32.mrb[0].mxu0
    %v4300 = vadd.f32 %v4226, %v4299
    %v4301 = vpop.f32.mrb[0].mxu0
    %4302 = vdwg.mxu0
    %v4304 = vlaneseq
    %v4305 = vshrl.u32 %v4304, 7
    %v4306 = vsub.s32 0, %v4305
    %v4307 = vrot.slane %v4140, %v4306
    %4309 = vmatprep.subr.mxu0 0.0
    %4310 = vmatpush1.msra.mxu0 %v4131
    %4311 = vmatprep.subr.mxu0 0.0
    %4312 = vmatpush1.msra.mxu0 %v4132
    %4313 = vmatprep.subr.mxu0 0.0
    %4314 = vmatpush1.msra.mxu0 %v4133
    %4315 = vmatprep.subr.mxu0 0.0
    %4316 = vmatpush1.msra.mxu0 %v4134
    %4317 = vmatprep.subr.mxu0 0.0
    %4318 = vmatpush1.msra.mxu0 0.0
    %4319 = vmatprep.subr.mxu0 0.0
    %4320 = vmatpush1.msra.mxu0 0.0
    %4321 = vmatprep.subr.mxu0 0.0
    %4322 = vmatpush1.msra.mxu0 0.0
    %4323 = vmatprep.subr.mxu0 0.0
    %4324 = vmatpush1.msra.mxu0 0.0
    %4325 = vmatprep.subr.mxu0 0.0
    %4326 = vmatpush1.msra.mxu0 0.0
    %4327 = vmatprep.subr.mxu0 0.0
    %4328 = vmatpush1.msra.mxu0 0.0
    %4329 = vmatprep.subr.mxu0 0.0
    %4330 = vmatpush1.msra.mxu0 0.0
    %4331 = vmatprep.subr.mxu0 0.0
    %4332 = vmatpush1.msra.mxu0 0.0
    %4333 = vmatprep.subr.mxu0 0.0
    %4334 = vmatpush1.msra.mxu0 0.0
    %4335 = vmatprep.subr.mxu0 0.0
    %4336 = vmatpush1.msra.mxu0 0.0
    %4337 = vmatprep.subr.mxu0 0.0
    %4338 = vmatpush1.msra.mxu0 0.0
    %4339 = vmatprep.subr.mxu0 0.0
    %4340 = vmatpush1.msra.mxu0 0.0
    %4341 = vmatprep.subr.mxu0 0.0
    %4342 = vmatpush1.msra.mxu0 0.0
    %4343 = vmatprep.subr.mxu0 0.0
    %4344 = vmatpush1.msra.mxu0 0.0
    %4345 = vmatprep.subr.mxu0 0.0
    %4346 = vmatpush1.msra.mxu0 0.0
    %4347 = vmatprep.subr.mxu0 0.0
    %4348 = vmatpush1.msra.mxu0 0.0
    %4349 = vmatprep.subr.mxu0 0.0
    %4350 = vmatpush1.msra.mxu0 0.0
    %4351 = vmatprep.subr.mxu0 0.0
    %4352 = vmatpush1.msra.mxu0 0.0
    %4353 = vmatprep.subr.mxu0 0.0
    %4354 = vmatpush1.msra.mxu0 0.0
    %4355 = vmatprep.subr.mxu0 0.0
    %4356 = vmatpush1.msra.mxu0 0.0
    %4357 = vmatprep.subr.mxu0 0.0
    %4358 = vmatpush1.msra.mxu0 0.0
    %4359 = vmatprep.subr.mxu0 0.0
    %4360 = vmatpush1.msra.mxu0 0.0
    %4361 = vmatprep.subr.mxu0 0.0
    %4362 = vmatpush1.msra.mxu0 0.0
    %4363 = vmatprep.subr.mxu0 0.0
    %4364 = vmatpush1.msra.mxu0 0.0
    %4365 = vmatprep.subr.mxu0 0.0
    %4366 = vmatpush1.msra.mxu0 0.0
    %4367 = vmatprep.subr.mxu0 0.0
    %4368 = vmatpush1.msra.mxu0 0.0
    %4369 = vmatprep.subr.mxu0 0.0
    %4370 = vmatpush1.msra.mxu0 0.0
    %4371 = vmatprep.subr.mxu0 0.0
    %4372 = vmatpush1.msra.mxu0 0.0
    %4373 = vmatprep.mubr.f32.mxu0 0.0
    %4374 = vmatmul.mubr.f32.gmra.mrb[0].mxu0 %v2523
    %v4375 = vpop.f32.mrb[0].mxu0
    %v4376 = vadd.f32 %v4307, %v4375
    %v4377 = vpop.f32.mrb[0].mxu0
    %4378 = vmatprep.mubr.f32.mxu0 0.0
    %4379 = vmatmul.mubr.f32.gmra.mrb[0].mxu0 %v2526
    %v4380 = vpop.f32.mrb[0].mxu0
    %v4381 = vadd.f32 %v4307, %v4380
    %v4382 = vpop.f32.mrb[0].mxu0
    %4383 = vdwg.mxu0
    %v4384 = vmul.f32 %v4214, 0.35355338
    %v4385 = vmul.f32 %v4219, 0.35355338
    %v4387 = vsel %vm322, %v4384, 0
    %v4390 = vsel %vm322, %v4385, 0
    %v4393 = vsel %vm322, %v4295, 0
    %v4396 = vsel %vm322, %v4300, 0
    %4398 = vmatprep.subr.mxu0 0.0
    %4399 = vmatpush1.xpose.msra.mxu0 %v4393
    %4400 = vmatprep.subr.mxu0 0.0
    %4401 = vmatpush1.xpose.msra.mxu0 %v4396
    %4402 = vmatprep.subr.mxu0 0.0
    %4403 = vmatpush1.xpose.msra.mxu0 0.0
    %4404 = vmatprep.subr.mxu0 0.0
    %4405 = vmatpush1.xpose.msra.mxu0 0.0
    %4406 = vmatprep.subr.mxu0 0.0
    %4407 = vmatpush1.xpose.msra.mxu0 0.0
    %4408 = vmatprep.subr.mxu0 0.0
    %4409 = vmatpush1.xpose.msra.mxu0 0.0
    %4410 = vmatprep.subr.mxu0 0.0
    %4411 = vmatpush1.xpose.msra.mxu0 0.0
    %4412 = vmatprep.subr.mxu0 0.0
    %4413 = vmatpush1.xpose.msra.mxu0 0.0
    %4414 = vmatprep.subr.mxu0 0.0
    %4415 = vmatpush1.xpose.msra.mxu0 0.0
    %4416 = vmatprep.subr.mxu0 0.0
    %4417 = vmatpush1.xpose.msra.mxu0 0.0
    %4418 = vmatprep.subr.mxu0 0.0
    %4419 = vmatpush1.xpose.msra.mxu0 0.0
    %4420 = vmatprep.subr.mxu0 0.0
    %4421 = vmatpush1.xpose.msra.mxu0 0.0
    %4422 = vmatprep.subr.mxu0 0.0
    %4423 = vmatpush1.xpose.msra.mxu0 0.0
    %4424 = vmatprep.subr.mxu0 0.0
    %4425 = vmatpush1.xpose.msra.mxu0 0.0
    %4426 = vmatprep.subr.mxu0 0.0
    %4427 = vmatpush1.xpose.msra.mxu0 0.0
    %4428 = vmatprep.subr.mxu0 0.0
    %4429 = vmatpush1.xpose.msra.mxu0 0.0
    %4430 = vmatprep.subr.mxu0 0.0
    %4431 = vmatpush1.xpose.msra.mxu0 0.0
    %4432 = vmatprep.subr.mxu0 0.0
    %4433 = vmatpush1.xpose.msra.mxu0 0.0
    %4434 = vmatprep.subr.mxu0 0.0
    %4435 = vmatpush1.xpose.msra.mxu0 0.0
    %4436 = vmatprep.subr.mxu0 0.0
    %4437 = vmatpush1.xpose.msra.mxu0 0.0
    %4438 = vmatprep.subr.mxu0 0.0
    %4439 = vmatpush1.xpose.msra.mxu0 0.0
    %4440 = vmatprep.subr.mxu0 0.0
    %4441 = vmatpush1.xpose.msra.mxu0 0.0
    %4442 = vmatprep.subr.mxu0 0.0
    %4443 = vmatpush1.xpose.msra.mxu0 0.0
    %4444 = vmatprep.subr.mxu0 0.0
    %4445 = vmatpush1.xpose.msra.mxu0 0.0
    %4446 = vmatprep.subr.mxu0 0.0
    %4447 = vmatpush1.xpose.msra.mxu0 0.0
    %4448 = vmatprep.subr.mxu0 0.0
    %4449 = vmatpush1.xpose.msra.mxu0 0.0
    %4450 = vmatprep.subr.mxu0 0.0
    %4451 = vmatpush1.xpose.msra.mxu0 0.0
    %4452 = vmatprep.subr.mxu0 0.0
    %4453 = vmatpush1.xpose.msra.mxu0 0.0
    %4454 = vmatprep.subr.mxu0 0.0
    %4455 = vmatpush1.xpose.msra.mxu0 0.0
    %4456 = vmatprep.subr.mxu0 0.0
    %4457 = vmatpush1.xpose.msra.mxu0 0.0
    %4458 = vmatprep.subr.mxu0 0.0
    %4459 = vmatpush1.xpose.msra.mxu0 0.0
    %4460 = vmatprep.subr.mxu0 0.0
    %4461 = vmatpush1.xpose.msra.mxu0 0.0
    %4462 = vmatprep.mubr.f32.mxu0 0.0
    %4463 = vmatmul.mubr.f32.gmra.mrb[0].mxu0 %v4387
    %v4464 = vpop.f32.mrb[0].mxu0
    %v4465 = vadd.f32 %v47, %v4464
    %v4466 = vpop.f32.mrb[0].mxu0
    %4467 = vmatprep.mubr.f32.mxu0 0.0
    %4468 = vmatmul.mubr.f32.gmra.mrb[0].mxu0 %v4390
    %v4469 = vpop.f32.mrb[0].mxu0
    %v4470 = vadd.f32 %v48, %v4469
    %v4471 = vpop.f32.mrb[0].mxu0
    %4472 = vdwg.mxu0
    %v4473 = vsel %vm410, %v4465, -inf
    %4474 = vmax.xlane.f32.xlu0 %v4473
    %v4475 = vpop.xlane.xlu0 %4474
    %v4476 = vsel %vm410, %v4470, -inf
    %4477 = vmax.xlane.f32.xlu0 %v4476
    %v4478 = vpop.xlane.xlu0 %4477
    %v4479 = vsub.f32 %v4465, %v4475
    %v4480 = vsub.f32 %v4470, %v4478
    %v4481 = vmul.f32 %v4479, 1.442695
    %v4482 = vpow.pop %v4481
    %v4483 = vmul.f32 %v4480, 1.442695
    %v4484 = vpow.pop %v4483
    %v4485 = vsel %vm410, %v4482, 0.0
    %4486 = vadd.xlane.f32.xlu0 %v4485
    %v4487 = vpop.xlane.xlu0 %4486
    %v4488 = vsel %vm410, %v4484, 0.0
    %4489 = vadd.xlane.f32.xlu0 %v4488
    %v4490 = vpop.xlane.xlu0 %4489
    %v4491 = vrcp.pop %v4487
    %v4492 = vrcp.pop %v4490
    %v4493 = vmul.f32 %v4482, %v4491
    %v4494 = vmul.f32 %v4484, %v4492
    %v4496 = vsel %vm410, %v4493, 0
    %v4499 = vsel %vm410, %v4494, 0
    %4501 = vmatprep.subr.mxu0 0.0
    %4502 = vmatpush1.msra.mxu0 %v4376
    %4503 = vmatprep.subr.mxu0 0.0
    %4504 = vmatpush1.msra.mxu0 %v4381
    %4505 = vmatprep.subr.mxu0 0.0
    %4506 = vmatpush1.msra.mxu0 0.0
    %4507 = vmatprep.subr.mxu0 0.0
    %4508 = vmatpush1.msra.mxu0 0.0
    %4509 = vmatprep.subr.mxu0 0.0
    %4510 = vmatpush1.msra.mxu0 0.0
    %4511 = vmatprep.subr.mxu0 0.0
    %4512 = vmatpush1.msra.mxu0 0.0
    %4513 = vmatprep.subr.mxu0 0.0
    %4514 = vmatpush1.msra.mxu0 0.0
    %4515 = vmatprep.subr.mxu0 0.0
    %4516 = vmatpush1.msra.mxu0 0.0
    %4517 = vmatprep.subr.mxu0 0.0
    %4518 = vmatpush1.msra.mxu0 0.0
    %4519 = vmatprep.subr.mxu0 0.0
    %4520 = vmatpush1.msra.mxu0 0.0
    %4521 = vmatprep.subr.mxu0 0.0
    %4522 = vmatpush1.msra.mxu0 0.0
    %4523 = vmatprep.subr.mxu0 0.0
    %4524 = vmatpush1.msra.mxu0 0.0
    %4525 = vmatprep.subr.mxu0 0.0
    %4526 = vmatpush1.msra.mxu0 0.0
    %4527 = vmatprep.subr.mxu0 0.0
    %4528 = vmatpush1.msra.mxu0 0.0
    %4529 = vmatprep.subr.mxu0 0.0
    %4530 = vmatpush1.msra.mxu0 0.0
    %4531 = vmatprep.subr.mxu0 0.0
    %4532 = vmatpush1.msra.mxu0 0.0
    %4533 = vmatprep.subr.mxu0 0.0
    %4534 = vmatpush1.msra.mxu0 0.0
    %4535 = vmatprep.subr.mxu0 0.0
    %4536 = vmatpush1.msra.mxu0 0.0
    %4537 = vmatprep.subr.mxu0 0.0
    %4538 = vmatpush1.msra.mxu0 0.0
    %4539 = vmatprep.subr.mxu0 0.0
    %4540 = vmatpush1.msra.mxu0 0.0
    %4541 = vmatprep.subr.mxu0 0.0
    %4542 = vmatpush1.msra.mxu0 0.0
    %4543 = vmatprep.subr.mxu0 0.0
    %4544 = vmatpush1.msra.mxu0 0.0
    %4545 = vmatprep.subr.mxu0 0.0
    %4546 = vmatpush1.msra.mxu0 0.0
    %4547 = vmatprep.subr.mxu0 0.0
    %4548 = vmatpush1.msra.mxu0 0.0
    %4549 = vmatprep.subr.mxu0 0.0
    %4550 = vmatpush1.msra.mxu0 0.0
    %4551 = vmatprep.subr.mxu0 0.0
    %4552 = vmatpush1.msra.mxu0 0.0
    %4553 = vmatprep.subr.mxu0 0.0
    %4554 = vmatpush1.msra.mxu0 0.0
    %4555 = vmatprep.subr.mxu0 0.0
    %4556 = vmatpush1.msra.mxu0 0.0
    %4557 = vmatprep.subr.mxu0 0.0
    %4558 = vmatpush1.msra.mxu0 0.0
    %4559 = vmatprep.subr.mxu0 0.0
    %4560 = vmatpush1.msra.mxu0 0.0
    %4561 = vmatprep.subr.mxu0 0.0
    %4562 = vmatpush1.msra.mxu0 0.0
    %4563 = vmatprep.subr.mxu0 0.0
    %4564 = vmatpush1.msra.mxu0 0.0
    %4565 = vmatprep.mubr.f32.mxu0 0.0
    %4566 = vmatmul.mubr.f32.gmra.mrb[0].mxu0 %v4496
    %v4567 = vpop.f32.mrb[0].mxu0
    %v4568 = vadd.f32 0.0, %v4567
    %v4569 = vpop.f32.mrb[0].mxu0
    %4570 = vmatprep.mubr.f32.mxu0 0.0
    %4571 = vmatmul.mubr.f32.gmra.mrb[0].mxu0 %v4499
    %v4572 = vpop.f32.mrb[0].mxu0
    %v4573 = vadd.f32 0.0, %v4572
    %v4574 = vpop.f32.mrb[0].mxu0
    %4575 = vdwg.mxu0
    %s4576 = scalar_lea.vmem %s5, 56
    %v4577 = vld [vmem:[%s4576] sm:$0xff]
    %v4579 = vsel %vm322, %v4568, 0
    %v4582 = vsel %vm322, %v4573, 0
    %4584 = vmatprep.subr.mxu0 0.0
    %4585 = vmatpush1.msra.mxu0 %v4577
    %4586 = vmatprep.subr.mxu0 0.0
    %4587 = vmatpush1.msra.mxu0 0.0
    %4588 = vmatprep.subr.mxu0 0.0
    %4589 = vmatpush1.msra.mxu0 0.0
    %4590 = vmatprep.subr.mxu0 0.0
    %4591 = vmatpush1.msra.mxu0 0.0
    %4592 = vmatprep.subr.mxu0 0.0
    %4593 = vmatpush1.msra.mxu0 0.0
    %4594 = vmatprep.subr.mxu0 0.0
    %4595 = vmatpush1.msra.mxu0 0.0
    %4596 = vmatprep.subr.mxu0 0.0
    %4597 = vmatpush1.msra.mxu0 0.0
    %4598 = vmatprep.subr.mxu0 0.0
    %4599 = vmatpush1.msra.mxu0 0.0
    %4600 = vmatprep.subr.mxu0 0.0
    %4601 = vmatpush1.msra.mxu0 0.0
    %4602 = vmatprep.subr.mxu0 0.0
    %4603 = vmatpush1.msra.mxu0 0.0
    %4604 = vmatprep.subr.mxu0 0.0
    %4605 = vmatpush1.msra.mxu0 0.0
    %4606 = vmatprep.subr.mxu0 0.0
    %4607 = vmatpush1.msra.mxu0 0.0
    %4608 = vmatprep.subr.mxu0 0.0
    %4609 = vmatpush1.msra.mxu0 0.0
    %4610 = vmatprep.subr.mxu0 0.0
    %4611 = vmatpush1.msra.mxu0 0.0
    %4612 = vmatprep.subr.mxu0 0.0
    %4613 = vmatpush1.msra.mxu0 0.0
    %4614 = vmatprep.subr.mxu0 0.0
    %4615 = vmatpush1.msra.mxu0 0.0
    %4616 = vmatprep.subr.mxu0 0.0
    %4617 = vmatpush1.msra.mxu0 0.0
    %4618 = vmatprep.subr.mxu0 0.0
    %4619 = vmatpush1.msra.mxu0 0.0
    %4620 = vmatprep.subr.mxu0 0.0
    %4621 = vmatpush1.msra.mxu0 0.0
    %4622 = vmatprep.subr.mxu0 0.0
    %4623 = vmatpush1.msra.mxu0 0.0
    %4624 = vmatprep.subr.mxu0 0.0
    %4625 = vmatpush1.msra.mxu0 0.0
    %4626 = vmatprep.subr.mxu0 0.0
    %4627 = vmatpush1.msra.mxu0 0.0
    %4628 = vmatprep.subr.mxu0 0.0
    %4629 = vmatpush1.msra.mxu0 0.0
    %4630 = vmatprep.subr.mxu0 0.0
    %4631 = vmatpush1.msra.mxu0 0.0
    %4632 = vmatprep.subr.mxu0 0.0
    %4633 = vmatpush1.msra.mxu0 0.0
    %4634 = vmatprep.subr.mxu0 0.0
    %4635 = vmatpush1.msra.mxu0 0.0
    %4636 = vmatprep.subr.mxu0 0.0
    %4637 = vmatpush1.msra.mxu0 0.0
    %4638 = vmatprep.subr.mxu0 0.0
    %4639 = vmatpush1.msra.mxu0 0.0
    %4640 = vmatprep.subr.mxu0 0.0
    %4641 = vmatpush1.msra.mxu0 0.0
    %4642 = vmatprep.subr.mxu0 0.0
    %4643 = vmatpush1.msra.mxu0 0.0
    %4644 = vmatprep.subr.mxu0 0.0
    %4645 = vmatpush1.msra.mxu0 0.0
    %4646 = vmatprep.subr.mxu0 0.0
    %4647 = vmatpush1.msra.mxu0 0.0
    %4648 = vmatprep.mubr.f32.mxu0 0.0
    %4649 = vmatmul.mubr.f32.gmra.mrb[0].mxu0 %v4579
    %v4650 = vpop.f32.mrb[0].mxu0
    %v4651 = vadd.f32 0.0, %v4650
    %v4652 = vpop.f32.mrb[0].mxu0
    %4653 = vmatprep.mubr.f32.mxu0 0.0
    %4654 = vmatmul.mubr.f32.gmra.mrb[0].mxu0 %v4582
    %v4655 = vpop.f32.mrb[0].mxu0
    %v4656 = vadd.f32 0.0, %v4655
    %v4657 = vpop.f32.mrb[0].mxu0
    %4658 = vdwg.mxu0
    %v4659 = vadd.f32 %v4118, %v4651
    %v4660 = vadd.f32 %v4119, %v4656
    %v4661 = vlaneseq
    %v4662 = vshrl.u32 %v4661, 7
    %v4663 = vsub.s32 0, %v4662
    %v4664 = vrot.slane %v2492, %v4663
    %v4665 = vadd.f32 %v4659, %v4664
    %v4666 = vadd.f32 %v4660, %v4664
    %v4667 = vadd.f32 %v2489, %v4665
    %v4668 = vadd.f32 %v2490, %v4666
    %v4669 = vsel %vm76, %v4667, 0.0
    %4670 = vadd.xlane.f32.xlu0 %v4669
    %v4671 = vpop.xlane.xlu0 %4670
    %v4672 = vsel %vm76, %v4668, 0.0
    %4673 = vadd.xlane.f32.xlu0 %v4672
    %v4674 = vpop.xlane.xlu0 %4673
    %v4675 = vmul.f32 %v4671, %v2231
    %v4676 = vmul.f32 %v4674, %v2231
    %v4677 = vsub.f32 %v4667, %v4675
    %v4678 = vsub.f32 %v4668, %v4676
    %v4679 = vmul.f32 %v4677, %v4677
    %v4680 = vmul.f32 %v4678, %v4678
    %v4681 = vsel %vm76, %v4679, 0.0
    %4682 = vadd.xlane.f32.xlu0 %v4681
    %v4683 = vpop.xlane.xlu0 %4682
    %v4684 = vsel %vm76, %v4680, 0.0
    %4685 = vadd.xlane.f32.xlu0 %v4684
    %v4686 = vpop.xlane.xlu0 %4685
    %v4687 = vmul.f32 %v4683, %v2231
    %v4688 = vmul.f32 %v4686, %v2231
    %v4689 = vadd.f32 %v4687, 1e-05
    %v4690 = vadd.f32 %v4688, 1e-05
    %v4691 = vrsqrt.pop %v4689
    %v4692 = vrsqrt.pop %v4690
    %v4693 = vmul.f32 %v4677, %v4691
    %v4694 = vmul.f32 %v4678, %v4692
    %v4695 = vlaneseq
    %v4696 = vshrl.u32 %v4695, 7
    %v4697 = vsub.s32 1, %v4696
    %v4698 = vrot.slane %v2492, %v4697
    %v4699 = vmul.f32 %v4693, %v4698
    %v4700 = vmul.f32 %v4694, %v4698
    %v4701 = vlaneseq
    %v4702 = vshrl.u32 %v4701, 7
    %v4703 = vsub.s32 2, %v4702
    %v4704 = vrot.slane %v2492, %v4703
    %v4705 = vadd.f32 %v4699, %v4704
    %v4706 = vadd.f32 %v4700, %v4704
    %s4707 = scalar_lea.vmem %s6, 32
    %v4708 = vld [vmem:[%s4707] sm:$0xff]
    %v4709 = vld [vmem:[%s4707 + $0x8] sm:$0xff]
    %v4710 = vld [vmem:[%s4707 + $0x10] sm:$0xff]
    %v4711 = vld [vmem:[%s4707 + $0x18] sm:$0xff]
    %v4713 = vlaneseq
    %v4714 = vshrl.u32 %v4713, 7
    %v4715 = vsub.s32 0, %v4714
    %v4716 = vrot.slane %v2494, %v4715
    %v4719 = vsel %vm76, %v4705, 0
    %v4722 = vsel %vm76, %v4706, 0
    %4724 = vmatprep.subr.mxu0 0.0
    %4725 = vmatpush1.msra.mxu0 %v4708
    %4726 = vmatprep.subr.mxu0 0.0
    %4727 = vmatpush1.msra.mxu0 %v4709
    %4728 = vmatprep.subr.mxu0 0.0
    %4729 = vmatpush1.msra.mxu0 %v4710
    %4730 = vmatprep.subr.mxu0 0.0
    %4731 = vmatpush1.msra.mxu0 %v4711
    %4732 = vmatprep.subr.mxu0 0.0
    %4733 = vmatpush1.msra.mxu0 0.0
    %4734 = vmatprep.subr.mxu0 0.0
    %4735 = vmatpush1.msra.mxu0 0.0
    %4736 = vmatprep.subr.mxu0 0.0
    %4737 = vmatpush1.msra.mxu0 0.0
    %4738 = vmatprep.subr.mxu0 0.0
    %4739 = vmatpush1.msra.mxu0 0.0
    %4740 = vmatprep.subr.mxu0 0.0
    %4741 = vmatpush1.msra.mxu0 0.0
    %4742 = vmatprep.subr.mxu0 0.0
    %4743 = vmatpush1.msra.mxu0 0.0
    %4744 = vmatprep.subr.mxu0 0.0
    %4745 = vmatpush1.msra.mxu0 0.0
    %4746 = vmatprep.subr.mxu0 0.0
    %4747 = vmatpush1.msra.mxu0 0.0
    %4748 = vmatprep.subr.mxu0 0.0
    %4749 = vmatpush1.msra.mxu0 0.0
    %4750 = vmatprep.subr.mxu0 0.0
    %4751 = vmatpush1.msra.mxu0 0.0
    %4752 = vmatprep.subr.mxu0 0.0
    %4753 = vmatpush1.msra.mxu0 0.0
    %4754 = vmatprep.subr.mxu0 0.0
    %4755 = vmatpush1.msra.mxu0 0.0
    %4756 = vmatprep.subr.mxu0 0.0
    %4757 = vmatpush1.msra.mxu0 0.0
    %4758 = vmatprep.subr.mxu0 0.0
    %4759 = vmatpush1.msra.mxu0 0.0
    %4760 = vmatprep.subr.mxu0 0.0
    %4761 = vmatpush1.msra.mxu0 0.0
    %4762 = vmatprep.subr.mxu0 0.0
    %4763 = vmatpush1.msra.mxu0 0.0
    %4764 = vmatprep.subr.mxu0 0.0
    %4765 = vmatpush1.msra.mxu0 0.0
    %4766 = vmatprep.subr.mxu0 0.0
    %4767 = vmatpush1.msra.mxu0 0.0
    %4768 = vmatprep.subr.mxu0 0.0
    %4769 = vmatpush1.msra.mxu0 0.0
    %4770 = vmatprep.subr.mxu0 0.0
    %4771 = vmatpush1.msra.mxu0 0.0
    %4772 = vmatprep.subr.mxu0 0.0
    %4773 = vmatpush1.msra.mxu0 0.0
    %4774 = vmatprep.subr.mxu0 0.0
    %4775 = vmatpush1.msra.mxu0 0.0
    %4776 = vmatprep.subr.mxu0 0.0
    %4777 = vmatpush1.msra.mxu0 0.0
    %4778 = vmatprep.subr.mxu0 0.0
    %4779 = vmatpush1.msra.mxu0 0.0
    %4780 = vmatprep.subr.mxu0 0.0
    %4781 = vmatpush1.msra.mxu0 0.0
    %4782 = vmatprep.subr.mxu0 0.0
    %4783 = vmatpush1.msra.mxu0 0.0
    %4784 = vmatprep.subr.mxu0 0.0
    %4785 = vmatpush1.msra.mxu0 0.0
    %4786 = vmatprep.subr.mxu0 0.0
    %4787 = vmatpush1.msra.mxu0 0.0
    %4788 = vmatprep.mubr.f32.mxu0 0.0
    %4789 = vmatmul.mubr.f32.gmra.mrb[0].mxu0 %v4719
    %v4790 = vpop.f32.mrb[0].mxu0
    %v4791 = vadd.f32 %v4716, %v4790
    %v4792 = vpop.f32.mrb[0].mxu0
    %4793 = vmatprep.mubr.f32.mxu0 0.0
    %4794 = vmatmul.mubr.f32.gmra.mrb[0].mxu0 %v4722
    %v4795 = vpop.f32.mrb[0].mxu0
    %v4796 = vadd.f32 %v4716, %v4795
    %v4797 = vpop.f32.mrb[0].mxu0
    %4798 = vdwg.mxu0
    %v4799 = vmax.f32 %v4791, 0.0
    %v4800 = vmax.f32 %v4796, 0.0
    %s4801 = scalar_lea.vmem %s8, 64
    %v4802 = vld [vmem:[%s4801] sm:$0xff]
    %v4803 = vld [vmem:[%s4801 + $0x8] sm:$0xff]
    %v4804 = vld [vmem:[%s4801 + $0x10] sm:$0xff]
    %v4805 = vld [vmem:[%s4801 + $0x18] sm:$0xff]
    %v4806 = vld [vmem:[%s4801 + $0x20] sm:$0xff]
    %v4807 = vld [vmem:[%s4801 + $0x28] sm:$0xff]
    %v4808 = vld [vmem:[%s4801 + $0x30] sm:$0xff]
    %v4809 = vld [vmem:[%s4801 + $0x38] sm:$0xff]
    %v4810 = vlaneseq
    %v4811 = vshrl.u32 %v4810, 7
    %v4812 = vsub.s32 3, %v4811
    %v4813 = vrot.slane %v2492, %v4812
    %v4815 = vsel %vm2369, %v4799, 0
    %v4818 = vsel %vm2369, %v4800, 0
    %4820 = vmatprep.subr.mxu0 0.0
    %4821 = vmatpush1.msra.mxu0 %v4802
    %4822 = vmatprep.subr.mxu0 0.0
    %4823 = vmatpush1.msra.mxu0 %v4803
    %4824 = vmatprep.subr.mxu0 0.0
    %4825 = vmatpush1.msra.mxu0 %v4804
    %4826 = vmatprep.subr.mxu0 0.0
    %4827 = vmatpush1.msra.mxu0 %v4805
    %4828 = vmatprep.subr.mxu0 0.0
    %4829 = vmatpush1.msra.mxu0 %v4806
    %4830 = vmatprep.subr.mxu0 0.0
    %4831 = vmatpush1.msra.mxu0 %v4807
    %4832 = vmatprep.subr.mxu0 0.0
    %4833 = vmatpush1.msra.mxu0 %v4808
    %4834 = vmatprep.subr.mxu0 0.0
    %4835 = vmatpush1.msra.mxu0 %v4809
    %4836 = vmatprep.subr.mxu0 0.0
    %4837 = vmatpush1.msra.mxu0 0.0
    %4838 = vmatprep.subr.mxu0 0.0
    %4839 = vmatpush1.msra.mxu0 0.0
    %4840 = vmatprep.subr.mxu0 0.0
    %4841 = vmatpush1.msra.mxu0 0.0
    %4842 = vmatprep.subr.mxu0 0.0
    %4843 = vmatpush1.msra.mxu0 0.0
    %4844 = vmatprep.subr.mxu0 0.0
    %4845 = vmatpush1.msra.mxu0 0.0
    %4846 = vmatprep.subr.mxu0 0.0
    %4847 = vmatpush1.msra.mxu0 0.0
    %4848 = vmatprep.subr.mxu0 0.0
    %4849 = vmatpush1.msra.mxu0 0.0
    %4850 = vmatprep.subr.mxu0 0.0
    %4851 = vmatpush1.msra.mxu0 0.0
    %4852 = vmatprep.subr.mxu0 0.0
    %4853 = vmatpush1.msra.mxu0 0.0
    %4854 = vmatprep.subr.mxu0 0.0
    %4855 = vmatpush1.msra.mxu0 0.0
    %4856 = vmatprep.subr.mxu0 0.0
    %4857 = vmatpush1.msra.mxu0 0.0
    %4858 = vmatprep.subr.mxu0 0.0
    %4859 = vmatpush1.msra.mxu0 0.0
    %4860 = vmatprep.subr.mxu0 0.0
    %4861 = vmatpush1.msra.mxu0 0.0
    %4862 = vmatprep.subr.mxu0 0.0
    %4863 = vmatpush1.msra.mxu0 0.0
    %4864 = vmatprep.subr.mxu0 0.0
    %4865 = vmatpush1.msra.mxu0 0.0
    %4866 = vmatprep.subr.mxu0 0.0
    %4867 = vmatpush1.msra.mxu0 0.0
    %4868 = vmatprep.subr.mxu0 0.0
    %4869 = vmatpush1.msra.mxu0 0.0
    %4870 = vmatprep.subr.mxu0 0.0
    %4871 = vmatpush1.msra.mxu0 0.0
    %4872 = vmatprep.subr.mxu0 0.0
    %4873 = vmatpush1.msra.mxu0 0.0
    %4874 = vmatprep.subr.mxu0 0.0
    %4875 = vmatpush1.msra.mxu0 0.0
    %4876 = vmatprep.subr.mxu0 0.0
    %4877 = vmatpush1.msra.mxu0 0.0
    %4878 = vmatprep.subr.mxu0 0.0
    %4879 = vmatpush1.msra.mxu0 0.0
    %4880 = vmatprep.subr.mxu0 0.0
    %4881 = vmatpush1.msra.mxu0 0.0
    %4882 = vmatprep.subr.mxu0 0.0
    %4883 = vmatpush1.msra.mxu0 0.0
    %4884 = vmatprep.mubr.f32.mxu0 0.0
    %4885 = vmatmul.mubr.f32.gmra.mrb[0].mxu0 %v4815
    %v4886 = vpop.f32.mrb[0].mxu0
    %v4887 = vadd.f32 %v4813, %v4886
    %v4888 = vpop.f32.mrb[0].mxu0
    %4889 = vmatprep.mubr.f32.mxu0 0.0
    %4890 = vmatmul.mubr.f32.gmra.mrb[0].mxu0 %v4818
    %v4891 = vpop.f32.mrb[0].mxu0
    %v4892 = vadd.f32 %v4813, %v4891
    %v4893 = vpop.f32.mrb[0].mxu0
    %4894 = vdwg.mxu0
    %v4895 = vadd.f32 %v4705, %v4887
    %v4896 = vadd.f32 %v4706, %v4892
    %v4897 = vsel %vm76, %v4895, 0.0
    %4898 = vadd.xlane.f32.xlu0 %v4897
    %v4899 = vpop.xlane.xlu0 %4898
    %v4900 = vsel %vm76, %v4896, 0.0
    %4901 = vadd.xlane.f32.xlu0 %v4900
    %v4902 = vpop.xlane.xlu0 %4901
    %v4903 = vmul.f32 %v4899, %v2231
    %v4904 = vmul.f32 %v4902, %v2231
    %v4905 = vsub.f32 %v4895, %v4903
    %v4906 = vsub.f32 %v4896, %v4904
    %v4907 = vmul.f32 %v4905, %v4905
    %v4908 = vmul.f32 %v4906, %v4906
    %v4909 = vsel %vm76, %v4907, 0.0
    %4910 = vadd.xlane.f32.xlu0 %v4909
    %v4911 = vpop.xlane.xlu0 %4910
    %v4912 = vsel %vm76, %v4908, 0.0
    %4913 = vadd.xlane.f32.xlu0 %v4912
    %v4914 = vpop.xlane.xlu0 %4913
    %v4915 = vmul.f32 %v4911, %v2231
    %v4916 = vmul.f32 %v4914, %v2231
    %v4917 = vadd.f32 %v4915, 1e-05
    %v4918 = vadd.f32 %v4916, 1e-05
    %v4919 = vrsqrt.pop %v4917
    %v4920 = vrsqrt.pop %v4918
    %v4921 = vmul.f32 %v4905, %v4919
    %v4922 = vmul.f32 %v4906, %v4920
    %v4923 = vlaneseq
    %v4924 = vshrl.u32 %v4923, 7
    %v4925 = vsub.s32 4, %v4924
    %v4926 = vrot.slane %v2492, %v4925
    %v4927 = vmul.f32 %v4921, %v4926
    %v4928 = vmul.f32 %v4922, %v4926
    %v4929 = vlaneseq
    %v4930 = vshrl.u32 %v4929, 7
    %v4931 = vsub.s32 5, %v4930
    %v4932 = vrot.slane %v2492, %v4931
    %v4933 = vadd.f32 %v4927, %v4932
    %v4934 = vadd.f32 %v4928, %v4932
    %v4935 = vld [vmem:[%s10] sm:$0xff]
    %v4936 = vld [vmem:[%s10 + $0x8] sm:$0xff]
    %v4937 = vld [vmem:[%s10 + $0x10] sm:$0xff]
    %v4938 = vld [vmem:[%s10 + $0x18] sm:$0xff]
    %v4939 = vld [vmem:[%s1] sm:$0xff]
    %v4940 = vld [vmem:[%s1 + $0x8] sm:$0xff]
    %v4941 = vld [vmem:[%s11] sm:$0xff]
    %v4942 = vld [vmem:[%s11 + $0x8] sm:$0xff]
    %v4943 = vld [vmem:[%s11 + $0x10] sm:$0xff]
    %v4944 = vld [vmem:[%s11 + $0x18] sm:$0xff]
    %v4946 = vsel %vm76, %v4939, 0
    %v4949 = vsel %vm76, %v4940, 0
    %4951 = vmatprep.subr.mxu0 0.0
    %4952 = vmatpush1.msra.mxu0 %v4941
    %4953 = vmatprep.subr.mxu0 0.0
    %4954 = vmatpush1.msra.mxu0 %v4942
    %4955 = vmatprep.subr.mxu0 0.0
    %4956 = vmatpush1.msra.mxu0 %v4943
    %4957 = vmatprep.subr.mxu0 0.0
    %4958 = vmatpush1.msra.mxu0 %v4944
    %4959 = vmatprep.subr.mxu0 0.0
    %4960 = vmatpush1.msra.mxu0 0.0
    %4961 = vmatprep.subr.mxu0 0.0
    %4962 = vmatpush1.msra.mxu0 0.0
    %4963 = vmatprep.subr.mxu0 0.0
    %4964 = vmatpush1.msra.mxu0 0.0
    %4965 = vmatprep.subr.mxu0 0.0
    %4966 = vmatpush1.msra.mxu0 0.0
    %4967 = vmatprep.subr.mxu0 0.0
    %4968 = vmatpush1.msra.mxu0 0.0
    %4969 = vmatprep.subr.mxu0 0.0
    %4970 = vmatpush1.msra.mxu0 0.0
    %4971 = vmatprep.subr.mxu0 0.0
    %4972 = vmatpush1.msra.mxu0 0.0
    %4973 = vmatprep.subr.mxu0 0.0
    %4974 = vmatpush1.msra.mxu0 0.0
    %4975 = vmatprep.subr.mxu0 0.0
    %4976 = vmatpush1.msra.mxu0 0.0
    %4977 = vmatprep.subr.mxu0 0.0
    %4978 = vmatpush1.msra.mxu0 0.0
    %4979 = vmatprep.subr.mxu0 0.0
    %4980 = vmatpush1.msra.mxu0 0.0
    %4981 = vmatprep.subr.mxu0 0.0
    %4982 = vmatpush1.msra.mxu0 0.0
    %4983 = vmatprep.subr.mxu0 0.0
    %4984 = vmatpush1.msra.mxu0 0.0
    %4985 = vmatprep.subr.mxu0 0.0
    %4986 = vmatpush1.msra.mxu0 0.0
    %4987 = vmatprep.subr.mxu0 0.0
    %4988 = vmatpush1.msra.mxu0 0.0
    %4989 = vmatprep.subr.mxu0 0.0
    %4990 = vmatpush1.msra.mxu0 0.0
    %4991 = vmatprep.subr.mxu0 0.0
    %4992 = vmatpush1.msra.mxu0 0.0
    %4993 = vmatprep.subr.mxu0 0.0
    %4994 = vmatpush1.msra.mxu0 0.0
    %4995 = vmatprep.subr.mxu0 0.0
    %4996 = vmatpush1.msra.mxu0 0.0
    %4997 = vmatprep.subr.mxu0 0.0
    %4998 = vmatpush1.msra.mxu0 0.0
    %4999 = vmatprep.subr.mxu0 0.0
    %5000 = vmatpush1.msra.mxu0 0.0
    %5001 = vmatprep.subr.mxu0 0.0
    %5002 = vmatpush1.msra.mxu0 0.0
    %5003 = vmatprep.subr.mxu0 0.0
    %5004 = vmatpush1.msra.mxu0 0.0
    %5005 = vmatprep.subr.mxu0 0.0
    %5006 = vmatpush1.msra.mxu0 0.0
    %5007 = vmatprep.subr.mxu0 0.0
    %5008 = vmatpush1.msra.mxu0 0.0
    %5009 = vmatprep.subr.mxu0 0.0
    %5010 = vmatpush1.msra.mxu0 0.0
    %5011 = vmatprep.subr.mxu0 0.0
    %5012 = vmatpush1.msra.mxu0 0.0
    %5013 = vmatprep.subr.mxu0 0.0
    %5014 = vmatpush1.msra.mxu0 0.0
    %5015 = vmatprep.mubr.f32.mxu0 0.0
    %5016 = vmatmul.mubr.f32.gmra.mrb[0].mxu0 %v4946
    %v5017 = vpop.f32.mrb[0].mxu0
    %v5018 = vadd.f32 0.0, %v5017
    %v5019 = vpop.f32.mrb[0].mxu0
    %5020 = vmatprep.mubr.f32.mxu0 0.0
    %5021 = vmatmul.mubr.f32.gmra.mrb[0].mxu0 %v4949
    %v5022 = vpop.f32.mrb[0].mxu0
    %v5023 = vadd.f32 0.0, %v5022
    %v5024 = vpop.f32.mrb[0].mxu0
    %5025 = vdwg.mxu0
    %v5027 = vsel %vm76, %v4933, 0
    %v5030 = vsel %vm76, %v4934, 0
    %5032 = vmatprep.subr.mxu0 0.0
    %5033 = vmatpush1.msra.mxu0 %v4935
    %5034 = vmatprep.subr.mxu0 0.0
    %5035 = vmatpush1.msra.mxu0 %v4936
    %5036 = vmatprep.subr.mxu0 0.0
    %5037 = vmatpush1.msra.mxu0 %v4937
    %5038 = vmatprep.subr.mxu0 0.0
    %5039 = vmatpush1.msra.mxu0 %v4938
    %5040 = vmatprep.subr.mxu0 0.0
    %5041 = vmatpush1.msra.mxu0 0.0
    %5042 = vmatprep.subr.mxu0 0.0
    %5043 = vmatpush1.msra.mxu0 0.0
    %5044 = vmatprep.subr.mxu0 0.0
    %5045 = vmatpush1.msra.mxu0 0.0
    %5046 = vmatprep.subr.mxu0 0.0
    %5047 = vmatpush1.msra.mxu0 0.0
    %5048 = vmatprep.subr.mxu0 0.0
    %5049 = vmatpush1.msra.mxu0 0.0
    %5050 = vmatprep.subr.mxu0 0.0
    %5051 = vmatpush1.msra.mxu0 0.0
    %5052 = vmatprep.subr.mxu0 0.0
    %5053 = vmatpush1.msra.mxu0 0.0
    %5054 = vmatprep.subr.mxu0 0.0
    %5055 = vmatpush1.msra.mxu0 0.0
    %5056 = vmatprep.subr.mxu0 0.0
    %5057 = vmatpush1.msra.mxu0 0.0
    %5058 = vmatprep.subr.mxu0 0.0
    %5059 = vmatpush1.msra.mxu0 0.0
    %5060 = vmatprep.subr.mxu0 0.0
    %5061 = vmatpush1.msra.mxu0 0.0
    %5062 = vmatprep.subr.mxu0 0.0
    %5063 = vmatpush1.msra.mxu0 0.0
    %5064 = vmatprep.subr.mxu0 0.0
    %5065 = vmatpush1.msra.mxu0 0.0
    %5066 = vmatprep.subr.mxu0 0.0
    %5067 = vmatpush1.msra.mxu0 0.0
    %5068 = vmatprep.subr.mxu0 0.0
    %5069 = vmatpush1.msra.mxu0 0.0
    %5070 = vmatprep.subr.mxu0 0.0
    %5071 = vmatpush1.msra.mxu0 0.0
    %5072 = vmatprep.subr.mxu0 0.0
    %5073 = vmatpush1.msra.mxu0 0.0
    %5074 = vmatprep.subr.mxu0 0.0
    %5075 = vmatpush1.msra.mxu0 0.0
    %5076 = vmatprep.subr.mxu0 0.0
    %5077 = vmatpush1.msra.mxu0 0.0
    %5078 = vmatprep.subr.mxu0 0.0
    %5079 = vmatpush1.msra.mxu0 0.0
    %5080 = vmatprep.subr.mxu0 0.0
    %5081 = vmatpush1.msra.mxu0 0.0
    %5082 = vmatprep.subr.mxu0 0.0
    %5083 = vmatpush1.msra.mxu0 0.0
    %5084 = vmatprep.subr.mxu0 0.0
    %5085 = vmatpush1.msra.mxu0 0.0
    %5086 = vmatprep.subr.mxu0 0.0
    %5087 = vmatpush1.msra.mxu0 0.0
    %5088 = vmatprep.subr.mxu0 0.0
    %5089 = vmatpush1.msra.mxu0 0.0
    %5090 = vmatprep.subr.mxu0 0.0
    %5091 = vmatpush1.msra.mxu0 0.0
    %5092 = vmatprep.subr.mxu0 0.0
    %5093 = vmatpush1.msra.mxu0 0.0
    %5094 = vmatprep.subr.mxu0 0.0
    %5095 = vmatpush1.msra.mxu0 0.0
    %5096 = vmatprep.mubr.f32.mxu0 0.0
    %5097 = vmatmul.mubr.f32.gmra.mrb[0].mxu0 %v5027
    %v5098 = vpop.f32.mrb[0].mxu0
    %v5099 = vadd.f32 %v5018, %v5098
    %v5100 = vpop.f32.mrb[0].mxu0
    %5101 = vmatprep.mubr.f32.mxu0 0.0
    %5102 = vmatmul.mubr.f32.gmra.mrb[0].mxu0 %v5030
    %v5103 = vpop.f32.mrb[0].mxu0
    %v5104 = vadd.f32 %v5023, %v5103
    %v5105 = vpop.f32.mrb[0].mxu0
    %5106 = vdwg.mxu0
    %v5107 = vld [vmem:[%s12] sm:$0x1]
    %v5109 = vlaneseq
    %v5110 = vshrl.u32 %v5109, 7
    %v5111 = vsub.s32 0, %v5110
    %v5112 = vrot.slane %v5107, %v5111
    %v5114 = vadd.f32 %v5099, %v5112
    %v5115 = vadd.f32 %v5104, %v5112
    %5116 = vst [vmem:[#allocation2] sm:$0xff] %v5114
    %5117 = vst [vmem:[#allocation2 + $0x8] sm:$0xff] %v5115
    // Predicated region
    $region54: #{transformer_model_forward.1} parent=1 // pred_check
      _
    $region55: #{transformer_model_forward.1} parent=1 // pred_check_branch
      %5119 = sbr.rel (0) target = $region57
    $region56: #{transformer_model_forward.1} parent=1 // pred_region
      %s5121 = ssub.s32 256, 256
      %5122 = vsyncadd [#allocation3], %s5121
      %s5123 = sshll.u32 [#allocation2], 4
      %s5124 = int_to_ptr.vmem [resolvable:$true] %s5123
      %5129 = dma.vmem_to_hbm [thread:$0]  %s5124, 256, %s13, [#allocation3], 128, 128, 8
    $region57: #{transformer_model_forward.1} parent=1 // pred_fallthru
      _
    // Predicated region
    $region58: #{transformer_model_forward.1} parent=1 // pred_check
      _
    $region59: #{transformer_model_forward.1} parent=1 // pred_check_branch
      %5131 = sbr.rel (0) target = $region61
    $region60: #{transformer_model_forward.1} parent=1 // pred_region
      %5132 = dma.done [#allocation3], 256
    $region61: #{transformer_model_forward.1} parent=1 // pred_fallthru
      _
    %5133 = vsyncpa [#allocation3], 1

</llo_original>
